<compile_context>
chip_gen: v5e
topology: v5e:2x2
jax: 0.10.0
libtpu: 0.0.40
codegen_flags: <defaults>
</compile_context>

<pallas_src>
import functools

import jax
import jax.numpy as jnp
from jax import lax
from jax.experimental import pallas as pl
from jax.experimental.pallas import tpu as pltpu

EPS = 1e-5  # PyTorch BatchNorm2d default
_VMEM_LIMIT_BYTES = 64 * 1024 * 1024   # <= physical VMEM on v5e/v6e/v7x


# ----------------------------- kernel helpers ---------------------------------

def _write_padded(pad_ref, interior_bf16, hi, wi, c):
    """Write the interior of a (hi+2, wi+2, c) bf16 scratch and zero only the
    1-pixel border (avoids a full-slab clear followed by a full overwrite)."""
    pad_ref[1:hi + 1, 1:wi + 1, :] = interior_bf16
    zrow = jnp.zeros((1, wi + 2, c), jnp.bfloat16)
    pad_ref[0:1, :, :] = zrow
    pad_ref[hi + 1:hi + 2, :, :] = zrow
    zcol = jnp.zeros((hi, 1, c), jnp.bfloat16)
    pad_ref[1:hi + 1, 0:1, :] = zcol
    pad_ref[1:hi + 1, wi + 1:wi + 2, :] = zcol


def _conv3x3_from_padded(pad_ref, w_ref, b_ref, ho, wo, cin):
    """3x3 conv read from a zero-padded bf16 VMEM scratch: 3 MXU matmuls
    (one per kernel row, K = 3*cin, column taps concatenated along channels),
    f32 accumulation.  Returns (ho*wo, cout) f32."""
    hw = ho * wo
    parts = []
    for dy in range(3):
        cat = jnp.concatenate(
            [pad_ref[dy:dy + ho, dx:dx + wo, :] for dx in range(3)], axis=-1)
        parts.append(jnp.dot(cat.reshape(hw, 3 * cin),
                             w_ref[dy * 3 * cin:(dy + 1) * 3 * cin, :],
                             preferred_element_type=jnp.float32))
    return parts[0] + parts[1] + parts[2] + b_ref[...]


# ----------------------------- Pallas kernels ---------------------------------

def _make_kernel_a_direct(h, w, cin):
    """conv1 for identity blocks (stride 1, cin==cout): in-kernel 3x3 over one
    image -- no HBM im2col.  Emits bf16 raw conv1 output + f32 BN partial sums."""
    def kernel(x_ref, w1_ref, b1_ref, z1_ref, st_ref, xpad_ref):
        _write_padded(xpad_ref, x_ref[...], h, w, cin)
        z = _conv3x3_from_padded(xpad_ref, w1_ref, b1_ref, h, w, cin)
        z1_ref[...] = z.astype(z1_ref.dtype)
        st_ref[0:1, :] = jnp.sum(z, axis=0, keepdims=True)
        st_ref[1:2, :] = jnp.sum(z * z, axis=0, keepdims=True)
    return kernel


def _kernel_a_im2col(p_ref, xc_ref, w1_ref, b1_ref, wsc_ref, z1_ref, sc_ref, st_ref):
    """conv1 for strided/projection blocks: one MXU matmul over im2col rows plus
    the 1x1 shortcut conv.  Raw outputs stored bf16; stats stay f32."""
    z = jnp.dot(p_ref[...], w1_ref[...],
                preferred_element_type=jnp.float32) + b1_ref[...]
    sc = jnp.dot(xc_ref[...], wsc_ref[...], preferred_element_type=jnp.float32)
    z1_ref[...] = z.astype(z1_ref.dtype)
    sc_ref[...] = sc.astype(sc_ref.dtype)
    st_ref[0:1, :] = jnp.sum(z, axis=0, keepdims=True)
    st_ref[1:2, :] = jnp.sum(z * z, axis=0, keepdims=True)
    st_ref[2:3, :] = jnp.sum(sc, axis=0, keepdims=True)
    st_ref[3:4, :] = jnp.sum(sc * sc, axis=0, keepdims=True)


def _make_kernel_b(ho, wo, cout):
    """Per image: BN1+ReLU on the fly (f32), bf16 zero-padded scratch, then conv2
    as 3 MXU matmuls.  Emits bf16 raw conv2 output + f32 per-image (sum, sumsq);
    the sum row doubles as the SE global-average-pool numerator."""
    def kernel(z1_ref, s1_ref, t1_ref, w2_ref, b2_ref, z2_ref, st_ref, ypad_ref):
        y1 = jnp.maximum(
            z1_ref[...].astype(jnp.float32) * s1_ref[...] + t1_ref[...], 0.0)
        _write_padded(ypad_ref, y1.astype(jnp.bfloat16), ho, wo, cout)
        z2 = _conv3x3_from_padded(ypad_ref, w2_ref, b2_ref, ho, wo, cout)
        z2_ref[...] = z2.astype(z2_ref.dtype)
        st_ref[0:1, :] = jnp.sum(z2, axis=0, keepdims=True)
        st_ref[1:2, :] = jnp.sum(z2 * z2, axis=0, keepdims=True)
    return kernel


def _make_kernel_c(howo, use_projection):
    """Per image: BN2, SE gate (pool already reduced; two tiny dense layers +
    sigmoid), shortcut (projection-BN or identity), residual add, ReLU."""
    inv_hw = 1.0 / float(howo)

    def _gate(pool_ref, s2_ref, t2_ref, wse1_ref, bse1_ref, wse2_ref, bse2_ref):
        # pooled BN2 output = scale2 * (sum/HW) + shift2  (affine commutes w/ mean)
        pooled = pool_ref[...] * (s2_ref[...] * inv_hw) + t2_ref[...]          # (1, C)
        p8 = jnp.broadcast_to(pooled, (8, pooled.shape[1]))                    # MXU rows
        hid = jnp.maximum(jnp.dot(p8, wse1_ref[...],
                                  preferred_element_type=jnp.float32) + bse1_ref[...], 0.0)
        g8 = jax.nn.sigmoid(jnp.dot(hid, wse2_ref[...],
                                    preferred_element_type=jnp.float32) + bse2_ref[...])
        return g8[0:1, :]                                                      # (1, C)

    if use_projection:
        def kernel(z2_ref, pool_ref, s2_ref, t2_ref,
                   wse1_ref, bse1_ref, wse2_ref, bse2_ref,
                   scraw_ref, ssc_ref, tsc_ref, o_ref):
            gate = _gate(pool_ref, s2_ref, t2_ref, wse1_ref, bse1_ref, wse2_ref, bse2_ref)
            y2 = (z2_ref[...].astype(jnp.float32) * s2_ref[...] + t2_ref[...]) * gate
            sc = scraw_ref[...].astype(jnp.float32) * ssc_ref[...] + tsc_ref[...]
            o_ref[...] = jnp.maximum(y2 + sc, 0.0)
        return kernel

    def kernel(z2_ref, pool_ref, s2_ref, t2_ref,
               wse1_ref, bse1_ref, wse2_ref, bse2_ref, xid_ref, o_ref):
        gate = _gate(pool_ref, s2_ref, t2_ref, wse1_ref, bse1_ref, wse2_ref, bse2_ref)
        y2 = (z2_ref[...].astype(jnp.float32) * s2_ref[...] + t2_ref[...]) * gate
        o_ref[...] = jnp.maximum(y2 + xid_ref[...], 0.0)
    return kernel


# ------------------------------ glue (plain JAX) -------------------------------

def _im2col3x3(x_nhwc, stride):
    """3x3, padding=1 im2col at output resolution (strided blocks only)."""
    n, h, w, c = x_nhwc.shape
    xp = jnp.pad(x_nhwc, ((0, 0), (1, 1), (1, 1), (0, 0)))
    ho = (h - 1) // stride + 1
    wo = (w - 1) // stride + 1
    cols = []
    for dy in range(3):
        for dx in range(3):
            cols.append(xp[:, dy:dy + (ho - 1) * stride + 1:stride,
                           dx:dx + (wo - 1) * stride + 1:stride, :])
    return jnp.concatenate(cols, axis=-1), ho, wo


def _pick_row_tile(m, cap=1024):
    """Row tile for kernel A (im2col path): largest multiple-of-8 divisor <= cap;
    prefer a single big step over degenerate 8-row tiles when m factors badly."""
    if m <= cap or m % 8 != 0:
        return m
    best = 8
    for t in range(8, cap + 1, 8):
        if m % t == 0:
            best = t
    if best < 64 and m <= 16384:
        return m
    return best


def _bn_affine(s, ss, count, gamma, beta):
    """Per-channel scale/shift for training-mode BN given sum / sum-of-squares."""
    mu = s / count
    var = jnp.maximum(ss / count - mu * mu, 0.0)
    scale = gamma * lax.rsqrt(var + EPS)
    shift = beta - mu * scale
    return (scale.reshape(1, -1).astype(jnp.float32),
            shift.reshape(1, -1).astype(jnp.float32))


def residual_block_forward(params, x_nchw, stride):
    n, cin, h, w = x_nchw.shape
    cout = params["w_conv1"].shape[0]
    use_projection = (stride != 1) or (cin != cout)

    def cparams(sem):
        return pltpu.CompilerParams(dimension_semantics=sem,
                                    vmem_limit_bytes=_VMEM_LIMIT_BYTES)

    x = jnp.transpose(x_nchw, (0, 2, 3, 1)).astype(jnp.float32)            # NHWC

    w1 = params["w_conv1"].transpose(2, 3, 1, 0).reshape(9 * cin, cout).astype(jnp.bfloat16)
    b1 = params["b_conv1"].reshape(1, cout).astype(jnp.float32)

    # ------------- kernel A: conv1 (+ optional shortcut conv) + BN1 partials -------
    if not use_projection:
        # Identity block: in-kernel shifted-matmul conv1, no HBM im2col.
        ho, wo = h, w
        howo = ho * wo
        m = n * howo
        z1, stats_a = pl.pallas_call(
            _make_kernel_a_direct(h, w, cin),
            out_shape=(jax.ShapeDtypeStruct((n, howo, cout), jnp.bfloat16),
                       jax.ShapeDtypeStruct((n, 2, cout), jnp.float32)),
            grid=(n,),
            in_specs=[pl.BlockSpec((None, h, w, cin), lambda i: (i, 0, 0, 0)),
                      pl.BlockSpec((9 * cin, cout), lambda i: (0, 0)),
                      pl.BlockSpec((1, cout), lambda i: (0, 0))],
            out_specs=(pl.BlockSpec((None, howo, cout), lambda i: (i, 0, 0)),
                       pl.BlockSpec((None, 2, cout), lambda i: (i, 0, 0))),
            scratch_shapes=[pltpu.VMEM((h + 2, w + 2, cin), jnp.bfloat16)],
            compiler_params=cparams(("parallel",)),
        )(x.astype(jnp.bfloat16), w1, b1)
        sc_raw = None
    else:
        # Strided / projection block: im2col at output resolution for conv1.
        p1, ho, wo = _im2col3x3(x, stride)
        howo = ho * wo
        m = n * howo
        p1 = p1.reshape(m, 9 * cin).astype(jnp.bfloat16)
        xc = x[:, ::stride, ::stride, :].reshape(m, cin).astype(jnp.bfloat16)
        wsc = params["w_sc"].transpose(2, 3, 1, 0).reshape(cin, cout).astype(jnp.bfloat16)

        tm = _pick_row_tile(m)
        grid_a = m // tm

        z1, sc_raw, stats_a = pl.pallas_call(
            _kernel_a_im2col,
            out_shape=(jax.ShapeDtypeStruct((m, cout), jnp.bfloat16),
                       jax.ShapeDtypeStruct((m, cout), jnp.bfloat16),
                       jax.ShapeDtypeStruct((grid_a, 4, cout), jnp.float32)),
            grid=(grid_a,),
            in_specs=[pl.BlockSpec((tm, 9 * cin), lambda i: (i, 0)),
                      pl.BlockSpec((tm, cin), lambda i: (i, 0)),
                      pl.BlockSpec((9 * cin, cout), lambda i: (0, 0)),
                      pl.BlockSpec((1, cout), lambda i: (0, 0)),
                      pl.BlockSpec((cin, cout), lambda i: (0, 0))],
            out_specs=(pl.BlockSpec((tm, cout), lambda i: (i, 0)),
                       pl.BlockSpec((tm, cout), lambda i: (i, 0)),
                       pl.BlockSpec((None, 4, cout), lambda i: (i, 0, 0))),
            compiler_params=cparams(("parallel",)),
        )(p1, xc, w1, b1, wsc)

    stats1 = jnp.sum(stats_a, axis=0)                                        # (rows, C)
    s1, t1 = _bn_affine(stats1[0], stats1[1], m, params["g_bn1"], params["beta_bn1"])
    if use_projection:
        ssc, tsc = _bn_affine(stats1[2], stats1[3], m,
                              params["g_bnsc"], params["beta_bnsc"])

    # ------------- kernel B: conv2 (in-kernel 3x3) + BN2 partials / SE pool --------
    w2 = params["w_conv2"].transpose(2, 3, 1, 0).reshape(9 * cout, cout).astype(jnp.bfloat16)
    b2 = params["b_conv2"].reshape(1, cout).astype(jnp.float32)
    z1_img = z1.reshape(n, ho, wo, cout)

    z2, stats_b = pl.pallas_call(
        _make_kernel_b(ho, wo, cout),
        out_shape=(jax.ShapeDtypeStruct((n, howo, cout), jnp.bfloat16),
                   jax.ShapeDtypeStruct((n, 2, cout), jnp.float32)),
        grid=(n,),
        in_specs=[
            pl.BlockSpec((None, ho, wo, cout), lambda i: (i, 0, 0, 0)),
            pl.BlockSpec((1, cout), lambda i: (0, 0)),
            pl.BlockSpec((1, cout), lambda i: (0, 0)),
            pl.BlockSpec((9 * cout, cout), lambda i: (0, 0)),
            pl.BlockSpec((1, cout), lambda i: (0, 0)),
        ],
        out_specs=(
            pl.BlockSpec((None, howo, cout), lambda i: (i, 0, 0)),
            pl.BlockSpec((None, 2, cout), lambda i: (i, 0, 0)),
        ),
        scratch_shapes=[pltpu.VMEM((ho + 2, wo + 2, cout), jnp.bfloat16)],
        compiler_params=cparams(("parallel",)),
    )(z1_img, s1, t1, w2, b2)

    stats2 = jnp.sum(stats_b, axis=0)                                        # (2, C)
    s2, t2 = _bn_affine(stats2[0], stats2[1], m, params["g_bn2"], params["beta_bn2"])
    pool_raw = stats_b[:, 0:1, :]                          # per-image sum(z2), f32

    # ------------- kernel C: BN2 + SE gate + shortcut + ReLU -----------------------
    cr = cout // 16
    crp = max(8, ((cr + 7) // 8) * 8)   # zero-padded reduced dim (exact: ReLU(0)=0)
    wse1 = jnp.zeros((cout, crp), jnp.float32).at[:, :cr].set(
        params["w_se1"].reshape(cr, cout).T)
    bse1 = jnp.zeros((1, crp), jnp.float32).at[0, :cr].set(params["b_se1"])
    wse2 = jnp.zeros((crp, cout), jnp.float32).at[:cr, :].set(
        params["w_se2"].reshape(cout, cr).T)
    bse2 = params["b_se2"].reshape(1, cout).astype(jnp.float32)

    c_args = [z2, pool_raw, s2, t2, wse1, bse1, wse2, bse2]
    c_specs = [
        pl.BlockSpec((None, howo, cout), lambda i: (i, 0, 0)),
        pl.BlockSpec((None, 1, cout), lambda i: (i, 0, 0)),
        pl.BlockSpec((1, cout), lambda i: (0, 0)),
        pl.BlockSpec((1, cout), lambda i: (0, 0)),
        pl.BlockSpec((cout, crp), lambda i: (0, 0)),
        pl.BlockSpec((1, crp), lambda i: (0, 0)),
        pl.BlockSpec((crp, cout), lambda i: (0, 0)),
        pl.BlockSpec((1, cout), lambda i: (0, 0)),
    ]
    if use_projection:
        c_args += [sc_raw.reshape(n, howo, cout), ssc, tsc]
        c_specs += [pl.BlockSpec((None, howo, cout), lambda i: (i, 0, 0)),
                    pl.BlockSpec((1, cout), lambda i: (0, 0)),
                    pl.BlockSpec((1, cout), lambda i: (0, 0))]
    else:
        c_args += [x.reshape(n, howo, cout)]           # identity shortcut, f32
        c_specs += [pl.BlockSpec((None, howo, cout), lambda i: (i, 0, 0))]

    out = pl.pallas_call(
        _make_kernel_c(howo, use_projection),
        out_shape=jax.ShapeDtypeStruct((n, howo, cout), jnp.float32),
        grid=(n,),
        in_specs=c_specs,
        out_specs=pl.BlockSpec((None, howo, cout), lambda i: (i, 0, 0)),
        compiler_params=cparams(("parallel",)),
    )(*c_args)

    # TODO(synk): callers that consume NHWC could skip this HBM round-trip transpose.
    return out.reshape(n, ho, wo, cout).transpose(0, 3, 1, 2)               # back to NCHW


# --------------------------- deterministic params ------------------------------

def init_params(key, cin, cout):
    ks = jax.random.split(key, 16)
    nrm = lambda k, s, sc=0.1: sc * jax.random.normal(k, s, jnp.float32)
    cr = cout // 16
    return {
        "w_conv1": nrm(ks[0], (cout, cin, 3, 3)),
        "b_conv1": nrm(ks[1], (cout,)),
        "g_bn1": 1.0 + nrm(ks[2], (cout,)),
        "beta_bn1": nrm(ks[3], (cout,)),
        "w_conv2": nrm(ks[4], (cout, cout, 3, 3)),
        "b_conv2": nrm(ks[5], (cout,)),
        "g_bn2": 1.0 + nrm(ks[6], (cout,)),
        "beta_bn2": nrm(ks[7], (cout,)),
        "w_se1": nrm(ks[8], (cr, cout, 1, 1)),
        "b_se1": nrm(ks[9], (cr,)),
        "w_se2": nrm(ks[10], (cout, cr, 1, 1)),
        "b_se2": nrm(ks[11], (cout,)),
        "w_sc": nrm(ks[12], (cout, cin, 1, 1)),   # shortcut conv (bias=False)
        "g_bnsc": 1.0 + nrm(ks[13], (cout,)),
        "beta_bnsc": nrm(ks[14], (cout,)),
    }


# ------------------------ pure-JAX reference (for check) -----------------------

def _round_bf16(x):
    return x.astype(jnp.bfloat16).astype(jnp.float32)


def _bn_train_apply(z_stats, z_val, gamma, beta):
    """Training-mode BN: stats from the f32 (pre-rounding) tensor, applied to z_val."""
    mu = jnp.mean(z_stats, axis=(0, 1, 2), keepdims=True)
    var = jnp.mean((z_stats - mu) ** 2, axis=(0, 1, 2), keepdims=True)
    return (z_val - mu) * lax.rsqrt(var + EPS) * gamma + beta


def residual_block_reference(params, x_nchw, stride):
    """Module semantics under the same numerics policy as the kernels: bf16 conv
    operands / f32 accumulation, bf16 storage of the conv outputs between stages,
    BN statistics from the f32 conv outputs, BN / SE / residual math in f32."""
    x = jnp.transpose(x_nchw, (0, 2, 3, 1)).astype(jnp.float32)
    cin = x.shape[-1]
    cout = params["w_conv1"].shape[0]
    dn = ("NHWC", "HWIO", "NHWC")

    def conv(inp, wt, s, pad):
        return lax.conv_general_dilated(
            inp.astype(jnp.bfloat16), wt.astype(jnp.bfloat16), (s, s), pad,
            dimension_numbers=dn, preferred_element_type=jnp.float32)

    w1 = params["w_conv1"].transpose(2, 3, 1, 0)
    z1 = conv(x, w1, stride, ((1, 1), (1, 1))) + params["b_conv1"]
    y1 = jnp.maximum(_bn_train_apply(z1, _round_bf16(z1),
                                     params["g_bn1"], params["beta_bn1"]), 0.0)

    w2 = params["w_conv2"].transpose(2, 3, 1, 0)
    z2 = conv(y1, w2, 1, ((1, 1), (1, 1))) + params["b_conv2"]
    y2 = _bn_train_apply(z2, _round_bf16(z2), params["g_bn2"], params["beta_bn2"])

    cr = cout // 16
    pooled = jnp.mean(_bn_train_apply(z2, z2, params["g_bn2"], params["beta_bn2"]),
                      axis=(1, 2))                     # SE pool from f32 conv2 output
    hmid = jnp.maximum(pooled @ params["w_se1"].reshape(cr, cout).T + params["b_se1"], 0.0)
    gate = jax.nn.sigmoid(hmid @ params["w_se2"].reshape(cout, cr).T + params["b_se2"])
    y = y2 * gate[:, None, None, :]

    if stride != 1 or cin != cout:
        wsc = params["w_sc"].transpose(2, 3, 1, 0)
        scz = conv(x, wsc, stride, "VALID")
        sc = _bn_train_apply(scz, _round_bf16(scz),
                             params["g_bnsc"], params["beta_bnsc"])
    else:
        sc = x
    return jnp.maximum(y + sc, 0.0).transpose(0, 3, 1, 2)


# ----------------------------------- main --------------------------------------

if __name__ == "__main__":
    key = jax.random.PRNGKey(0)
    configs = [
        # (N, CIN, COUT, H, W, STRIDE)
        (2, 16, 32, 16, 16, 2),   # strided / projection block (im2col conv1 path)
        (2, 32, 32, 16, 16, 1),   # identity block (in-kernel conv1 path)
    ]
    ok = True
    for idx, (N, CIN, COUT, H, W, STRIDE) in enumerate(configs):
        key, kp, kx = jax.random.split(key, 3)
        params = init_params(kp, CIN, COUT)
        x = jax.random.normal(kx, (N, CIN, H, W), jnp.float32)   # NCHW, like PyTorch

        fwd = jax.jit(functools.partial(residual_block_forward, stride=STRIDE))
        out = jax.block_until_ready(fwd(params, x))
        ref = residual_block_reference(params, x, STRIDE)

        assert out.shape == (N, COUT, H // STRIDE, W // STRIDE), out.shape
        err = jnp.abs(out - ref)
        err_mean = float(jnp.mean(err))
        err_max = float(jnp.max(err))
        # bf16 storage of the conv outputs means isolated elements can land on the
        # other side of a bf16 rounding boundary vs. the lax.conv reference (error
        # ~1 bf16 ulp, amplified by the BN scale); the bulk must agree tightly.
        if not (err_mean < 5e-4 and err_max < 6e-2):
            ok = False
            print(f"MISMATCH config {idx}: mean_abs_err={err_mean:.3e} "
                  f"max_abs_err={err_max:.3e}")
    if ok:
        print("KERNEL_OK")
</pallas_src>

<mosaic_0001>
module attributes {stable_mosaic.version = 11 : i64} {
  func.func @_kernel_a_im2col(%arg0: i32, %arg1: memref<128x144xbf16, #tpu.memory_space<vmem>>, %arg2: memref<128x16xbf16, #tpu.memory_space<vmem>>, %arg3: memref<144x32xbf16, #tpu.memory_space<vmem>>, %arg4: memref<1x32xf32, #tpu.memory_space<vmem>>, %arg5: memref<16x32xbf16, #tpu.memory_space<vmem>>, %arg6: memref<128x32xbf16, #tpu.memory_space<vmem>>, %arg7: memref<128x32xbf16, #tpu.memory_space<vmem>>, %arg8: memref<1x4x32xf32, #tpu.memory_space<vmem>>) attributes {dimension_semantics = [#tpu.dimension_semantics<parallel>], iteration_bounds = array<i64: 1>, scalar_prefetch = 0 : i64, scratch_operands = 0 : i64, tpu.core_type = #tpu.core_type<tc>, window_params = [{transform_indices = @transform_0, window_bounds = array<i64: 128, 144>}, {transform_indices = @transform_1, window_bounds = array<i64: 128, 16>}, {pipeline_mode = #tpu.pipeline_mode<synchronous>, transform_indices = @transform_2, window_bounds = array<i64: 144, 32>}, {pipeline_mode = #tpu.pipeline_mode<synchronous>, transform_indices = @transform_3, window_bounds = array<i64: 1, 32>}, {pipeline_mode = #tpu.pipeline_mode<synchronous>, transform_indices = @transform_4, window_bounds = array<i64: 16, 32>}, {transform_indices = @transform_5, window_bounds = array<i64: 128, 32>}, {transform_indices = @transform_6, window_bounds = array<i64: 128, 32>}, {transform_indices = @transform_7, window_bounds = array<i64: 1, 4, 32>}]} {
    %c0 = arith.constant 0 : index
    %c0_0 = arith.constant 0 : index
    %0 = vector.load %arg1[%c0, %c0_0] : memref<128x144xbf16, #tpu.memory_space<vmem>>, vector<128x144xbf16>
    %c0_1 = arith.constant 0 : index
    %c0_2 = arith.constant 0 : index
    %1 = vector.load %arg3[%c0_1, %c0_2] : memref<144x32xbf16, #tpu.memory_space<vmem>>, vector<144x32xbf16>
    %cst = arith.constant dense<0.000000e+00> : vector<128x32xf32>
    %2 = tpu.matmul %0, %1, %cst {dimension_numbers = #tpu.dot_dimension_numbers<[1], [0], [0], [1], [0, 0, 1, 1], [], []>} : vector<128x144xbf16>, vector<144x32xbf16>, vector<128x32xf32> -> vector<128x32xf32>
    %c0_3 = arith.constant 0 : index
    %c0_4 = arith.constant 0 : index
    %3 = vector.load %arg4[%c0_3, %c0_4] : memref<1x32xf32, #tpu.memory_space<vmem>>, vector<1x32xf32>
    %4 = vector.broadcast %3 : vector<1x32xf32> to vector<128x32xf32>
    %5 = arith.addf %2, %4 : vector<128x32xf32>
    %c0_5 = arith.constant 0 : index
    %c0_6 = arith.constant 0 : index
    %6 = vector.load %arg2[%c0_5, %c0_6] : memref<128x16xbf16, #tpu.memory_space<vmem>>, vector<128x16xbf16>
    %c0_7 = arith.constant 0 : index
    %c0_8 = arith.constant 0 : index
    %7 = vector.load %arg5[%c0_7, %c0_8] : memref<16x32xbf16, #tpu.memory_space<vmem>>, vector<16x32xbf16>
    %cst_9 = arith.constant dense<0.000000e+00> : vector<128x32xf32>
    %8 = tpu.matmul %6, %7, %cst_9 {dimension_numbers = #tpu.dot_dimension_numbers<[1], [0], [0], [1], [0, 0, 1, 1], [], []>} : vector<128x16xbf16>, vector<16x32xbf16>, vector<128x32xf32> -> vector<128x32xf32>
    %9 = arith.truncf %5 : vector<128x32xf32> to vector<128x32xbf16>
    %c0_10 = arith.constant 0 : index
    %c0_11 = arith.constant 0 : index
    %10 = vector.load %arg6[%c0_10, %c0_11] : memref<128x32xbf16, #tpu.memory_space<vmem>>, vector<128x32xbf16>
    tpu.vector_store %arg6[%c0_10, %c0_11], %9 {strides = array<i32>} : memref<128x32xbf16, #tpu.memory_space<vmem>>, vector<128x32xbf16>,
    %11 = arith.truncf %8 : vector<128x32xf32> to vector<128x32xbf16>
    %c0_12 = arith.constant 0 : index
    %c0_13 = arith.constant 0 : index
    %12 = vector.load %arg7[%c0_12, %c0_13] : memref<128x32xbf16, #tpu.memory_space<vmem>>, vector<128x32xbf16>
    tpu.vector_store %arg7[%c0_12, %c0_13], %11 {strides = array<i32>} : memref<128x32xbf16, #tpu.memory_space<vmem>>, vector<128x32xbf16>,
    %cst_14 = arith.constant dense<0.000000e+00> : vector<32xf32>
    %13 = vector.multi_reduction <add>, %5, %cst_14 [0] : vector<128x32xf32> to vector<32xf32>
    %14 = vector.shape_cast %13 : vector<32xf32> to vector<1x32xf32>
    %c0_15 = arith.constant 0 : index
    %c0_16 = arith.constant 0 : index
    %c0_17 = arith.constant 0 : index
    %15 = vector.load %arg8[%c0_15, %c0_16, %c0_17] : memref<1x4x32xf32, #tpu.memory_space<vmem>>, vector<1x1x32xf32>
    %16 = vector.shape_cast %15 : vector<1x1x32xf32> to vector<1x32xf32>
    %17 = vector.shape_cast %14 : vector<1x32xf32> to vector<1x1x32xf32>
    tpu.vector_store %arg8[%c0_15, %c0_16, %c0_17], %17 {strides = array<i32>} : memref<1x4x32xf32, #tpu.memory_space<vmem>>, vector<1x1x32xf32>,
    %18 = arith.mulf %5, %5 : vector<128x32xf32>
    %cst_18 = arith.constant dense<0.000000e+00> : vector<32xf32>
    %19 = vector.multi_reduction <add>, %18, %cst_18 [0] : vector<128x32xf32> to vector<32xf32>
    %20 = vector.shape_cast %19 : vector<32xf32> to vector<1x32xf32>
    %c0_19 = arith.constant 0 : index
    %c1 = arith.constant 1 : index
    %c0_20 = arith.constant 0 : index
    %21 = vector.load %arg8[%c0_19, %c1, %c0_20] : memref<1x4x32xf32, #tpu.memory_space<vmem>>, vector<1x1x32xf32>
    %22 = vector.shape_cast %21 : vector<1x1x32xf32> to vector<1x32xf32>
    %23 = vector.shape_cast %20 : vector<1x32xf32> to vector<1x1x32xf32>
    tpu.vector_store %arg8[%c0_19, %c1, %c0_20], %23 {strides = array<i32>} : memref<1x4x32xf32, #tpu.memory_space<vmem>>, vector<1x1x32xf32>,
    %cst_21 = arith.constant dense<0.000000e+00> : vector<32xf32>
    %24 = vector.multi_reduction <add>, %8, %cst_21 [0] : vector<128x32xf32> to vector<32xf32>
    %25 = vector.shape_cast %24 : vector<32xf32> to vector<1x32xf32>
    %c0_22 = arith.constant 0 : index
    %c2 = arith.constant 2 : index
    %c0_23 = arith.constant 0 : index
    %26 = vector.load %arg8[%c0_22, %c2, %c0_23] : memref<1x4x32xf32, #tpu.memory_space<vmem>>, vector<1x1x32xf32>
    %27 = vector.shape_cast %26 : vector<1x1x32xf32> to vector<1x32xf32>
    %28 = vector.shape_cast %25 : vector<1x32xf32> to vector<1x1x32xf32>
    tpu.vector_store %arg8[%c0_22, %c2, %c0_23], %28 {strides = array<i32>} : memref<1x4x32xf32, #tpu.memory_space<vmem>>, vector<1x1x32xf32>,
    %29 = arith.mulf %8, %8 : vector<128x32xf32>
    %cst_24 = arith.constant dense<0.000000e+00> : vector<32xf32>
    %30 = vector.multi_reduction <add>, %29, %cst_24 [0] : vector<128x32xf32> to vector<32xf32>
    %31 = vector.shape_cast %30 : vector<32xf32> to vector<1x32xf32>
    %c0_25 = arith.constant 0 : index
    %c3 = arith.constant 3 : index
    %c0_26 = arith.constant 0 : index
    %32 = vector.load %arg8[%c0_25, %c3, %c0_26] : memref<1x4x32xf32, #tpu.memory_space<vmem>>, vector<1x1x32xf32>
    %33 = vector.shape_cast %32 : vector<1x1x32xf32> to vector<1x32xf32>
    %34 = vector.shape_cast %31 : vector<1x32xf32> to vector<1x1x32xf32>
    tpu.vector_store %arg8[%c0_25, %c3, %c0_26], %34 {strides = array<i32>} : memref<1x4x32xf32, #tpu.memory_space<vmem>>, vector<1x1x32xf32>,
    return
  }
  func.func @transform_0(%arg0: i32) -> (i32, i32) {
    %c0_i32 = arith.constant 0 : i32
    %c0_i32_0 = arith.constant 0 : i32
    return %arg0, %c0_i32 : i32, i32
  }
  func.func @transform_1(%arg0: i32) -> (i32, i32) {
    %c0_i32 = arith.constant 0 : i32
    %c0_i32_0 = arith.constant 0 : i32
    return %arg0, %c0_i32 : i32, i32
  }
  func.func @transform_2(%arg0: i32) -> (i32, i32) {
    %c0_i32 = arith.constant 0 : i32
    %c0_i32_0 = arith.constant 0 : i32
    %c0_i32_1 = arith.constant 0 : i32
    return %c0_i32, %c0_i32_0 : i32, i32
  }
  func.func @transform_3(%arg0: i32) -> (i32, i32) {
    %c0_i32 = arith.constant 0 : i32
    %c0_i32_0 = arith.constant 0 : i32
    %c0_i32_1 = arith.constant 0 : i32
    return %c0_i32, %c0_i32_0 : i32, i32
  }
  func.func @transform_4(%arg0: i32) -> (i32, i32) {
    %c0_i32 = arith.constant 0 : i32
    %c0_i32_0 = arith.constant 0 : i32
    %c0_i32_1 = arith.constant 0 : i32
    return %c0_i32, %c0_i32_0 : i32, i32
  }
  func.func @transform_5(%arg0: i32) -> (i32, i32) {
    %c0_i32 = arith.constant 0 : i32
    %c0_i32_0 = arith.constant 0 : i32
    return %arg0, %c0_i32 : i32, i32
  }
  func.func @transform_6(%arg0: i32) -> (i32, i32) {
    %c0_i32 = arith.constant 0 : i32
    %c0_i32_0 = arith.constant 0 : i32
    return %arg0, %c0_i32 : i32, i32
  }
  func.func @transform_7(%arg0: i32) -> (i32, i32, i32) {
    %c0_i32 = arith.constant 0 : i32
    %c0_i32_0 = arith.constant 0 : i32
    %c0_i32_1 = arith.constant 0 : i32
    return %arg0, %c0_i32, %c0_i32_0 : i32, i32, i32
  }
}

module attributes {stable_mosaic.version = 11 : i64} {
  func.func @kernel(%arg0: i32, %arg1: memref<1x8x8x32xbf16, #tpu.memory_space<vmem>>, %arg2: memref<1x32xf32, #tpu.memory_space<vmem>>, %arg3: memref<1x32xf32, #tpu.memory_space<vmem>>, %arg4: memref<288x32xbf16, #tpu.memory_space<vmem>>, %arg5: memref<1x32xf32, #tpu.memory_space<vmem>>, %arg6: memref<1x64x32xbf16, #tpu.memory_space<vmem>>, %arg7: memref<1x2x32xf32, #tpu.memory_space<vmem>>, %arg8: memref<10x10x32xbf16, #tpu.memory_space<vmem>>) attributes {dimension_semantics = [#tpu.dimension_semantics<parallel>], iteration_bounds = array<i64: 2>, scalar_prefetch = 0 : i64, scratch_operands = 1 : i64, tpu.core_type = #tpu.core_type<tc>, window_params = [{transform_indices = @transform_0, window_bounds = array<i64: 1, 8, 8, 32>}, {pipeline_mode = #tpu.pipeline_mode<synchronous>, transform_indices = @transform_1, window_bounds = array<i64: 1, 32>}, {pipeline_mode = #tpu.pipeline_mode<synchronous>, transform_indices = @transform_2, window_bounds = array<i64: 1, 32>}, {pipeline_mode = #tpu.pipeline_mode<synchronous>, transform_indices = @transform_3, window_bounds = array<i64: 288, 32>}, {pipeline_mode = #tpu.pipeline_mode<synchronous>, transform_indices = @transform_4, window_bounds = array<i64: 1, 32>}, {transform_indices = @transform_5, window_bounds = array<i64: 1, 64, 32>}, {transform_indices = @transform_6, window_bounds = array<i64: 1, 2, 32>}]} {
    %c0 = arith.constant 0 : index
    %c0_0 = arith.constant 0 : index
    %c0_1 = arith.constant 0 : index
    %c0_2 = arith.constant 0 : index
    %0 = vector.load %arg1[%c0, %c0_0, %c0_1, %c0_2] : memref<1x8x8x32xbf16, #tpu.memory_space<vmem>>, vector<1x8x8x32xbf16>
    %1 = vector.shape_cast %0 : vector<1x8x8x32xbf16> to vector<8x8x32xbf16>
    %2 = arith.extf %1 : vector<8x8x32xbf16> to vector<8x8x32xf32>
    %c0_3 = arith.constant 0 : index
    %c0_4 = arith.constant 0 : index
    %3 = vector.load %arg2[%c0_3, %c0_4] : memref<1x32xf32, #tpu.memory_space<vmem>>, vector<1x32xf32>
    %4 = vector.shape_cast %3 : vector<1x32xf32> to vector<1x1x32xf32>
    %5 = vector.broadcast %4 : vector<1x1x32xf32> to vector<8x8x32xf32>
    %6 = arith.mulf %2, %5 : vector<8x8x32xf32>
    %c0_5 = arith.constant 0 : index
    %c0_6 = arith.constant 0 : index
    %7 = vector.load %arg3[%c0_5, %c0_6] : memref<1x32xf32, #tpu.memory_space<vmem>>, vector<1x32xf32>
    %8 = vector.shape_cast %7 : vector<1x32xf32> to vector<1x1x32xf32>
    %9 = vector.broadcast %8 : vector<1x1x32xf32> to vector<8x8x32xf32>
    %10 = arith.addf %6, %9 : vector<8x8x32xf32>
    %cst = arith.constant 0.000000e+00 : f32
    %11 = vector.broadcast %cst : f32 to vector<8x8x32xf32>
    %12 = arith.maximumf %10, %11 : vector<8x8x32xf32>
    %13 = arith.truncf %12 : vector<8x8x32xf32> to vector<8x8x32xbf16>
    %c1 = arith.constant 1 : index
    %c1_7 = arith.constant 1 : index
    %c0_8 = arith.constant 0 : index
    %14 = vector.load %arg8[%c1, %c1_7, %c0_8] : memref<10x10x32xbf16, #tpu.memory_space<vmem>>, vector<8x8x32xbf16>
    tpu.vector_store %arg8[%c1, %c1_7, %c0_8], %13 {strides = array<i32>} : memref<10x10x32xbf16, #tpu.memory_space<vmem>>, vector<8x8x32xbf16>,
    %cst_9 = arith.constant 0.000000e+00 : bf16
    %15 = vector.broadcast %cst_9 : bf16 to vector<1x10x32xbf16>
    %c0_10 = arith.constant 0 : index
    %c0_11 = arith.constant 0 : index
    %c0_12 = arith.constant 0 : index
    %16 = vector.load %arg8[%c0_10, %c0_11, %c0_12] : memref<10x10x32xbf16, #tpu.memory_space<vmem>>, vector<1x10x32xbf16>
    tpu.vector_store %arg8[%c0_10, %c0_11, %c0_12], %15 {strides = array<i32>} : memref<10x10x32xbf16, #tpu.memory_space<vmem>>, vector<1x10x32xbf16>,
    %c9 = arith.constant 9 : index
    %c0_13 = arith.constant 0 : index
    %c0_14 = arith.constant 0 : index
    %17 = vector.load %arg8[%c9, %c0_13, %c0_14] : memref<10x10x32xbf16, #tpu.memory_space<vmem>>, vector<1x10x32xbf16>
    tpu.vector_store %arg8[%c9, %c0_13, %c0_14], %15 {strides = array<i32>} : memref<10x10x32xbf16, #tpu.memory_space<vmem>>, vector<1x10x32xbf16>,
    %cst_15 = arith.constant 0.000000e+00 : bf16
    %18 = vector.broadcast %cst_15 : bf16 to vector<8x1x32xbf16>
    %c1_16 = arith.constant 1 : index
    %c0_17 = arith.constant 0 : index
    %c0_18 = arith.constant 0 : index
    %19 = vector.load %arg8[%c1_16, %c0_17, %c0_18] : memref<10x10x32xbf16, #tpu.memory_space<vmem>>, vector<8x1x32xbf16>
    tpu.vector_store %arg8[%c1_16, %c0_17, %c0_18], %18 {strides = array<i32>} : memref<10x10x32xbf16, #tpu.memory_space<vmem>>, vector<8x1x32xbf16>,
    %c1_19 = arith.constant 1 : index
    %c9_20 = arith.constant 9 : index
    %c0_21 = arith.constant 0 : index
    %20 = vector.load %arg8[%c1_19, %c9_20, %c0_21] : memref<10x10x32xbf16, #tpu.memory_space<vmem>>, vector<8x1x32xbf16>
    tpu.vector_store %arg8[%c1_19, %c9_20, %c0_21], %18 {strides = array<i32>} : memref<10x10x32xbf16, #tpu.memory_space<vmem>>, vector<8x1x32xbf16>,
    %c0_22 = arith.constant 0 : index
    %c0_23 = arith.constant 0 : index
    %c0_24 = arith.constant 0 : index
    %21 = vector.load %arg8[%c0_22, %c0_23, %c0_24] : memref<10x10x32xbf16, #tpu.memory_space<vmem>>, vector<8x8x32xbf16>
    %c0_25 = arith.constant 0 : index
    %c1_26 = arith.constant 1 : index
    %c0_27 = arith.constant 0 : index
    %22 = vector.load %arg8[%c0_25, %c1_26, %c0_27] : memref<10x10x32xbf16, #tpu.memory_space<vmem>>, vector<8x8x32xbf16>
    %c0_28 = arith.constant 0 : index
    %c2 = arith.constant 2 : index
    %c0_29 = arith.constant 0 : index
    %23 = vector.load %arg8[%c0_28, %c2, %c0_29] : memref<10x10x32xbf16, #tpu.memory_space<vmem>>, vector<8x8x32xbf16>
    %24 = tpu.concatenate %21, %22, %23 in 2 : vector<8x8x32xbf16>, vector<8x8x32xbf16>, vector<8x8x32xbf16> -> vector<8x8x96xbf16>
    %25 = vector.shape_cast %24 : vector<8x8x96xbf16> to vector<64x96xbf16>
    %c0_30 = arith.constant 0 : index
    %c0_31 = arith.constant 0 : index
    %26 = vector.load %arg4[%c0_30, %c0_31] : memref<288x32xbf16, #tpu.memory_space<vmem>>, vector<96x32xbf16>
    %cst_32 = arith.constant dense<0.000000e+00> : vector<64x32xf32>
    %27 = tpu.matmul %25, %26, %cst_32 {dimension_numbers = #tpu.dot_dimension_numbers<[1], [0], [0], [1], [0, 0, 1, 1], [], []>} : vector<64x96xbf16>, vector<96x32xbf16>, vector<64x32xf32> -> vector<64x32xf32>
    %c1_33 = arith.constant 1 : index
    %c0_34 = arith.constant 0 : index
    %c0_35 = arith.constant 0 : index
    %28 = vector.load %arg8[%c1_33, %c0_34, %c0_35] : memref<10x10x32xbf16, #tpu.memory_space<vmem>>, vector<8x8x32xbf16>
    %c1_36 = arith.constant 1 : index
    %c1_37 = arith.constant 1 : index
    %c0_38 = arith.constant 0 : index
    %29 = vector.load %arg8[%c1_36, %c1_37, %c0_38] : memref<10x10x32xbf16, #tpu.memory_space<vmem>>, vector<8x8x32xbf16>
    %c1_39 = arith.constant 1 : index
    %c2_40 = arith.constant 2 : index
    %c0_41 = arith.constant 0 : index
    %30 = vector.load %arg8[%c1_39, %c2_40, %c0_41] : memref<10x10x32xbf16, #tpu.memory_space<vmem>>, vector<8x8x32xbf16>
    %31 = tpu.concatenate %28, %29, %30 in 2 : vector<8x8x32xbf16>, vector<8x8x32xbf16>, vector<8x8x32xbf16> -> vector<8x8x96xbf16>
    %32 = vector.shape_cast %31 : vector<8x8x96xbf16> to vector<64x96xbf16>
    %c96 = arith.constant 96 : index
    %c0_42 = arith.constant 0 : index
    %33 = vector.load %arg4[%c96, %c0_42] : memref<288x32xbf16, #tpu.memory_space<vmem>>, vector<96x32xbf16>
    %cst_43 = arith.constant dense<0.000000e+00> : vector<64x32xf32>
    %34 = tpu.matmul %32, %33, %cst_43 {dimension_numbers = #tpu.dot_dimension_numbers<[1], [0], [0], [1], [0, 0, 1, 1], [], []>} : vector<64x96xbf16>, vector<96x32xbf16>, vector<64x32xf32> -> vector<64x32xf32>
    %c2_44 = arith.constant 2 : index
    %c0_45 = arith.constant 0 : index
    %c0_46 = arith.constant 0 : index
    %35 = vector.load %arg8[%c2_44, %c0_45, %c0_46] : memref<10x10x32xbf16, #tpu.memory_space<vmem>>, vector<8x8x32xbf16>
    %c2_47 = arith.constant 2 : index
    %c1_48 = arith.constant 1 : index
    %c0_49 = arith.constant 0 : index
    %36 = vector.load %arg8[%c2_47, %c1_48, %c0_49] : memref<10x10x32xbf16, #tpu.memory_space<vmem>>, vector<8x8x32xbf16>
    %c2_50 = arith.constant 2 : index
    %c2_51 = arith.constant 2 : index
    %c0_52 = arith.constant 0 : index
    %37 = vector.load %arg8[%c2_50, %c2_51, %c0_52] : memref<10x10x32xbf16, #tpu.memory_space<vmem>>, vector<8x8x32xbf16>
    %38 = tpu.concatenate %35, %36, %37 in 2 : vector<8x8x32xbf16>, vector<8x8x32xbf16>, vector<8x8x32xbf16> -> vector<8x8x96xbf16>
    %39 = vector.shape_cast %38 : vector<8x8x96xbf16> to vector<64x96xbf16>
    %c192 = arith.constant 192 : index
    %c0_53 = arith.constant 0 : index
    %40 = vector.load %arg4[%c192, %c0_53] : memref<288x32xbf16, #tpu.memory_space<vmem>>, vector<96x32xbf16>
    %cst_54 = arith.constant dense<0.000000e+00> : vector<64x32xf32>
    %41 = tpu.matmul %39, %40, %cst_54 {dimension_numbers = #tpu.dot_dimension_numbers<[1], [0], [0], [1], [0, 0, 1, 1], [], []>} : vector<64x96xbf16>, vector<96x32xbf16>, vector<64x32xf32> -> vector<64x32xf32>
    %42 = arith.addf %27, %34 : vector<64x32xf32>
    %43 = arith.addf %42, %41 : vector<64x32xf32>
    %c0_55 = arith.constant 0 : index
    %c0_56 = arith.constant 0 : index
    %44 = vector.load %arg5[%c0_55, %c0_56] : memref<1x32xf32, #tpu.memory_space<vmem>>, vector<1x32xf32>
    %45 = vector.broadcast %44 : vector<1x32xf32> to vector<64x32xf32>
    %46 = arith.addf %43, %45 : vector<64x32xf32>
    %47 = arith.truncf %46 : vector<64x32xf32> to vector<64x32xbf16>
    %c0_57 = arith.constant 0 : index
    %c0_58 = arith.constant 0 : index
    %c0_59 = arith.constant 0 : index
    %48 = vector.load %arg6[%c0_57, %c0_58, %c0_59] : memref<1x64x32xbf16, #tpu.memory_space<vmem>>, vector<1x64x32xbf16>
    %49 = vector.shape_cast %48 : vector<1x64x32xbf16> to vector<64x32xbf16>
    %50 = vector.shape_cast %47 : vector<64x32xbf16> to vector<1x64x32xbf16>
    tpu.vector_store %arg6[%c0_57, %c0_58, %c0_59], %50 {strides = array<i32>} : memref<1x64x32xbf16, #tpu.memory_space<vmem>>, vector<1x64x32xbf16>,
    %cst_60 = arith.constant dense<0.000000e+00> : vector<32xf32>
    %51 = vector.multi_reduction <add>, %46, %cst_60 [0] : vector<64x32xf32> to vector<32xf32>
    %52 = vector.shape_cast %51 : vector<32xf32> to vector<1x32xf32>
    %c0_61 = arith.constant 0 : index
    %c0_62 = arith.constant 0 : index
    %c0_63 = arith.constant 0 : index
    %53 = vector.load %arg7[%c0_61, %c0_62, %c0_63] : memref<1x2x32xf32, #tpu.memory_space<vmem>>, vector<1x1x32xf32>
    %54 = vector.shape_cast %53 : vector<1x1x32xf32> to vector<1x32xf32>
    %55 = vector.shape_cast %52 : vector<1x32xf32> to vector<1x1x32xf32>
    tpu.vector_store %arg7[%c0_61, %c0_62, %c0_63], %55 {strides = array<i32>} : memref<1x2x32xf32, #tpu.memory_space<vmem>>, vector<1x1x32xf32>,
    %56 = arith.mulf %46, %46 : vector<64x32xf32>
    %cst_64 = arith.constant dense<0.000000e+00> : vector<32xf32>
    %57 = vector.multi_reduction <add>, %56, %cst_64 [0] : vector<64x32xf32> to vector<32xf32>
    %58 = vector.shape_cast %57 : vector<32xf32> to vector<1x32xf32>
    %c0_65 = arith.constant 0 : index
    %c1_66 = arith.constant 1 : index
    %c0_67 = arith.constant 0 : index
    %59 = vector.load %arg7[%c0_65, %c1_66, %c0_67] : memref<1x2x32xf32, #tpu.memory_space<vmem>>, vector<1x1x32xf32>
    %60 = vector.shape_cast %59 : vector<1x1x32xf32> to vector<1x32xf32>
    %61 = vector.shape_cast %58 : vector<1x32xf32> to vector<1x1x32xf32>
    tpu.vector_store %arg7[%c0_65, %c1_66, %c0_67], %61 {strides = array<i32>} : memref<1x2x32xf32, #tpu.memory_space<vmem>>, vector<1x1x32xf32>,
    return
  }
  func.func @transform_0(%arg0: i32) -> (i32, i32, i32, i32) {
    %c0_i32 = arith.constant 0 : i32
    %c0_i32_0 = arith.constant 0 : i32
    %c0_i32_1 = arith.constant 0 : i32
    %c0_i32_2 = arith.constant 0 : i32
    return %arg0, %c0_i32, %c0_i32_0, %c0_i32_1 : i32, i32, i32, i32
  }
  func.func @transform_1(%arg0: i32) -> (i32, i32) {
    %c0_i32 = arith.constant 0 : i32
    %c0_i32_0 = arith.constant 0 : i32
    %c0_i32_1 = arith.constant 0 : i32
    return %c0_i32, %c0_i32_0 : i32, i32
  }
  func.func @transform_2(%arg0: i32) -> (i32, i32) {
    %c0_i32 = arith.constant 0 : i32
    %c0_i32_0 = arith.constant 0 : i32
    %c0_i32_1 = arith.constant 0 : i32
    return %c0_i32, %c0_i32_0 : i32, i32
  }
  func.func @transform_3(%arg0: i32) -> (i32, i32) {
    %c0_i32 = arith.constant 0 : i32
    %c0_i32_0 = arith.constant 0 : i32
    %c0_i32_1 = arith.constant 0 : i32
    return %c0_i32, %c0_i32_0 : i32, i32
  }
  func.func @transform_4(%arg0: i32) -> (i32, i32) {
    %c0_i32 = arith.constant 0 : i32
    %c0_i32_0 = arith.constant 0 : i32
    %c0_i32_1 = arith.constant 0 : i32
    return %c0_i32, %c0_i32_0 : i32, i32
  }
  func.func @transform_5(%arg0: i32) -> (i32, i32, i32) {
    %c0_i32 = arith.constant 0 : i32
    %c0_i32_0 = arith.constant 0 : i32
    %c0_i32_1 = arith.constant 0 : i32
    return %arg0, %c0_i32, %c0_i32_0 : i32, i32, i32
  }
  func.func @transform_6(%arg0: i32) -> (i32, i32, i32) {
    %c0_i32 = arith.constant 0 : i32
    %c0_i32_0 = arith.constant 0 : i32
    %c0_i32_1 = arith.constant 0 : i32
    return %arg0, %c0_i32, %c0_i32_0 : i32, i32, i32
  }
}

module attributes {stable_mosaic.version = 11 : i64} {
  func.func @kernel(%arg0: i32, %arg1: memref<1x64x32xbf16, #tpu.memory_space<vmem>>, %arg2: memref<1x1x32xf32, #tpu.memory_space<vmem>>, %arg3: memref<1x32xf32, #tpu.memory_space<vmem>>, %arg4: memref<1x32xf32, #tpu.memory_space<vmem>>, %arg5: memref<32x8xf32, #tpu.memory_space<vmem>>, %arg6: memref<1x8xf32, #tpu.memory_space<vmem>>, %arg7: memref<8x32xf32, #tpu.memory_space<vmem>>, %arg8: memref<1x32xf32, #tpu.memory_space<vmem>>, %arg9: memref<1x64x32xbf16, #tpu.memory_space<vmem>>, %arg10: memref<1x32xf32, #tpu.memory_space<vmem>>, %arg11: memref<1x32xf32, #tpu.memory_space<vmem>>, %arg12: memref<1x64x32xf32, #tpu.memory_space<vmem>>) attributes {dimension_semantics = [#tpu.dimension_semantics<parallel>], iteration_bounds = array<i64: 2>, scalar_prefetch = 0 : i64, scratch_operands = 0 : i64, tpu.core_type = #tpu.core_type<tc>, window_params = [{transform_indices = @transform_0, window_bounds = array<i64: 1, 64, 32>}, {transform_indices = @transform_1, window_bounds = array<i64: 1, 1, 32>}, {pipeline_mode = #tpu.pipeline_mode<synchronous>, transform_indices = @transform_2, window_bounds = array<i64: 1, 32>}, {pipeline_mode = #tpu.pipeline_mode<synchronous>, transform_indices = @transform_3, window_bounds = array<i64: 1, 32>}, {pipeline_mode = #tpu.pipeline_mode<synchronous>, transform_indices = @transform_4, window_bounds = array<i64: 32, 8>}, {pipeline_mode = #tpu.pipeline_mode<synchronous>, transform_indices = @transform_5, window_bounds = array<i64: 1, 8>}, {pipeline_mode = #tpu.pipeline_mode<synchronous>, transform_indices = @transform_6, window_bounds = array<i64: 8, 32>}, {pipeline_mode = #tpu.pipeline_mode<synchronous>, transform_indices = @transform_7, window_bounds = array<i64: 1, 32>}, {transform_indices = @transform_8, window_bounds = array<i64: 1, 64, 32>}, {pipeline_mode = #tpu.pipeline_mode<synchronous>, transform_indices = @transform_9, window_bounds = array<i64: 1, 32>}, {pipeline_mode = #tpu.pipeline_mode<synchronous>, transform_indices = @transform_10, window_bounds = array<i64: 1, 32>}, {transform_indices = @transform_11, window_bounds = array<i64: 1, 64, 32>}]} {
    %c0 = arith.constant 0 : index
    %c0_0 = arith.constant 0 : index
    %c0_1 = arith.constant 0 : index
    %0 = vector.load %arg2[%c0, %c0_0, %c0_1] : memref<1x1x32xf32, #tpu.memory_space<vmem>>, vector<1x1x32xf32>
    %1 = vector.shape_cast %0 : vector<1x1x32xf32> to vector<1x32xf32>
    %c0_2 = arith.constant 0 : index
    %c0_3 = arith.constant 0 : index
    %2 = vector.load %arg3[%c0_2, %c0_3] : memref<1x32xf32, #tpu.memory_space<vmem>>, vector<1x32xf32>
    %cst = arith.constant 1.562500e-02 : f32
    %3 = vector.broadcast %cst : f32 to vector<1x32xf32>
    %4 = arith.mulf %2, %3 : vector<1x32xf32>
    %5 = arith.mulf %1, %4 : vector<1x32xf32>
    %c0_4 = arith.constant 0 : index
    %c0_5 = arith.constant 0 : index
    %6 = vector.load %arg4[%c0_4, %c0_5] : memref<1x32xf32, #tpu.memory_space<vmem>>, vector<1x32xf32>
    %7 = arith.addf %5, %6 : vector<1x32xf32>
    %8 = vector.shape_cast %7 : vector<1x32xf32> to vector<1x32xf32>
    %9 = vector.broadcast %8 : vector<1x32xf32> to vector<8x32xf32>
    %c0_6 = arith.constant 0 : index
    %c0_7 = arith.constant 0 : index
    %10 = vector.load %arg5[%c0_6, %c0_7] : memref<32x8xf32, #tpu.memory_space<vmem>>, vector<32x8xf32>
    %cst_8 = arith.constant dense<0.000000e+00> : vector<8x8xf32>
    %11 = tpu.matmul %9, %10, %cst_8 {dimension_numbers = #tpu.dot_dimension_numbers<[1], [0], [0], [1], [0, 0, 1, 1], [], []>} : vector<8x32xf32>, vector<32x8xf32>, vector<8x8xf32> -> vector<8x8xf32>
    %c0_9 = arith.constant 0 : index
    %c0_10 = arith.constant 0 : index
    %12 = vector.load %arg6[%c0_9, %c0_10] : memref<1x8xf32, #tpu.memory_space<vmem>>, vector<1x8xf32>
    %13 = vector.broadcast %12 : vector<1x8xf32> to vector<8x8xf32>
    %14 = arith.addf %11, %13 : vector<8x8xf32>
    %cst_11 = arith.constant 0.000000e+00 : f32
    %15 = vector.broadcast %cst_11 : f32 to vector<8x8xf32>
    %16 = arith.maximumf %14, %15 : vector<8x8xf32>
    %c0_12 = arith.constant 0 : index
    %c0_13 = arith.constant 0 : index
    %17 = vector.load %arg7[%c0_12, %c0_13] : memref<8x32xf32, #tpu.memory_space<vmem>>, vector<8x32xf32>
    %cst_14 = arith.constant dense<0.000000e+00> : vector<8x32xf32>
    %18 = tpu.matmul %16, %17, %cst_14 {dimension_numbers = #tpu.dot_dimension_numbers<[1], [0], [0], [1], [0, 0, 1, 1], [], []>} : vector<8x8xf32>, vector<8x32xf32>, vector<8x32xf32> -> vector<8x32xf32>
    %c0_15 = arith.constant 0 : index
    %c0_16 = arith.constant 0 : index
    %19 = vector.load %arg8[%c0_15, %c0_16] : memref<1x32xf32, #tpu.memory_space<vmem>>, vector<1x32xf32>
    %20 = vector.broadcast %19 : vector<1x32xf32> to vector<8x32xf32>
    %21 = arith.addf %18, %20 : vector<8x32xf32>
    %22 = arith.negf %21 : vector<8x32xf32>
    %23 = math.exp %22 : vector<8x32xf32>
    %cst_17 = arith.constant 1.000000e+00 : f32
    %24 = vector.broadcast %cst_17 : f32 to vector<8x32xf32>
    %25 = arith.addf %24, %23 : vector<8x32xf32>
    %26 = arith.divf %24, %25 : vector<8x32xf32>
    %27 = vector.extract_strided_slice %26 {offsets = [0, 0], sizes = [1, 32], strides = [1, 1]} : vector<8x32xf32> to vector<1x32xf32>
    %c0_18 = arith.constant 0 : index
    %c0_19 = arith.constant 0 : index
    %c0_20 = arith.constant 0 : index
    %28 = vector.load %arg1[%c0_18, %c0_19, %c0_20] : memref<1x64x32xbf16, #tpu.memory_space<vmem>>, vector<1x64x32xbf16>
    %29 = vector.shape_cast %28 : vector<1x64x32xbf16> to vector<64x32xbf16>
    %30 = arith.extf %29 : vector<64x32xbf16> to vector<64x32xf32>
    %c0_21 = arith.constant 0 : index
    %c0_22 = arith.constant 0 : index
    %31 = vector.load %arg3[%c0_21, %c0_22] : memref<1x32xf32, #tpu.memory_space<vmem>>, vector<1x32xf32>
    %32 = vector.broadcast %31 : vector<1x32xf32> to vector<64x32xf32>
    %33 = arith.mulf %30, %32 : vector<64x32xf32>
    %c0_23 = arith.constant 0 : index
    %c0_24 = arith.constant 0 : index
    %34 = vector.load %arg4[%c0_23, %c0_24] : memref<1x32xf32, #tpu.memory_space<vmem>>, vector<1x32xf32>
    %35 = vector.broadcast %34 : vector<1x32xf32> to vector<64x32xf32>
    %36 = arith.addf %33, %35 : vector<64x32xf32>
    %37 = vector.broadcast %27 : vector<1x32xf32> to vector<64x32xf32>
    %38 = arith.mulf %36, %37 : vector<64x32xf32>
    %c0_25 = arith.constant 0 : index
    %c0_26 = arith.constant 0 : index
    %c0_27 = arith.constant 0 : index
    %39 = vector.load %arg9[%c0_25, %c0_26, %c0_27] : memref<1x64x32xbf16, #tpu.memory_space<vmem>>, vector<1x64x32xbf16>
    %40 = vector.shape_cast %39 : vector<1x64x32xbf16> to vector<64x32xbf16>
    %41 = arith.extf %40 : vector<64x32xbf16> to vector<64x32xf32>
    %c0_28 = arith.constant 0 : index
    %c0_29 = arith.constant 0 : index
    %42 = vector.load %arg10[%c0_28, %c0_29] : memref<1x32xf32, #tpu.memory_space<vmem>>, vector<1x32xf32>
    %43 = vector.broadcast %42 : vector<1x32xf32> to vector<64x32xf32>
    %44 = arith.mulf %41, %43 : vector<64x32xf32>
    %c0_30 = arith.constant 0 : index
    %c0_31 = arith.constant 0 : index
    %45 = vector.load %arg11[%c0_30, %c0_31] : memref<1x32xf32, #tpu.memory_space<vmem>>, vector<1x32xf32>
    %46 = vector.broadcast %45 : vector<1x32xf32> to vector<64x32xf32>
    %47 = arith.addf %44, %46 : vector<64x32xf32>
    %48 = arith.addf %38, %47 : vector<64x32xf32>
    %cst_32 = arith.constant 0.000000e+00 : f32
    %49 = vector.broadcast %cst_32 : f32 to vector<64x32xf32>
    %50 = arith.maximumf %48, %49 : vector<64x32xf32>
    %c0_33 = arith.constant 0 : index
    %c0_34 = arith.constant 0 : index
    %c0_35 = arith.constant 0 : index
    %51 = vector.load %arg12[%c0_33, %c0_34, %c0_35] : memref<1x64x32xf32, #tpu.memory_space<vmem>>, vector<1x64x32xf32>
    %52 = vector.shape_cast %51 : vector<1x64x32xf32> to vector<64x32xf32>
    %53 = vector.shape_cast %50 : vector<64x32xf32> to vector<1x64x32xf32>
    tpu.vector_store %arg12[%c0_33, %c0_34, %c0_35], %53 {strides = array<i32>} : memref<1x64x32xf32, #tpu.memory_space<vmem>>, vector<1x64x32xf32>,
    return
  }
  func.func @transform_0(%arg0: i32) -> (i32, i32, i32) {
    %c0_i32 = arith.constant 0 : i32
    %c0_i32_0 = arith.constant 0 : i32
    %c0_i32_1 = arith.constant 0 : i32
    return %arg0, %c0_i32, %c0_i32_0 : i32, i32, i32
  }
  func.func @transform_1(%arg0: i32) -> (i32, i32, i32) {
    %c0_i32 = arith.constant 0 : i32
    %c0_i32_0 = arith.constant 0 : i32
    %c0_i32_1 = arith.constant 0 : i32
    return %arg0, %c0_i32, %c0_i32_0 : i32, i32, i32
  }
  func.func @transform_2(%arg0: i32) -> (i32, i32) {
    %c0_i32 = arith.constant 0 : i32
    %c0_i32_0 = arith.constant 0 : i32
    %c0_i32_1 = arith.constant 0 : i32
    return %c0_i32, %c0_i32_0 : i32, i32
  }
  func.func @transform_3(%arg0: i32) -> (i32, i32) {
    %c0_i32 = arith.constant 0 : i32
    %c0_i32_0 = arith.constant 0 : i32
    %c0_i32_1 = arith.constant 0 : i32
    return %c0_i32, %c0_i32_0 : i32, i32
  }
  func.func @transform_4(%arg0: i32) -> (i32, i32) {
    %c0_i32 = arith.constant 0 : i32
    %c0_i32_0 = arith.constant 0 : i32
    %c0_i32_1 = arith.constant 0 : i32
    return %c0_i32, %c0_i32_0 : i32, i32
  }
  func.func @transform_5(%arg0: i32) -> (i32, i32) {
    %c0_i32 = arith.constant 0 : i32
    %c0_i32_0 = arith.constant 0 : i32
    %c0_i32_1 = arith.constant 0 : i32
    return %c0_i32, %c0_i32_0 : i32, i32
  }
  func.func @transform_6(%arg0: i32) -> (i32, i32) {
    %c0_i32 = arith.constant 0 : i32
    %c0_i32_0 = arith.constant 0 : i32
    %c0_i32_1 = arith.constant 0 : i32
    return %c0_i32, %c0_i32_0 : i32, i32
  }
  func.func @transform_7(%arg0: i32) -> (i32, i32) {
    %c0_i32 = arith.constant 0 : i32
    %c0_i32_0 = arith.constant 0 : i32
    %c0_i32_1 = arith.constant 0 : i32
    return %c0_i32, %c0_i32_0 : i32, i32
  }
  func.func @transform_8(%arg0: i32) -> (i32, i32, i32) {
    %c0_i32 = arith.constant 0 : i32
    %c0_i32_0 = arith.constant 0 : i32
    %c0_i32_1 = arith.constant 0 : i32
    return %arg0, %c0_i32, %c0_i32_0 : i32, i32, i32
  }
  func.func @transform_9(%arg0: i32) -> (i32, i32) {
    %c0_i32 = arith.constant 0 : i32
    %c0_i32_0 = arith.constant 0 : i32
    %c0_i32_1 = arith.constant 0 : i32
    return %c0_i32, %c0_i32_0 : i32, i32
  }
  func.func @transform_10(%arg0: i32) -> (i32, i32) {
    %c0_i32 = arith.constant 0 : i32
    %c0_i32_0 = arith.constant 0 : i32
    %c0_i32_1 = arith.constant 0 : i32
    return %c0_i32, %c0_i32_0 : i32, i32
  }
  func.func @transform_11(%arg0: i32) -> (i32, i32, i32) {
    %c0_i32 = arith.constant 0 : i32
    %c0_i32_0 = arith.constant 0 : i32
    %c0_i32_1 = arith.constant 0 : i32
    return %arg0, %c0_i32, %c0_i32_0 : i32, i32, i32
  }
}

</mosaic_0001>

<llo_original>
// kernel: residual_block_forward.3
$region0: #{residual_block_forward.3}
  #allocation0 [shape = 'u32[]', space=smem, size = 0x4, offset = 0x4, fixed_abs, tag = 'smem constant byte address 0x4 - core index']
  #allocation1 [shape = 'u32[72,128]{1,0:T(1,128)}', space=vmem, size = 0x9000, scoped, tag = 'internal scratch']
  %s0 = inlined_call_operand.vmem [shape: bf16[128,144], index: 0, kind: input, shape index: {}]
  %s1 = inlined_call_operand.vmem [shape: bf16[128,16], index: 1, kind: input, shape index: {}]
  %s2 = inlined_call_operand.vmem [shape: bf16[144,32], index: 2, kind: input, shape index: {}]
  %s3 = inlined_call_operand.vmem [shape: f32[1,32], index: 3, kind: input, shape index: {}]
  %s4 = inlined_call_operand.vmem [shape: bf16[16,32], index: 4, kind: input, shape index: {}]
  %s5 = inlined_call_operand.vmem [shape: bf16[128,32], index: 5, kind: output, shape index: {0}]
  %s6 = inlined_call_operand.vmem [shape: bf16[128,32], index: 6, kind: output, shape index: {1}]
  %s7 = inlined_call_operand.vmem [shape: f32[1,4,32], index: 7, kind: output, shape index: {2}]
  %8 = xla_tuple %s5, %s6, %s7
  %s9 = sld [smem:[#allocation0]]
  $region46: #{residual_block_forward.3} parent=0
    _
  %s11 = ssub.s32 1, %s9
  %s12 = scalar_select 0, %s11, %s9
  // Predicated region
  $region2: #{residual_block_forward.3} parent=0 // pred_check
    _
  $region3: #{residual_block_forward.3} parent=0 // pred_check_branch
    %14 = sbr.rel (0) target = $region5
  $region4: #{residual_block_forward.3} parent=0 // pred_region
    _
  $region5: #{residual_block_forward.3} parent=0 // pred_fallthru
    _
  // Predicated region
  $region6: #{residual_block_forward.3} parent=0 // pred_check
    _
  $region7: #{residual_block_forward.3} parent=0 // pred_check_branch
    %16 = sbr.rel (0) target = $region9
  $region8: #{residual_block_forward.3} parent=0 // pred_region
    _
  $region9: #{residual_block_forward.3} parent=0 // pred_fallthru
    _
  // Predicated region
  $region10: #{residual_block_forward.3} parent=0 // pred_check
    _
  $region11: #{residual_block_forward.3} parent=0 // pred_check_branch
    %18 = sbr.rel (0) target = $region13
  $region12: #{residual_block_forward.3} parent=0 // pred_region
    _
  $region13: #{residual_block_forward.3} parent=0 // pred_fallthru
    _
  // Predicated region
  $region14: #{residual_block_forward.3} parent=0 // pred_check
    _
  $region15: #{residual_block_forward.3} parent=0 // pred_check_branch
    %20 = sbr.rel (0) target = $region17
  $region16: #{residual_block_forward.3} parent=0 // pred_region
    _
  $region17: #{residual_block_forward.3} parent=0 // pred_fallthru
    _
  // Predicated region
  $region18: #{residual_block_forward.3} parent=0 // pred_check
    _
  $region19: #{residual_block_forward.3} parent=0 // pred_check_branch
    %22 = sbr.rel (0) target = $region21
  $region20: #{residual_block_forward.3} parent=0 // pred_region
    _
  $region21: #{residual_block_forward.3} parent=0 // pred_fallthru
    _
  %v24 = vld [vmem:[%s0] sm:$0xff]
  %v25 = vld [vmem:[%s0 + $0x8] sm:$0xff]
  %v26 = vld [vmem:[%s0 + $0x10] sm:$0xff]
  %v27 = vld [vmem:[%s0 + $0x18] sm:$0xff]
  %v28 = vld [vmem:[%s0 + $0x20] sm:$0xff]
  %v29 = vld [vmem:[%s0 + $0x28] sm:$0xff]
  %v30 = vld [vmem:[%s0 + $0x30] sm:$0xff]
  %v31 = vld [vmem:[%s0 + $0x38] sm:$0xff]
  %v32 = vld [vmem:[%s0 + $0x40] sm:$0xff]
  %v33 = vld [vmem:[%s0 + $0x48] sm:$0xff]
  %v34 = vld [vmem:[%s0 + $0x50] sm:$0xff]
  %v35 = vld [vmem:[%s0 + $0x58] sm:$0xff]
  %v36 = vld [vmem:[%s0 + $0x60] sm:$0xff]
  %v37 = vld [vmem:[%s0 + $0x68] sm:$0xff]
  %v38 = vld [vmem:[%s0 + $0x70] sm:$0xff]
  %v39 = vld [vmem:[%s0 + $0x78] sm:$0xff]
  %v40 = vld [vmem:[%s2] sm:$0xf]
  %v41 = vld [vmem:[%s2 + $0x4] sm:$0xf]
  %v42 = vld [vmem:[%s2 + $0x8] sm:$0xf]
  %v43 = vld [vmem:[%s2 + $0xc] sm:$0xf]
  %v44 = vld [vmem:[%s2 + $0x10] sm:$0xf]
  %v45 = vld [vmem:[%s2 + $0x14] sm:$0xf]
  %v46 = vld [vmem:[%s2 + $0x18] sm:$0xf]
  %v47 = vld [vmem:[%s2 + $0x1c] sm:$0xf]
  %v48 = vld [vmem:[%s2 + $0x20] sm:$0xf]
  %v49 = vld [vmem:[%s2 + $0x24] sm:$0xf]
  %v50 = vld [vmem:[%s2 + $0x28] sm:$0xf]
  %v51 = vld [vmem:[%s2 + $0x2c] sm:$0xf]
  %v52 = vld [vmem:[%s2 + $0x30] sm:$0xf]
  %v53 = vld [vmem:[%s2 + $0x34] sm:$0xf]
  %v54 = vld [vmem:[%s2 + $0x38] sm:$0xf]
  %v55 = vld [vmem:[%s2 + $0x3c] sm:$0xf]
  %v56 = vld [vmem:[%s2 + $0x40] sm:$0xf]
  %v57 = vld [vmem:[%s2 + $0x44] sm:$0xf]
  %v58 = vld [vmem:[%s3] sm:$0x1]
  %v60 = vperm.slane %v58, 0
  %v78 = vunpack.c.l.b16 %v24
  %v79 = vunpack.c.h.b16 %v24
  %v80 = vunpack.c.l.b16 %v25
  %v81 = vunpack.c.h.b16 %v25
  %v82 = vunpack.c.l.b16 %v26
  %v83 = vunpack.c.h.b16 %v26
  %v84 = vunpack.c.l.b16 %v27
  %v85 = vunpack.c.h.b16 %v27
  %v86 = vunpack.c.l.b16 %v28
  %v87 = vunpack.c.h.b16 %v28
  %v88 = vunpack.c.l.b16 %v29
  %v89 = vunpack.c.h.b16 %v29
  %v90 = vunpack.c.l.b16 %v30
  %v91 = vunpack.c.h.b16 %v30
  %v92 = vunpack.c.l.b16 %v31
  %v93 = vunpack.c.h.b16 %v31
  %v94 = vunpack.c.l.b16 %v32
  %v95 = vunpack.c.h.b16 %v32
  %v96 = vunpack.c.l.b16 %v33
  %v97 = vunpack.c.h.b16 %v33
  %v98 = vunpack.c.l.b16 %v34
  %v99 = vunpack.c.h.b16 %v34
  %v100 = vunpack.c.l.b16 %v35
  %v101 = vunpack.c.h.b16 %v35
  %v102 = vunpack.c.l.b16 %v36
  %v103 = vunpack.c.h.b16 %v36
  %v104 = vunpack.c.l.b16 %v37
  %v105 = vunpack.c.h.b16 %v37
  %v106 = vunpack.c.l.b16 %v38
  %v107 = vunpack.c.h.b16 %v38
  %v108 = vunpack.c.l.b16 %v39
  %v109 = vunpack.c.h.b16 %v39
  %v110 = vpack.c.b16 %v80, %v78
  %v111 = vpack.c.b16 %v81, %v79
  %v112 = vpack.c.b16 %v84, %v82
  %v113 = vpack.c.b16 %v85, %v83
  %v114 = vpack.c.b16 %v88, %v86
  %v115 = vpack.c.b16 %v89, %v87
  %v116 = vpack.c.b16 %v92, %v90
  %v117 = vpack.c.b16 %v93, %v91
  %v118 = vpack.c.b16 %v96, %v94
  %v119 = vpack.c.b16 %v97, %v95
  %v120 = vpack.c.b16 %v100, %v98
  %v121 = vpack.c.b16 %v101, %v99
  %v122 = vpack.c.b16 %v104, %v102
  %v123 = vpack.c.b16 %v105, %v103
  %v124 = vpack.c.b16 %v108, %v106
  %v125 = vpack.c.b16 %v109, %v107
  %v152 = vunpack.c.l.b16 %v40
  %v153 = vunpack.c.l.b16 %v41
  %v154 = vunpack.c.l.b16 %v42
  %v155 = vunpack.c.l.b16 %v43
  %v156 = vunpack.c.l.b16 %v44
  %v157 = vunpack.c.l.b16 %v45
  %v158 = vunpack.c.l.b16 %v46
  %v159 = vunpack.c.l.b16 %v47
  %v160 = vunpack.c.l.b16 %v48
  %v161 = vunpack.c.l.b16 %v49
  %v162 = vunpack.c.l.b16 %v50
  %v163 = vunpack.c.l.b16 %v51
  %v164 = vunpack.c.l.b16 %v52
  %v165 = vunpack.c.l.b16 %v53
  %v166 = vunpack.c.l.b16 %v54
  %v167 = vunpack.c.l.b16 %v55
  %v168 = vunpack.c.l.b16 %v56
  %v169 = vunpack.c.l.b16 %v57
  %v170 = vpack.c.b16 %v153, %v152
  %v171 = vpack.c.b16 %v155, %v154
  %v172 = vpack.c.b16 %v157, %v156
  %v173 = vpack.c.b16 %v159, %v158
  %v174 = vpack.c.b16 %v161, %v160
  %v175 = vpack.c.b16 %v163, %v162
  %v176 = vpack.c.b16 %v165, %v164
  %v177 = vpack.c.b16 %v167, %v166
  %v178 = vpack.c.b16 %v169, %v168
  %vm188 = vcmask 130048
  %v190 = vsel %vm188, %v111, 0
  %v193 = vsel %vm188, %v113, 0
  %v196 = vsel %vm188, %v115, 0
  %v199 = vsel %vm188, %v117, 0
  %v202 = vsel %vm188, %v119, 0
  %v205 = vsel %vm188, %v121, 0
  %v208 = vsel %vm188, %v123, 0
  %v211 = vsel %vm188, %v125, 0
  %213 = vmatpush.bf16.msra.mxu0 %v177
  %214 = vmatpush.bf16.msra.mxu0 %v176
  %215 = vmatpush.bf16.msra.mxu0 %v175
  %216 = vmatpush.bf16.msra.mxu0 %v174
  %217 = vmatpush.bf16.msra.mxu0 %v173
  %218 = vmatpush.bf16.msra.mxu0 %v172
  %219 = vmatpush.bf16.msra.mxu0 %v171
  %220 = vmatpush.bf16.msra.mxu0 %v170
  %221 = vmatmul.bf16.gmra.mxu0 %v110
  %v222 = vpop.f32.mrf.mxu0
  %v223 = vadd.f32 %v60, %v222
  %v224 = vpop.f32.mrf.mxu0
  %v225 = vadd.f32 %v60, %v224
  %226 = vmatmul.bf16.gmra.mxu0 %v112
  %v227 = vpop.f32.mrf.mxu0
  %v228 = vadd.f32 %v60, %v227
  %v229 = vpop.f32.mrf.mxu0
  %v230 = vadd.f32 %v60, %v229
  %231 = vmatmul.bf16.gmra.mxu0 %v114
  %v232 = vpop.f32.mrf.mxu0
  %v233 = vadd.f32 %v60, %v232
  %v234 = vpop.f32.mrf.mxu0
  %v235 = vadd.f32 %v60, %v234
  %236 = vmatmul.bf16.gmra.mxu0 %v116
  %v237 = vpop.f32.mrf.mxu0
  %v238 = vadd.f32 %v60, %v237
  %v239 = vpop.f32.mrf.mxu0
  %v240 = vadd.f32 %v60, %v239
  %241 = vmatmul.bf16.gmra.mxu0 %v118
  %v242 = vpop.f32.mrf.mxu0
  %v243 = vadd.f32 %v60, %v242
  %v244 = vpop.f32.mrf.mxu0
  %v245 = vadd.f32 %v60, %v244
  %246 = vmatmul.bf16.gmra.mxu0 %v120
  %v247 = vpop.f32.mrf.mxu0
  %v248 = vadd.f32 %v60, %v247
  %v249 = vpop.f32.mrf.mxu0
  %v250 = vadd.f32 %v60, %v249
  %251 = vmatmul.bf16.gmra.mxu0 %v122
  %v252 = vpop.f32.mrf.mxu0
  %v253 = vadd.f32 %v60, %v252
  %v254 = vpop.f32.mrf.mxu0
  %v255 = vadd.f32 %v60, %v254
  %256 = vmatmul.bf16.gmra.mxu0 %v124
  %v257 = vpop.f32.mrf.mxu0
  %v258 = vadd.f32 %v60, %v257
  %v259 = vpop.f32.mrf.mxu0
  %v260 = vadd.f32 %v60, %v259
  %261 = vdwg.mxu0
  %262 = vmatpush.bf16.msra.mxu0 0
  %263 = vmatpush.bf16.msra.mxu0 0
  %264 = vmatpush.bf16.msra.mxu0 0
  %265 = vmatpush.bf16.msra.mxu0 0
  %266 = vmatpush.bf16.msra.mxu0 0
  %267 = vmatpush.bf16.msra.mxu0 0
  %268 = vmatpush.bf16.msra.mxu0 0
  %269 = vmatpush.bf16.msra.mxu0 %v178
  %270 = vmatmul.bf16.gmra.mxu0 %v190
  %v271 = vpop.f32.mrf.mxu0
  %v272 = vadd.f32 %v223, %v271
  %v273 = vpop.f32.mrf.mxu0
  %v274 = vadd.f32 %v225, %v273
  %275 = vmatmul.bf16.gmra.mxu0 %v193
  %v276 = vpop.f32.mrf.mxu0
  %v277 = vadd.f32 %v228, %v276
  %v278 = vpop.f32.mrf.mxu0
  %v279 = vadd.f32 %v230, %v278
  %280 = vmatmul.bf16.gmra.mxu0 %v196
  %v281 = vpop.f32.mrf.mxu0
  %v282 = vadd.f32 %v233, %v281
  %v283 = vpop.f32.mrf.mxu0
  %v284 = vadd.f32 %v235, %v283
  %285 = vmatmul.bf16.gmra.mxu0 %v199
  %v286 = vpop.f32.mrf.mxu0
  %v287 = vadd.f32 %v238, %v286
  %v288 = vpop.f32.mrf.mxu0
  %v289 = vadd.f32 %v240, %v288
  %290 = vmatmul.bf16.gmra.mxu0 %v202
  %v291 = vpop.f32.mrf.mxu0
  %v292 = vadd.f32 %v243, %v291
  %v293 = vpop.f32.mrf.mxu0
  %v294 = vadd.f32 %v245, %v293
  %295 = vmatmul.bf16.gmra.mxu0 %v205
  %v296 = vpop.f32.mrf.mxu0
  %v297 = vadd.f32 %v248, %v296
  %v298 = vpop.f32.mrf.mxu0
  %v299 = vadd.f32 %v250, %v298
  %300 = vmatmul.bf16.gmra.mxu0 %v208
  %v301 = vpop.f32.mrf.mxu0
  %v302 = vadd.f32 %v253, %v301
  %v303 = vpop.f32.mrf.mxu0
  %v304 = vadd.f32 %v255, %v303
  %305 = vmatmul.bf16.gmra.mxu0 %v211
  %v306 = vpop.f32.mrf.mxu0
  %v307 = vadd.f32 %v258, %v306
  %v308 = vpop.f32.mrf.mxu0
  %v309 = vadd.f32 %v260, %v308
  %310 = vdwg.mxu0
  %v311 = vld [vmem:[%s1] sm:$0xf]
  %v312 = vld [vmem:[%s1 + $0x4] sm:$0xf]
  %v313 = vld [vmem:[%s1 + $0x8] sm:$0xf]
  %v314 = vld [vmem:[%s1 + $0xc] sm:$0xf]
  %v315 = vld [vmem:[%s1 + $0x10] sm:$0xf]
  %v316 = vld [vmem:[%s1 + $0x14] sm:$0xf]
  %v317 = vld [vmem:[%s1 + $0x18] sm:$0xf]
  %v318 = vld [vmem:[%s1 + $0x1c] sm:$0xf]
  %v319 = vld [vmem:[%s1 + $0x20] sm:$0xf]
  %v320 = vld [vmem:[%s1 + $0x24] sm:$0xf]
  %v321 = vld [vmem:[%s1 + $0x28] sm:$0xf]
  %v322 = vld [vmem:[%s1 + $0x2c] sm:$0xf]
  %v323 = vld [vmem:[%s1 + $0x30] sm:$0xf]
  %v324 = vld [vmem:[%s1 + $0x34] sm:$0xf]
  %v325 = vld [vmem:[%s1 + $0x38] sm:$0xf]
  %v326 = vld [vmem:[%s1 + $0x3c] sm:$0xf]
  %v327 = vld [vmem:[%s4] sm:$0xf]
  %v328 = vld [vmem:[%s4 + $0x4] sm:$0xf]
  %v345 = vunpack.c.l.b16 %v311
  %v346 = vunpack.c.l.b16 %v312
  %v347 = vunpack.c.l.b16 %v313
  %v348 = vunpack.c.l.b16 %v314
  %v349 = vunpack.c.l.b16 %v315
  %v350 = vunpack.c.l.b16 %v316
  %v351 = vunpack.c.l.b16 %v317
  %v352 = vunpack.c.l.b16 %v318
  %v353 = vunpack.c.l.b16 %v319
  %v354 = vunpack.c.l.b16 %v320
  %v355 = vunpack.c.l.b16 %v321
  %v356 = vunpack.c.l.b16 %v322
  %v357 = vunpack.c.l.b16 %v323
  %v358 = vunpack.c.l.b16 %v324
  %v359 = vunpack.c.l.b16 %v325
  %v360 = vunpack.c.l.b16 %v326
  %v361 = vpack.c.b16 %v346, %v345
  %v362 = vpack.c.b16 %v348, %v347
  %v363 = vpack.c.b16 %v350, %v349
  %v364 = vpack.c.b16 %v352, %v351
  %v365 = vpack.c.b16 %v354, %v353
  %v366 = vpack.c.b16 %v356, %v355
  %v367 = vpack.c.b16 %v358, %v357
  %v368 = vpack.c.b16 %v360, %v359
  %v371 = vunpack.c.l.b16 %v327
  %v372 = vunpack.c.l.b16 %v328
  %v373 = vpack.c.b16 %v372, %v371
  %v376 = vsel %vm188, %v361, 0
  %v379 = vsel %vm188, %v362, 0
  %v382 = vsel %vm188, %v363, 0
  %v385 = vsel %vm188, %v364, 0
  %v388 = vsel %vm188, %v365, 0
  %v391 = vsel %vm188, %v366, 0
  %v394 = vsel %vm188, %v367, 0
  %v397 = vsel %vm188, %v368, 0
  %399 = vmatpush.bf16.msra.mxu0 0
  %400 = vmatpush.bf16.msra.mxu0 0
  %401 = vmatpush.bf16.msra.mxu0 0
  %402 = vmatpush.bf16.msra.mxu0 0
  %403 = vmatpush.bf16.msra.mxu0 0
  %404 = vmatpush.bf16.msra.mxu0 0
  %405 = vmatpush.bf16.msra.mxu0 0
  %406 = vmatpush.bf16.msra.mxu0 %v373
  %407 = vmatmul.bf16.gmra.mxu0 %v376
  %v408 = vpop.f32.mrf.mxu0
  %v409 = vadd.f32 0.0, %v408
  %v410 = vpop.f32.mrf.mxu0
  %v411 = vadd.f32 0.0, %v410
  %412 = vmatmul.bf16.gmra.mxu0 %v379
  %v413 = vpop.f32.mrf.mxu0
  %v414 = vadd.f32 0.0, %v413
  %v415 = vpop.f32.mrf.mxu0
  %v416 = vadd.f32 0.0, %v415
  %417 = vmatmul.bf16.gmra.mxu0 %v382
  %v418 = vpop.f32.mrf.mxu0
  %v419 = vadd.f32 0.0, %v418
  %v420 = vpop.f32.mrf.mxu0
  %v421 = vadd.f32 0.0, %v420
  %422 = vmatmul.bf16.gmra.mxu0 %v385
  %v423 = vpop.f32.mrf.mxu0
  %v424 = vadd.f32 0.0, %v423
  %v425 = vpop.f32.mrf.mxu0
  %v426 = vadd.f32 0.0, %v425
  %427 = vmatmul.bf16.gmra.mxu0 %v388
  %v428 = vpop.f32.mrf.mxu0
  %v429 = vadd.f32 0.0, %v428
  %v430 = vpop.f32.mrf.mxu0
  %v431 = vadd.f32 0.0, %v430
  %432 = vmatmul.bf16.gmra.mxu0 %v391
  %v433 = vpop.f32.mrf.mxu0
  %v434 = vadd.f32 0.0, %v433
  %v435 = vpop.f32.mrf.mxu0
  %v436 = vadd.f32 0.0, %v435
  %437 = vmatmul.bf16.gmra.mxu0 %v394
  %v438 = vpop.f32.mrf.mxu0
  %v439 = vadd.f32 0.0, %v438
  %v440 = vpop.f32.mrf.mxu0
  %v441 = vadd.f32 0.0, %v440
  %442 = vmatmul.bf16.gmra.mxu0 %v397
  %v443 = vpop.f32.mrf.mxu0
  %v444 = vadd.f32 0.0, %v443
  %v445 = vpop.f32.mrf.mxu0
  %v446 = vadd.f32 0.0, %v445
  %447 = vdwg.mxu0
  %v448 = vpack.c.bf16 %v272, %v272
  %v449 = vpack.c.bf16 %v274, %v274
  %v450 = vpack.c.bf16 %v277, %v277
  %v451 = vpack.c.bf16 %v279, %v279
  %v452 = vpack.c.bf16 %v282, %v282
  %v453 = vpack.c.bf16 %v284, %v284
  %v454 = vpack.c.bf16 %v287, %v287
  %v455 = vpack.c.bf16 %v289, %v289
  %v456 = vpack.c.bf16 %v292, %v292
  %v457 = vpack.c.bf16 %v294, %v294
  %v458 = vpack.c.bf16 %v297, %v297
  %v459 = vpack.c.bf16 %v299, %v299
  %v460 = vpack.c.bf16 %v302, %v302
  %v461 = vpack.c.bf16 %v304, %v304
  %v462 = vpack.c.bf16 %v307, %v307
  %v463 = vpack.c.bf16 %v309, %v309
  %vm464 = vcmask 257024
  %465 = vst.msk [vmem:[%s5] sm:$0xf] %vm464, %v448
  %466 = vst.msk [vmem:[%s5 + $0x4] sm:$0xf] %vm464, %v449
  %467 = vst.msk [vmem:[%s5 + $0x8] sm:$0xf] %vm464, %v450
  %468 = vst.msk [vmem:[%s5 + $0xc] sm:$0xf] %vm464, %v451
  %469 = vst.msk [vmem:[%s5 + $0x10] sm:$0xf] %vm464, %v452
  %470 = vst.msk [vmem:[%s5 + $0x14] sm:$0xf] %vm464, %v453
  %471 = vst.msk [vmem:[%s5 + $0x18] sm:$0xf] %vm464, %v454
  %472 = vst.msk [vmem:[%s5 + $0x1c] sm:$0xf] %vm464, %v455
  %473 = vst.msk [vmem:[%s5 + $0x20] sm:$0xf] %vm464, %v456
  %474 = vst.msk [vmem:[%s5 + $0x24] sm:$0xf] %vm464, %v457
  %475 = vst.msk [vmem:[%s5 + $0x28] sm:$0xf] %vm464, %v458
  %476 = vst.msk [vmem:[%s5 + $0x2c] sm:$0xf] %vm464, %v459
  %477 = vst.msk [vmem:[%s5 + $0x30] sm:$0xf] %vm464, %v460
  %478 = vst.msk [vmem:[%s5 + $0x34] sm:$0xf] %vm464, %v461
  %479 = vst.msk [vmem:[%s5 + $0x38] sm:$0xf] %vm464, %v462
  %480 = vst.msk [vmem:[%s5 + $0x3c] sm:$0xf] %vm464, %v463
  %v481 = vpack.c.bf16 %v409, %v409
  %v482 = vpack.c.bf16 %v411, %v411
  %v483 = vpack.c.bf16 %v414, %v414
  %v484 = vpack.c.bf16 %v416, %v416
  %v485 = vpack.c.bf16 %v419, %v419
  %v486 = vpack.c.bf16 %v421, %v421
  %v487 = vpack.c.bf16 %v424, %v424
  %v488 = vpack.c.bf16 %v426, %v426
  %v489 = vpack.c.bf16 %v429, %v429
  %v490 = vpack.c.bf16 %v431, %v431
  %v491 = vpack.c.bf16 %v434, %v434
  %v492 = vpack.c.bf16 %v436, %v436
  %v493 = vpack.c.bf16 %v439, %v439
  %v494 = vpack.c.bf16 %v441, %v441
  %v495 = vpack.c.bf16 %v444, %v444
  %v496 = vpack.c.bf16 %v446, %v446
  %497 = vst.msk [vmem:[%s6] sm:$0xf] %vm464, %v481
  %498 = vst.msk [vmem:[%s6 + $0x4] sm:$0xf] %vm464, %v482
  %499 = vst.msk [vmem:[%s6 + $0x8] sm:$0xf] %vm464, %v483
  %500 = vst.msk [vmem:[%s6 + $0xc] sm:$0xf] %vm464, %v484
  %501 = vst.msk [vmem:[%s6 + $0x10] sm:$0xf] %vm464, %v485
  %502 = vst.msk [vmem:[%s6 + $0x14] sm:$0xf] %vm464, %v486
  %503 = vst.msk [vmem:[%s6 + $0x18] sm:$0xf] %vm464, %v487
  %504 = vst.msk [vmem:[%s6 + $0x1c] sm:$0xf] %vm464, %v488
  %505 = vst.msk [vmem:[%s6 + $0x20] sm:$0xf] %vm464, %v489
  %506 = vst.msk [vmem:[%s6 + $0x24] sm:$0xf] %vm464, %v490
  %507 = vst.msk [vmem:[%s6 + $0x28] sm:$0xf] %vm464, %v491
  %508 = vst.msk [vmem:[%s6 + $0x2c] sm:$0xf] %vm464, %v492
  %509 = vst.msk [vmem:[%s6 + $0x30] sm:$0xf] %vm464, %v493
  %510 = vst.msk [vmem:[%s6 + $0x34] sm:$0xf] %vm464, %v494
  %511 = vst.msk [vmem:[%s6 + $0x38] sm:$0xf] %vm464, %v495
  %512 = vst.msk [vmem:[%s6 + $0x3c] sm:$0xf] %vm464, %v496
  %vm513 = vcmask 261120
  %v514 = vsel %vm513, %v272, 0.0
  %v515 = vsel %vm513, %v274, 0.0
  %v516 = vadd.f32 %v514, %v515
  %v517 = vsel %vm513, %v277, 0.0
  %v518 = vadd.f32 %v516, %v517
  %v519 = vsel %vm513, %v279, 0.0
  %v520 = vadd.f32 %v518, %v519
  %v521 = vsel %vm513, %v282, 0.0
  %v522 = vadd.f32 %v520, %v521
  %v523 = vsel %vm513, %v284, 0.0
  %v524 = vadd.f32 %v522, %v523
  %v525 = vsel %vm513, %v287, 0.0
  %v526 = vadd.f32 %v524, %v525
  %v527 = vsel %vm513, %v289, 0.0
  %v528 = vadd.f32 %v526, %v527
  %v529 = vsel %vm513, %v292, 0.0
  %v530 = vadd.f32 %v528, %v529
  %v531 = vsel %vm513, %v294, 0.0
  %v532 = vadd.f32 %v530, %v531
  %v533 = vsel %vm513, %v297, 0.0
  %v534 = vadd.f32 %v532, %v533
  %v535 = vsel %vm513, %v299, 0.0
  %v536 = vadd.f32 %v534, %v535
  %v537 = vsel %vm513, %v302, 0.0
  %v538 = vadd.f32 %v536, %v537
  %v539 = vsel %vm513, %v304, 0.0
  %v540 = vadd.f32 %v538, %v539
  %v541 = vsel %vm513, %v307, 0.0
  %v542 = vadd.f32 %v540, %v541
  %v543 = vsel %vm513, %v309, 0.0
  %v544 = vadd.f32 %v542, %v543
  %v545 = vrot.slane %v544, 4
  %v546 = vadd.f32 %v544, %v545
  %v547 = vrot.slane %v546, 2
  %v548 = vadd.f32 %v546, %v547
  %v549 = vrot.slane %v548, 1
  %v550 = vadd.f32 %v548, %v549
  %vm551 = vcmask 253952
  %552 = vst.msk [vmem:[%s7] sm:$0x1] %vm551, %v550
  %v553 = vmul.f32 %v272, %v272
  %v554 = vmul.f32 %v274, %v274
  %v555 = vmul.f32 %v277, %v277
  %v556 = vmul.f32 %v279, %v279
  %v557 = vmul.f32 %v282, %v282
  %v558 = vmul.f32 %v284, %v284
  %v559 = vmul.f32 %v287, %v287
  %v560 = vmul.f32 %v289, %v289
  %v561 = vmul.f32 %v292, %v292
  %v562 = vmul.f32 %v294, %v294
  %v563 = vmul.f32 %v297, %v297
  %v564 = vmul.f32 %v299, %v299
  %v565 = vmul.f32 %v302, %v302
  %v566 = vmul.f32 %v304, %v304
  %v567 = vmul.f32 %v307, %v307
  %v568 = vmul.f32 %v309, %v309
  %v569 = vsel %vm513, %v553, 0.0
  %v570 = vsel %vm513, %v554, 0.0
  %v571 = vadd.f32 %v569, %v570
  %v572 = vsel %vm513, %v555, 0.0
  %v573 = vadd.f32 %v571, %v572
  %v574 = vsel %vm513, %v556, 0.0
  %v575 = vadd.f32 %v573, %v574
  %v576 = vsel %vm513, %v557, 0.0
  %v577 = vadd.f32 %v575, %v576
  %v578 = vsel %vm513, %v558, 0.0
  %v579 = vadd.f32 %v577, %v578
  %v580 = vsel %vm513, %v559, 0.0
  %v581 = vadd.f32 %v579, %v580
  %v582 = vsel %vm513, %v560, 0.0
  %v583 = vadd.f32 %v581, %v582
  %v584 = vsel %vm513, %v561, 0.0
  %v585 = vadd.f32 %v583, %v584
  %v586 = vsel %vm513, %v562, 0.0
  %v587 = vadd.f32 %v585, %v586
  %v588 = vsel %vm513, %v563, 0.0
  %v589 = vadd.f32 %v587, %v588
  %v590 = vsel %vm513, %v564, 0.0
  %v591 = vadd.f32 %v589, %v590
  %v592 = vsel %vm513, %v565, 0.0
  %v593 = vadd.f32 %v591, %v592
  %v594 = vsel %vm513, %v566, 0.0
  %v595 = vadd.f32 %v593, %v594
  %v596 = vsel %vm513, %v567, 0.0
  %v597 = vadd.f32 %v595, %v596
  %v598 = vsel %vm513, %v568, 0.0
  %v599 = vadd.f32 %v597, %v598
  %v600 = vrot.slane %v599, 4
  %v601 = vadd.f32 %v599, %v600
  %v602 = vrot.slane %v601, 2
  %v603 = vadd.f32 %v601, %v602
  %v604 = vrot.slane %v603, 1
  %v605 = vadd.f32 %v603, %v604
  %606 = vst.msk [vmem:[%s7 + $0x1] sm:$0x1] %vm551, %v605
  %v607 = vsel %vm513, %v409, 0.0
  %v608 = vsel %vm513, %v411, 0.0
  %v609 = vadd.f32 %v607, %v608
  %v610 = vsel %vm513, %v414, 0.0
  %v611 = vadd.f32 %v609, %v610
  %v612 = vsel %vm513, %v416, 0.0
  %v613 = vadd.f32 %v611, %v612
  %v614 = vsel %vm513, %v419, 0.0
  %v615 = vadd.f32 %v613, %v614
  %v616 = vsel %vm513, %v421, 0.0
  %v617 = vadd.f32 %v615, %v616
  %v618 = vsel %vm513, %v424, 0.0
  %v619 = vadd.f32 %v617, %v618
  %v620 = vsel %vm513, %v426, 0.0
  %v621 = vadd.f32 %v619, %v620
  %v622 = vsel %vm513, %v429, 0.0
  %v623 = vadd.f32 %v621, %v622
  %v624 = vsel %vm513, %v431, 0.0
  %v625 = vadd.f32 %v623, %v624
  %v626 = vsel %vm513, %v434, 0.0
  %v627 = vadd.f32 %v625, %v626
  %v628 = vsel %vm513, %v436, 0.0
  %v629 = vadd.f32 %v627, %v628
  %v630 = vsel %vm513, %v439, 0.0
  %v631 = vadd.f32 %v629, %v630
  %v632 = vsel %vm513, %v441, 0.0
  %v633 = vadd.f32 %v631, %v632
  %v634 = vsel %vm513, %v444, 0.0
  %v635 = vadd.f32 %v633, %v634
  %v636 = vsel %vm513, %v446, 0.0
  %v637 = vadd.f32 %v635, %v636
  %v638 = vrot.slane %v637, 4
  %v639 = vadd.f32 %v637, %v638
  %v640 = vrot.slane %v639, 2
  %v641 = vadd.f32 %v639, %v640
  %v642 = vrot.slane %v641, 1
  %v643 = vadd.f32 %v641, %v642
  %644 = vst.msk [vmem:[%s7 + $0x2] sm:$0x1] %vm551, %v643
  %v645 = vmul.f32 %v409, %v409
  %v646 = vmul.f32 %v411, %v411
  %v647 = vmul.f32 %v414, %v414
  %v648 = vmul.f32 %v416, %v416
  %v649 = vmul.f32 %v419, %v419
  %v650 = vmul.f32 %v421, %v421
  %v651 = vmul.f32 %v424, %v424
  %v652 = vmul.f32 %v426, %v426
  %v653 = vmul.f32 %v429, %v429
  %v654 = vmul.f32 %v431, %v431
  %v655 = vmul.f32 %v434, %v434
  %v656 = vmul.f32 %v436, %v436
  %v657 = vmul.f32 %v439, %v439
  %v658 = vmul.f32 %v441, %v441
  %v659 = vmul.f32 %v444, %v444
  %v660 = vmul.f32 %v446, %v446
  %v661 = vsel %vm513, %v645, 0.0
  %v662 = vsel %vm513, %v646, 0.0
  %v663 = vadd.f32 %v661, %v662
  %v664 = vsel %vm513, %v647, 0.0
  %v665 = vadd.f32 %v663, %v664
  %v666 = vsel %vm513, %v648, 0.0
  %v667 = vadd.f32 %v665, %v666
  %v668 = vsel %vm513, %v649, 0.0
  %v669 = vadd.f32 %v667, %v668
  %v670 = vsel %vm513, %v650, 0.0
  %v671 = vadd.f32 %v669, %v670
  %v672 = vsel %vm513, %v651, 0.0
  %v673 = vadd.f32 %v671, %v672
  %v674 = vsel %vm513, %v652, 0.0
  %v675 = vadd.f32 %v673, %v674
  %v676 = vsel %vm513, %v653, 0.0
  %v677 = vadd.f32 %v675, %v676
  %v678 = vsel %vm513, %v654, 0.0
  %v679 = vadd.f32 %v677, %v678
  %v680 = vsel %vm513, %v655, 0.0
  %v681 = vadd.f32 %v679, %v680
  %v682 = vsel %vm513, %v656, 0.0
  %v683 = vadd.f32 %v681, %v682
  %v684 = vsel %vm513, %v657, 0.0
  %v685 = vadd.f32 %v683, %v684
  %v686 = vsel %vm513, %v658, 0.0
  %v687 = vadd.f32 %v685, %v686
  %v688 = vsel %vm513, %v659, 0.0
  %v689 = vadd.f32 %v687, %v688
  %v690 = vsel %vm513, %v660, 0.0
  %v691 = vadd.f32 %v689, %v690
  %v692 = vrot.slane %v691, 4
  %v693 = vadd.f32 %v691, %v692
  %v694 = vrot.slane %v693, 2
  %v695 = vadd.f32 %v693, %v694
  %v696 = vrot.slane %v695, 1
  %v697 = vadd.f32 %v695, %v696
  %698 = vst.msk [vmem:[%s7 + $0x3] sm:$0x1] %vm551, %v697
  // Predicated region
  $region22: #{residual_block_forward.3} parent=0 // pred_check
    _
  $region23: #{residual_block_forward.3} parent=0 // pred_check_branch
    %700 = sbr.rel (0) target = $region25
  $region24: #{residual_block_forward.3} parent=0 // pred_region
    _
  $region25: #{residual_block_forward.3} parent=0 // pred_fallthru
    _
  // Predicated region
  $region26: #{residual_block_forward.3} parent=0 // pred_check
    _
  $region27: #{residual_block_forward.3} parent=0 // pred_check_branch
    %702 = sbr.rel (0) target = $region29
  $region28: #{residual_block_forward.3} parent=0 // pred_region
    _
  $region29: #{residual_block_forward.3} parent=0 // pred_fallthru
    _
  // Predicated region
  $region30: #{residual_block_forward.3} parent=0 // pred_check
    _
  $region31: #{residual_block_forward.3} parent=0 // pred_check_branch
    %704 = sbr.rel (0) target = $region33
  $region32: #{residual_block_forward.3} parent=0 // pred_region
    _
  $region33: #{residual_block_forward.3} parent=0 // pred_fallthru
    _
  // Predicated region
  $region34: #{residual_block_forward.3} parent=0 // pred_check
    _
  $region35: #{residual_block_forward.3} parent=0 // pred_check_branch
    %706 = sbr.rel (0) target = $region37
  $region36: #{residual_block_forward.3} parent=0 // pred_region
    _
  $region37: #{residual_block_forward.3} parent=0 // pred_fallthru
    _
  // Predicated region
  $region38: #{residual_block_forward.3} parent=0 // pred_check
    _
  $region39: #{residual_block_forward.3} parent=0 // pred_check_branch
    %708 = sbr.rel (0) target = $region41
  $region40: #{residual_block_forward.3} parent=0 // pred_region
    _
  $region41: #{residual_block_forward.3} parent=0 // pred_fallthru
    _
  // Predicated region
  $region42: #{residual_block_forward.3} parent=0 // pred_check
    _
  $region43: #{residual_block_forward.3} parent=0 // pred_check_branch
    %710 = sbr.rel (0) target = $region45
  $region44: #{residual_block_forward.3} parent=0 // pred_region
    _
  $region45: #{residual_block_forward.3} parent=0 // pred_fallthru
    _

// kernel: residual_block_forward.5
$region0: #{residual_block_forward.5}
  #allocation0 [shape = 'u32[]', space=smem, size = 0x4, offset = 0x4, fixed_abs, tag = 'smem constant byte address 0x4 - core index']
  #allocation1 [shape = 'u32[72,128]{1,0:T(1,128)}', space=vmem, size = 0x9000, scoped, tag = 'internal scratch']
  %s0 = inlined_call_operand.vmem [shape: bf16[2,64,32], index: 0, kind: input, shape index: {}]
  %s1 = inlined_call_operand.vmem [shape: f32[2,1,32], index: 1, kind: input, shape index: {}]
  %s2 = inlined_call_operand.vmem [shape: f32[1,32], index: 2, kind: input, shape index: {}]
  %s3 = inlined_call_operand.vmem [shape: f32[1,32], index: 3, kind: input, shape index: {}]
  %s4 = inlined_call_operand.vmem [shape: f32[32,8], index: 4, kind: input, shape index: {}]
  %s5 = inlined_call_operand.vmem [shape: f32[1,8], index: 5, kind: input, shape index: {}]
  %s6 = inlined_call_operand.vmem [shape: f32[8,32], index: 6, kind: input, shape index: {}]
  %s7 = inlined_call_operand.vmem [shape: f32[1,32], index: 7, kind: input, shape index: {}]
  %s8 = inlined_call_operand.vmem [shape: bf16[2,64,32], index: 8, kind: input, shape index: {}]
  %s9 = inlined_call_operand.vmem [shape: f32[1,32], index: 9, kind: input, shape index: {}]
  %s10 = inlined_call_operand.vmem [shape: f32[1,32], index: 10, kind: input, shape index: {}]
  %s11 = inlined_call_operand.hbm [shape: f32[2,64,32], index: 11, kind: output, shape index: {}]
  %s12 = sld [smem:[#allocation0]]
  $region77: #{residual_block_forward.5} parent=0
    _
  %s14 = ssub.s32 1, %s12
  %s15 = scalar_select 0, %s14, %s12
  $region1: #{residual_block_forward.5} parent=0
    #allocation2 [shape = 'u8[65536]{0}', space=vmem, size = 0x10000, scoped, tag = 'output window, operand 0']
    #allocation3 [shape = 's32[2]{0}', space=sflag, size = 0x8, scoped, tag = 'scoped memory for residual_block_forward.5']
    %16 = vsyncpa [#allocation3], 0
    %s17 = scalar_lea.sflag [#allocation3], 1
    %18 = vsyncpa %s17, 0
    loop: start=0, step=1, limit=4
    $region2: #{residual_block_forward.5} parent=1 // loop_pre_header
      _
    $region3: #{residual_block_forward.5} parent=1 // loop_header
      %s20 = sphi 0, %s24
      %p21 = scmp.ge.s32.totalorder %s20, 4
      %s30 = sphi 0, %s32
      %s33 = sphi 0, %s30
      %s34 = sphi 0, %s33
      %s50 = sphi 0, %s34
      %s56 = sphi 0, %s58
      %s59 = sphi 0, %s56
      %s60 = sphi 0, %s59
      %s76 = sphi 0, %s60
      %s80 = sphi 0, %s80
      %s82 = sphi 0, %s80
      %s83 = sphi 0, %s82
      %s97 = sphi 0, %s83
      %s101 = sphi 0, %s101
      %s103 = sphi 0, %s101
      %s104 = sphi 0, %s103
      %s118 = sphi 0, %s104
      %s122 = sphi 0, %s122
      %s124 = sphi 0, %s122
      %s125 = sphi 0, %s124
      %s139 = sphi 0, %s125
      %s143 = sphi 0, %s143
      %s145 = sphi 0, %s143
      %s146 = sphi 0, %s145
      %s160 = sphi 0, %s146
      %s164 = sphi 0, %s164
      %s166 = sphi 0, %s164
      %s167 = sphi 0, %s166
      %s181 = sphi 0, %s167
      %s185 = sphi 0, %s185
      %s187 = sphi 0, %s185
      %s188 = sphi 0, %s187
      %s202 = sphi 0, %s188
      %s208 = sphi 0, %s210
      %s211 = sphi 0, %s208
      %s212 = sphi 0, %s211
      %s228 = sphi 0, %s212
      %s232 = sphi 0, %s232
      %s234 = sphi 0, %s232
      %s235 = sphi 0, %s234
      %s249 = sphi 0, %s235
      %s253 = sphi 0, %s253
      %s255 = sphi 0, %s253
      %s256 = sphi 0, %s255
      %s270 = sphi 0, %s256
      %s276 = sphi 0, %s278
      %s279 = sphi 0, %s276
      %s280 = sphi 0, %s279
      %s296 = sphi 0, %s280
    $region4: #{residual_block_forward.5} parent=1 // loop_header_branch
      %23 = sbr.rel (%p21) target = $region8
    $region5: #{residual_block_forward.5} parent=1 // loop_body
      %s25 = ssub.s32 %s20, 1
      %s26 = ssub.s32 %s20, 2
      %s27 = sadd.s32 %s20, 1
      %s28 = ssub.s32 %s20, %s27
      %p29 = scmp.eq.s32.totalorder %s28, 0
      %s31 = sadd.s32 %s30, 1
      %s32 = scalar_select %p29, %s30, %s31
      %p35 = pneg %p29
      %p36 = scmp.eq.s32.totalorder %s20, 1
      %p37 = por %p35, %p36
      %p38 = scmp.ne.s32.totalorder %s30, %s33
      %p39 = scmp.eq.s32.totalorder %s20, 0
      %p40 = por %p38, %p39
      %p41 = scmp.ne.s32.totalorder %s30, %s33
      %p42 = scmp.eq.s32.totalorder %s25, 1
      %p43 = por %p41, %p42
      %p44 = scmp.ne.s32.totalorder %s33, %s34
      %p45 = scmp.eq.s32.totalorder %s25, 0
      %p46 = por %p44, %p45
      %p47 = scmp.ne.s32.totalorder %s33, %s34
      %p48 = scmp.eq.s32.totalorder %s26, 1
      %p49 = por %p47, %p48
      %p51 = scmp.ne.s32.totalorder %s34, %s50
      %p52 = scmp.eq.s32.totalorder %s26, 0
      %p53 = por %p51, %p52
      %s54 = ssub.s32 %s20, %s27
      %p55 = scmp.eq.s32.totalorder %s54, 0
      %s57 = sadd.s32 %s56, 1
      %s58 = scalar_select %p55, %s56, %s57
      %p61 = pneg %p55
      %p62 = scmp.eq.s32.totalorder %s20, 1
      %p63 = por %p61, %p62
      %p64 = scmp.ne.s32.totalorder %s56, %s59
      %p65 = scmp.eq.s32.totalorder %s20, 0
      %p66 = por %p64, %p65
      %p67 = scmp.ne.s32.totalorder %s56, %s59
      %p68 = scmp.eq.s32.totalorder %s25, 1
      %p69 = por %p67, %p68
      %p70 = scmp.ne.s32.totalorder %s59, %s60
      %p71 = scmp.eq.s32.totalorder %s25, 0
      %p72 = por %p70, %p71
      %p73 = scmp.ne.s32.totalorder %s59, %s60
      %p74 = scmp.eq.s32.totalorder %s26, 1
      %p75 = por %p73, %p74
      %p77 = scmp.ne.s32.totalorder %s60, %s76
      %p78 = scmp.eq.s32.totalorder %s26, 0
      %p79 = por %p77, %p78
      %s81 = sadd.s32 %s80, 1
      %p84 = scmp.eq.s32.totalorder %s20, 1
      %p85 = scmp.ne.s32.totalorder %s80, %s82
      %p86 = scmp.eq.s32.totalorder %s20, 0
      %p87 = por %p85, %p86
      %p88 = scmp.ne.s32.totalorder %s80, %s82
      %p89 = scmp.eq.s32.totalorder %s25, 1
      %p90 = por %p88, %p89
      %p91 = scmp.ne.s32.totalorder %s82, %s83
      %p92 = scmp.eq.s32.totalorder %s25, 0
      %p93 = por %p91, %p92
      %p94 = scmp.ne.s32.totalorder %s82, %s83
      %p95 = scmp.eq.s32.totalorder %s26, 1
      %p96 = por %p94, %p95
      %p98 = scmp.ne.s32.totalorder %s83, %s97
      %p99 = scmp.eq.s32.totalorder %s26, 0
      %p100 = por %p98, %p99
      %s102 = sadd.s32 %s101, 1
      %p105 = scmp.eq.s32.totalorder %s20, 1
      %p106 = scmp.ne.s32.totalorder %s101, %s103
      %p107 = scmp.eq.s32.totalorder %s20, 0
      %p108 = por %p106, %p107
      %p109 = scmp.ne.s32.totalorder %s101, %s103
      %p110 = scmp.eq.s32.totalorder %s25, 1
      %p111 = por %p109, %p110
      %p112 = scmp.ne.s32.totalorder %s103, %s104
      %p113 = scmp.eq.s32.totalorder %s25, 0
      %p114 = por %p112, %p113
      %p115 = scmp.ne.s32.totalorder %s103, %s104
      %p116 = scmp.eq.s32.totalorder %s26, 1
      %p117 = por %p115, %p116
      %p119 = scmp.ne.s32.totalorder %s104, %s118
      %p120 = scmp.eq.s32.totalorder %s26, 0
      %p121 = por %p119, %p120
      %s123 = sadd.s32 %s122, 1
      %p126 = scmp.eq.s32.totalorder %s20, 1
      %p127 = scmp.ne.s32.totalorder %s122, %s124
      %p128 = scmp.eq.s32.totalorder %s20, 0
      %p129 = por %p127, %p128
      %p130 = scmp.ne.s32.totalorder %s122, %s124
      %p131 = scmp.eq.s32.totalorder %s25, 1
      %p132 = por %p130, %p131
      %p133 = scmp.ne.s32.totalorder %s124, %s125
      %p134 = scmp.eq.s32.totalorder %s25, 0
      %p135 = por %p133, %p134
      %p136 = scmp.ne.s32.totalorder %s124, %s125
      %p137 = scmp.eq.s32.totalorder %s26, 1
      %p138 = por %p136, %p137
      %p140 = scmp.ne.s32.totalorder %s125, %s139
      %p141 = scmp.eq.s32.totalorder %s26, 0
      %p142 = por %p140, %p141
      %s144 = sadd.s32 %s143, 1
      %p147 = scmp.eq.s32.totalorder %s20, 1
      %p148 = scmp.ne.s32.totalorder %s143, %s145
      %p149 = scmp.eq.s32.totalorder %s20, 0
      %p150 = por %p148, %p149
      %p151 = scmp.ne.s32.totalorder %s143, %s145
      %p152 = scmp.eq.s32.totalorder %s25, 1
      %p153 = por %p151, %p152
      %p154 = scmp.ne.s32.totalorder %s145, %s146
      %p155 = scmp.eq.s32.totalorder %s25, 0
      %p156 = por %p154, %p155
      %p157 = scmp.ne.s32.totalorder %s145, %s146
      %p158 = scmp.eq.s32.totalorder %s26, 1
      %p159 = por %p157, %p158
      %p161 = scmp.ne.s32.totalorder %s146, %s160
      %p162 = scmp.eq.s32.totalorder %s26, 0
      %p163 = por %p161, %p162
      %s165 = sadd.s32 %s164, 1
      %p168 = scmp.eq.s32.totalorder %s20, 1
      %p169 = scmp.ne.s32.totalorder %s164, %s166
      %p170 = scmp.eq.s32.totalorder %s20, 0
      %p171 = por %p169, %p170
      %p172 = scmp.ne.s32.totalorder %s164, %s166
      %p173 = scmp.eq.s32.totalorder %s25, 1
      %p174 = por %p172, %p173
      %p175 = scmp.ne.s32.totalorder %s166, %s167
      %p176 = scmp.eq.s32.totalorder %s25, 0
      %p177 = por %p175, %p176
      %p178 = scmp.ne.s32.totalorder %s166, %s167
      %p179 = scmp.eq.s32.totalorder %s26, 1
      %p180 = por %p178, %p179
      %p182 = scmp.ne.s32.totalorder %s167, %s181
      %p183 = scmp.eq.s32.totalorder %s26, 0
      %p184 = por %p182, %p183
      %s186 = sadd.s32 %s185, 1
      %p189 = scmp.eq.s32.totalorder %s20, 1
      %p190 = scmp.ne.s32.totalorder %s185, %s187
      %p191 = scmp.eq.s32.totalorder %s20, 0
      %p192 = por %p190, %p191
      %p193 = scmp.ne.s32.totalorder %s185, %s187
      %p194 = scmp.eq.s32.totalorder %s25, 1
      %p195 = por %p193, %p194
      %p196 = scmp.ne.s32.totalorder %s187, %s188
      %p197 = scmp.eq.s32.totalorder %s25, 0
      %p198 = por %p196, %p197
      %p199 = scmp.ne.s32.totalorder %s187, %s188
      %p200 = scmp.eq.s32.totalorder %s26, 1
      %p201 = por %p199, %p200
      %p203 = scmp.ne.s32.totalorder %s188, %s202
      %p204 = scmp.eq.s32.totalorder %s26, 0
      %p205 = por %p203, %p204
      %s206 = ssub.s32 %s20, %s27
      %p207 = scmp.eq.s32.totalorder %s206, 0
      %s209 = sadd.s32 %s208, 1
      %s210 = scalar_select %p207, %s208, %s209
      %p213 = pneg %p207
      %p214 = scmp.eq.s32.totalorder %s20, 1
      %p215 = por %p213, %p214
      %p216 = scmp.ne.s32.totalorder %s208, %s211
      %p217 = scmp.eq.s32.totalorder %s20, 0
      %p218 = por %p216, %p217
      %p219 = scmp.ne.s32.totalorder %s208, %s211
      %p220 = scmp.eq.s32.totalorder %s25, 1
      %p221 = por %p219, %p220
      %p222 = scmp.ne.s32.totalorder %s211, %s212
      %p223 = scmp.eq.s32.totalorder %s25, 0
      %p224 = por %p222, %p223
      %p225 = scmp.ne.s32.totalorder %s211, %s212
      %p226 = scmp.eq.s32.totalorder %s26, 1
      %p227 = por %p225, %p226
      %p229 = scmp.ne.s32.totalorder %s212, %s228
      %p230 = scmp.eq.s32.totalorder %s26, 0
      %p231 = por %p229, %p230
      %s233 = sadd.s32 %s232, 1
      %p236 = scmp.eq.s32.totalorder %s20, 1
      %p237 = scmp.ne.s32.totalorder %s232, %s234
      %p238 = scmp.eq.s32.totalorder %s20, 0
      %p239 = por %p237, %p238
      %p240 = scmp.ne.s32.totalorder %s232, %s234
      %p241 = scmp.eq.s32.totalorder %s25, 1
      %p242 = por %p240, %p241
      %p243 = scmp.ne.s32.totalorder %s234, %s235
      %p244 = scmp.eq.s32.totalorder %s25, 0
      %p245 = por %p243, %p244
      %p246 = scmp.ne.s32.totalorder %s234, %s235
      %p247 = scmp.eq.s32.totalorder %s26, 1
      %p248 = por %p246, %p247
      %p250 = scmp.ne.s32.totalorder %s235, %s249
      %p251 = scmp.eq.s32.totalorder %s26, 0
      %p252 = por %p250, %p251
      %s254 = sadd.s32 %s253, 1
      %p257 = scmp.eq.s32.totalorder %s20, 1
      %p258 = scmp.ne.s32.totalorder %s253, %s255
      %p259 = scmp.eq.s32.totalorder %s20, 0
      %p260 = por %p258, %p259
      %p261 = scmp.ne.s32.totalorder %s253, %s255
      %p262 = scmp.eq.s32.totalorder %s25, 1
      %p263 = por %p261, %p262
      %p264 = scmp.ne.s32.totalorder %s255, %s256
      %p265 = scmp.eq.s32.totalorder %s25, 0
      %p266 = por %p264, %p265
      %p267 = scmp.ne.s32.totalorder %s255, %s256
      %p268 = scmp.eq.s32.totalorder %s26, 1
      %p269 = por %p267, %p268
      %p271 = scmp.ne.s32.totalorder %s256, %s270
      %p272 = scmp.eq.s32.totalorder %s26, 0
      %p273 = por %p271, %p272
      %s274 = ssub.s32 %s20, %s27
      %p275 = scmp.eq.s32.totalorder %s274, 0
      %s277 = sadd.s32 %s276, 1
      %s278 = scalar_select %p275, %s276, %s277
      %p281 = pneg %p275
      %p282 = scmp.eq.s32.totalorder %s20, 1
      %p283 = por %p281, %p282
      %p284 = scmp.ne.s32.totalorder %s276, %s279
      %p285 = scmp.eq.s32.totalorder %s20, 0
      %p286 = por %p284, %p285
      %p287 = scmp.ne.s32.totalorder %s276, %s279
      %p288 = scmp.eq.s32.totalorder %s25, 1
      %p289 = por %p287, %p288
      %p290 = scmp.ne.s32.totalorder %s279, %s280
      %p291 = scmp.eq.s32.totalorder %s25, 0
      %p292 = por %p290, %p291
      %p293 = scmp.ne.s32.totalorder %s279, %s280
      %p294 = scmp.eq.s32.totalorder %s26, 1
      %p295 = por %p293, %p294
      %p297 = scmp.ne.s32.totalorder %s280, %s296
      %p298 = scmp.eq.s32.totalorder %s26, 0
      %p299 = por %p297, %p298
      %p300 = scmp.le.s32.totalorder 1, %s20
      %p301 = scmp.lt.s32.totalorder %s20, 3
      %p302 = pnand %p300, %p301
      %p303 = pneg %p302
      // Predicated region
      $region9: #{residual_block_forward.5} parent=5 // pred_check
        _
      $region10: #{residual_block_forward.5} parent=5 // pred_check_branch
        %305 = sbr.rel (%p302) target = $region12
      $region11: #{residual_block_forward.5} parent=5 // pred_region
        %s306 = ssub.s32 %s20, 1
        // Predicated region
        $region13: #{residual_block_forward.5} parent=11 // pred_check
          %p307 = pneg %p93
        $region14: #{residual_block_forward.5} parent=11 // pred_check_branch
          %309 = sbr.rel (%p307) target = $region16
        $region15: #{residual_block_forward.5} parent=11 // pred_region
          _
        $region16: #{residual_block_forward.5} parent=11 // pred_fallthru
          _
        // Predicated region
        $region17: #{residual_block_forward.5} parent=11 // pred_check
          %p310 = pneg %p114
        $region18: #{residual_block_forward.5} parent=11 // pred_check_branch
          %312 = sbr.rel (%p310) target = $region20
        $region19: #{residual_block_forward.5} parent=11 // pred_region
          _
        $region20: #{residual_block_forward.5} parent=11 // pred_fallthru
          _
        // Predicated region
        $region21: #{residual_block_forward.5} parent=11 // pred_check
          %p313 = pneg %p135
        $region22: #{residual_block_forward.5} parent=11 // pred_check_branch
          %315 = sbr.rel (%p313) target = $region24
        $region23: #{residual_block_forward.5} parent=11 // pred_region
          _
        $region24: #{residual_block_forward.5} parent=11 // pred_fallthru
          _
        // Predicated region
        $region25: #{residual_block_forward.5} parent=11 // pred_check
          %p316 = pneg %p156
        $region26: #{residual_block_forward.5} parent=11 // pred_check_branch
          %318 = sbr.rel (%p316) target = $region28
        $region27: #{residual_block_forward.5} parent=11 // pred_region
          _
        $region28: #{residual_block_forward.5} parent=11 // pred_fallthru
          _
        // Predicated region
        $region29: #{residual_block_forward.5} parent=11 // pred_check
          %p319 = pneg %p177
        $region30: #{residual_block_forward.5} parent=11 // pred_check_branch
          %321 = sbr.rel (%p319) target = $region32
        $region31: #{residual_block_forward.5} parent=11 // pred_region
          _
        $region32: #{residual_block_forward.5} parent=11 // pred_fallthru
          _
        // Predicated region
        $region33: #{residual_block_forward.5} parent=11 // pred_check
          %p322 = pneg %p198
        $region34: #{residual_block_forward.5} parent=11 // pred_check_branch
          %324 = sbr.rel (%p322) target = $region36
        $region35: #{residual_block_forward.5} parent=11 // pred_region
          _
        $region36: #{residual_block_forward.5} parent=11 // pred_fallthru
          _
        // Predicated region
        $region37: #{residual_block_forward.5} parent=11 // pred_check
          %p325 = pneg %p245
        $region38: #{residual_block_forward.5} parent=11 // pred_check_branch
          %327 = sbr.rel (%p325) target = $region40
        $region39: #{residual_block_forward.5} parent=11 // pred_region
          _
        $region40: #{residual_block_forward.5} parent=11 // pred_fallthru
          _
        // Predicated region
        $region41: #{residual_block_forward.5} parent=11 // pred_check
          %p328 = pneg %p266
        $region42: #{residual_block_forward.5} parent=11 // pred_check_branch
          %330 = sbr.rel (%p328) target = $region44
        $region43: #{residual_block_forward.5} parent=11 // pred_region
          _
        $region44: #{residual_block_forward.5} parent=11 // pred_fallthru
          _
      $region12: #{residual_block_forward.5} parent=5 // pred_fallthru
        _
      %p331 = scmp.lt.s32.totalorder %s20, 2
      // Predicated region
      $region45: #{residual_block_forward.5} parent=5 // pred_check
        %p332 = pneg %p331
      $region46: #{residual_block_forward.5} parent=5 // pred_check_branch
        %334 = sbr.rel (%p332) target = $region48
      $region47: #{residual_block_forward.5} parent=5 // pred_region
        // Predicated region
        $region49: #{residual_block_forward.5} parent=47 // pred_check
          %p335 = pneg %p40
        $region50: #{residual_block_forward.5} parent=47 // pred_check_branch
          %337 = sbr.rel (%p335) target = $region52
        $region51: #{residual_block_forward.5} parent=47 // pred_region
          %p338 = scmp.lt.s32.totalorder %s20, 1
          %s339 = scalar_select %p338, %s20, 1
          %s340 = smul.addr %s339, 8
          %s341 = smul.addr %s340, 4
          %s342 = scalar_lea.vmem %s0, %s341
        $region52: #{residual_block_forward.5} parent=47 // pred_fallthru
          _
        // Predicated region
        $region53: #{residual_block_forward.5} parent=47 // pred_check
          %p343 = pneg %p66
        $region54: #{residual_block_forward.5} parent=47 // pred_check_branch
          %345 = sbr.rel (%p343) target = $region56
        $region55: #{residual_block_forward.5} parent=47 // pred_region
          %p346 = scmp.lt.s32.totalorder %s20, 1
          %s347 = scalar_select %p346, %s20, 1
          %s348 = scalar_lea.vmem %s1, %s347
        $region56: #{residual_block_forward.5} parent=47 // pred_fallthru
          _
        // Predicated region
        $region57: #{residual_block_forward.5} parent=47 // pred_check
          %p349 = pneg %p218
        $region58: #{residual_block_forward.5} parent=47 // pred_check_branch
          %351 = sbr.rel (%p349) target = $region60
        $region59: #{residual_block_forward.5} parent=47 // pred_region
          %p352 = scmp.lt.s32.totalorder %s20, 1
          %s353 = scalar_select %p352, %s20, 1
          %s354 = smul.addr %s353, 8
          %s355 = smul.addr %s354, 4
          %s356 = scalar_lea.vmem %s8, %s355
        $region60: #{residual_block_forward.5} parent=47 // pred_fallthru
          _
      $region48: #{residual_block_forward.5} parent=5 // pred_fallthru
        _
      %p357 = scmp.le.s32.totalorder 1, %s20
      %p358 = scmp.lt.s32.totalorder %s20, 3
      %p359 = pnand %p357, %p358
      %p360 = pneg %p359
      // Predicated region
      $region61: #{residual_block_forward.5} parent=5 // pred_check
        _
      $region62: #{residual_block_forward.5} parent=5 // pred_check_branch
        %362 = sbr.rel (%p359) target = $region64
      $region63: #{residual_block_forward.5} parent=5 // pred_region
        %s363 = ssub.s32 %s20, 1
        %p364 = scmp.lt.s32.totalorder %s25, 1
        %s365 = scalar_select %p364, %s25, 1
        %s366 = smul.addr %s365, 8
        %s367 = smul.addr %s366, 4
        %s368 = scalar_lea.vmem %s0, %s367
        %p369 = pneg %p46
        %p370 = pneg %p43
        %p371 = scmp.lt.s32.totalorder %s25, 1
        %s372 = scalar_select %p371, %s25, 1
        %s373 = scalar_lea.vmem %s1, %s372
        %p374 = pneg %p72
        %p375 = pneg %p69
        %p376 = pneg %p93
        %p377 = pneg %p90
        %p378 = pneg %p114
        %p379 = pneg %p111
        %p380 = pneg %p135
        %p381 = pneg %p132
        %p382 = pneg %p156
        %p383 = pneg %p153
        %p384 = pneg %p177
        %p385 = pneg %p174
        %p386 = pneg %p198
        %p387 = pneg %p195
        %p388 = scmp.lt.s32.totalorder %s25, 1
        %s389 = scalar_select %p388, %s25, 1
        %s390 = smul.addr %s389, 8
        %s391 = smul.addr %s390, 4
        %s392 = scalar_lea.vmem %s8, %s391
        %p393 = pneg %p224
        %p394 = pneg %p221
        %p395 = pneg %p245
        %p396 = pneg %p242
        %p397 = pneg %p266
        %p398 = pneg %p263
        %p399 = pneg %p292
        %p400 = pneg %p289
        %s401 = sand.u32 %s279, 1
        %s402 = scalar_lea.sflag [#allocation3], %s401
        %s403 = sand.u32 %s279, 1
        %s404 = smul.addr %s403, 64
        %s405 = scalar_lea.vmem [#allocation2], %s404
        %p406 = scmp.lt.s32.totalorder %s25, 1
        %s407 = scalar_select %p406, %s25, 1
        %s408 = smul.addr %s407, 8
        %s409 = smul.addr %s408, 4
        %s410 = scalar_lea.vmem %s0, %s409
        %p411 = scmp.lt.s32.totalorder %s25, 1
        %s412 = scalar_select %p411, %s25, 1
        %s413 = scalar_lea.vmem %s1, %s412
        %p414 = scmp.lt.s32.totalorder %s25, 1
        %s415 = scalar_select %p414, %s25, 1
        %s416 = smul.addr %s415, 8
        %s417 = smul.addr %s416, 4
        %s418 = scalar_lea.vmem %s8, %s417
        %v419 = vld [vmem:[%s413] sm:$0x1]
        %v420 = vld [vmem:[%s2] sm:$0x1]
        %v421 = vmul.f32 %v420, 0.015625
        %v422 = vmul.f32 %v419, %v421
        %v423 = vld [vmem:[%s3] sm:$0x1]
        %v424 = vadd.f32 %v422, %v423
        %v426 = vperm.slane %v424, 0
        %v427 = vld [vmem:[%s4] sm:$0xff]
        %v428 = vld [vmem:[%s4 + $0x8] sm:$0xff]
        %v429 = vld [vmem:[%s4 + $0x10] sm:$0xff]
        %v430 = vld [vmem:[%s4 + $0x18] sm:$0xff]
        %v431 = vld [vmem:[%s5] sm:$0x1]
        %v433 = vperm.slane %v431, 0
        %vm435 = vcmask 261120
        %v436 = vsel %vm435, %v426, 0
        %438 = vmatpush.msra.mxu0 0.0
        %439 = vmatpush.msra.mxu0 0.0
        %440 = vmatpush.msra.mxu0 0.0
        %441 = vmatpush.msra.mxu0 0.0
        %442 = vmatpush.msra.mxu0 0.0
        %443 = vmatpush.msra.mxu0 0.0
        %444 = vmatpush.msra.mxu0 0.0
        %445 = vmatpush.msra.mxu0 0.0
        %446 = vmatpush.msra.mxu0 0.0
        %447 = vmatpush.msra.mxu0 0.0
        %448 = vmatpush.msra.mxu0 0.0
        %449 = vmatpush.msra.mxu0 0.0
        %450 = vmatpush.msra.mxu0 %v430
        %451 = vmatpush.msra.mxu0 %v429
        %452 = vmatpush.msra.mxu0 %v428
        %453 = vmatpush.msra.mxu0 %v427
        %454 = vmatmul.f32.gmra.mxu0 %v436
        %v455 = vpop.f32.mrf.mxu0
        %v456 = vadd.f32 %v433, %v455
        %457 = vdwg.mxu0
        %v458 = vmax.f32 %v456, 0.0
        %v459 = vld [vmem:[%s6] sm:$0xff]
        %v460 = vld [vmem:[%s7] sm:$0x1]
        %v462 = vperm.slane %v460, 0
        %vm464 = vcmask 64512
        %v466 = vsel %vm464, %v458, 0
        %468 = vmatpush.msra.mxu0 0.0
        %469 = vmatpush.msra.mxu0 0.0
        %470 = vmatpush.msra.mxu0 0.0
        %471 = vmatpush.msra.mxu0 0.0
        %472 = vmatpush.msra.mxu0 0.0
        %473 = vmatpush.msra.mxu0 0.0
        %474 = vmatpush.msra.mxu0 0.0
        %475 = vmatpush.msra.mxu0 0.0
        %476 = vmatpush.msra.mxu0 0.0
        %477 = vmatpush.msra.mxu0 0.0
        %478 = vmatpush.msra.mxu0 0.0
        %479 = vmatpush.msra.mxu0 0.0
        %480 = vmatpush.msra.mxu0 0.0
        %481 = vmatpush.msra.mxu0 0.0
        %482 = vmatpush.msra.mxu0 0.0
        %483 = vmatpush.msra.mxu0 %v459
        %484 = vmatmul.f32.gmra.mxu0 %v466
        %v485 = vpop.f32.mrf.mxu0
        %v486 = vadd.f32 %v462, %v485
        %487 = vdwg.mxu0
        %v488 = vxor.u32 %v486, 2147483648
        %v489 = vmul.f32 %v488, 1.442695
        %v490 = vpow.pop %v489
        %v491 = vadd.f32 %v490, 1.0
        %v492 = vrcp.pop %v491
        %v493 = vmul.f32 %v491, %v492
        %v494 = vsub.f32 1.0, %v493
        %v495 = vmul.f32 %v492, %v494
        %v496 = vadd.f32 %v492, %v495
        %vm497 = vweird.f32 %v491
        %vm498 = vweird.f32 %v492
        %vm499 = vmor %vm497, %vm498
        %v500 = vsel %vm499, %v492, %v496
        %v501 = vand.u32 2147483647, %v491
        %vm502 = vcmp.eq.f32.partialorder %v501, 8.507059e+37
        %v503 = vand.u32 %v491, 2147483648
        %v504 = vor.u32 1.1754944e-38, %v503
        %v505 = vsel %vm502, %v504, %v500
        %v506 = vmul.f32 1.0, %v505
        %v507 = vld [vmem:[%s410] sm:$0xf]
        %v508 = vld [vmem:[%s410 + $0x4] sm:$0xf]
        %v509 = vld [vmem:[%s410 + $0x8] sm:$0xf]
        %v510 = vld [vmem:[%s410 + $0xc] sm:$0xf]
        %v511 = vld [vmem:[%s410 + $0x10] sm:$0xf]
        %v512 = vld [vmem:[%s410 + $0x14] sm:$0xf]
        %v513 = vld [vmem:[%s410 + $0x18] sm:$0xf]
        %v514 = vld [vmem:[%s410 + $0x1c] sm:$0xf]
        %v515 = vunpack.c.l.bf16 %v507
        %v516 = vunpack.c.l.bf16 %v508
        %v517 = vunpack.c.l.bf16 %v509
        %v518 = vunpack.c.l.bf16 %v510
        %v519 = vunpack.c.l.bf16 %v511
        %v520 = vunpack.c.l.bf16 %v512
        %v521 = vunpack.c.l.bf16 %v513
        %v522 = vunpack.c.l.bf16 %v514
        %v524 = vperm.slane %v420, 0
        %v526 = vmul.f32 %v515, %v524
        %v527 = vmul.f32 %v516, %v524
        %v528 = vmul.f32 %v517, %v524
        %v529 = vmul.f32 %v518, %v524
        %v530 = vmul.f32 %v519, %v524
        %v531 = vmul.f32 %v520, %v524
        %v532 = vmul.f32 %v521, %v524
        %v533 = vmul.f32 %v522, %v524
        %v535 = vperm.slane %v423, 0
        %v537 = vadd.f32 %v526, %v535
        %v538 = vadd.f32 %v527, %v535
        %v539 = vadd.f32 %v528, %v535
        %v540 = vadd.f32 %v529, %v535
        %v541 = vadd.f32 %v530, %v535
        %v542 = vadd.f32 %v531, %v535
        %v543 = vadd.f32 %v532, %v535
        %v544 = vadd.f32 %v533, %v535
        %v545 = vperm.slane %v506, 0
        %v546 = vmul.f32 %v537, %v545
        %v547 = vmul.f32 %v538, %v545
        %v548 = vmul.f32 %v539, %v545
        %v549 = vmul.f32 %v540, %v545
        %v550 = vmul.f32 %v541, %v545
        %v551 = vmul.f32 %v542, %v545
        %v552 = vmul.f32 %v543, %v545
        %v553 = vmul.f32 %v544, %v545
        %v554 = vld [vmem:[%s418] sm:$0xf]
        %v555 = vld [vmem:[%s418 + $0x4] sm:$0xf]
        %v556 = vld [vmem:[%s418 + $0x8] sm:$0xf]
        %v557 = vld [vmem:[%s418 + $0xc] sm:$0xf]
        %v558 = vld [vmem:[%s418 + $0x10] sm:$0xf]
        %v559 = vld [vmem:[%s418 + $0x14] sm:$0xf]
        %v560 = vld [vmem:[%s418 + $0x18] sm:$0xf]
        %v561 = vld [vmem:[%s418 + $0x1c] sm:$0xf]
        %v562 = vunpack.c.l.bf16 %v554
        %v563 = vunpack.c.l.bf16 %v555
        %v564 = vunpack.c.l.bf16 %v556
        %v565 = vunpack.c.l.bf16 %v557
        %v566 = vunpack.c.l.bf16 %v558
        %v567 = vunpack.c.l.bf16 %v559
        %v568 = vunpack.c.l.bf16 %v560
        %v569 = vunpack.c.l.bf16 %v561
        %v570 = vld [vmem:[%s9] sm:$0x1]
        %v572 = vperm.slane %v570, 0
        %v574 = vmul.f32 %v562, %v572
        %v575 = vmul.f32 %v563, %v572
        %v576 = vmul.f32 %v564, %v572
        %v577 = vmul.f32 %v565, %v572
        %v578 = vmul.f32 %v566, %v572
        %v579 = vmul.f32 %v567, %v572
        %v580 = vmul.f32 %v568, %v572
        %v581 = vmul.f32 %v569, %v572
        %v582 = vld [vmem:[%s10] sm:$0x1]
        %v584 = vperm.slane %v582, 0
        %v586 = vadd.f32 %v574, %v584
        %v587 = vadd.f32 %v575, %v584
        %v588 = vadd.f32 %v576, %v584
        %v589 = vadd.f32 %v577, %v584
        %v590 = vadd.f32 %v578, %v584
        %v591 = vadd.f32 %v579, %v584
        %v592 = vadd.f32 %v580, %v584
        %v593 = vadd.f32 %v581, %v584
        %v594 = vadd.f32 %v546, %v586
        %v595 = vadd.f32 %v547, %v587
        %v596 = vadd.f32 %v548, %v588
        %v597 = vadd.f32 %v549, %v589
        %v598 = vadd.f32 %v550, %v590
        %v599 = vadd.f32 %v551, %v591
        %v600 = vadd.f32 %v552, %v592
        %v601 = vadd.f32 %v553, %v593
        %v602 = vmax.f32 %v594, 0.0
        %v603 = vmax.f32 %v595, 0.0
        %v604 = vmax.f32 %v596, 0.0
        %v605 = vmax.f32 %v597, 0.0
        %v606 = vmax.f32 %v598, 0.0
        %v607 = vmax.f32 %v599, 0.0
        %v608 = vmax.f32 %v600, 0.0
        %v609 = vmax.f32 %v601, 0.0
        %610 = vst.msk [vmem:[%s405] sm:$0xff] %vm435, %v602
        %611 = vst.msk [vmem:[%s405 + $0x8] sm:$0xff] %vm435, %v603
        %612 = vst.msk [vmem:[%s405 + $0x10] sm:$0xff] %vm435, %v604
        %613 = vst.msk [vmem:[%s405 + $0x18] sm:$0xff] %vm435, %v605
        %614 = vst.msk [vmem:[%s405 + $0x20] sm:$0xff] %vm435, %v606
        %615 = vst.msk [vmem:[%s405 + $0x28] sm:$0xff] %vm435, %v607
        %616 = vst.msk [vmem:[%s405 + $0x30] sm:$0xff] %vm435, %v608
        %617 = vst.msk [vmem:[%s405 + $0x38] sm:$0xff] %vm435, %v609
        %s618 = sand.u32 %s279, 1
        %s619 = scalar_lea.sflag [#allocation3], %s618
        %s620 = sand.u32 %s279, 1
        %s621 = smul.addr %s620, 64
        %s622 = scalar_lea.vmem [#allocation2], %s621
        // Predicated region
        $region65: #{residual_block_forward.5} parent=63 // pred_check
          %p623 = pneg %p289
        $region66: #{residual_block_forward.5} parent=63 // pred_check_branch
          %625 = sbr.rel (%p623) target = $region68
        $region67: #{residual_block_forward.5} parent=63 // pred_region
          %627 = vsyncadd %s619, 0
          %s628 = smul.addr %s25, 8
          %s629 = smul.addr %s628, 8
          %s630 = scalar_lea.hbm %s11, %s629
          %s631 = sshll.u32 %s622, 4
          %s632 = int_to_ptr.vmem [resolvable:$true] %s631
          %s633 = sshll.u32 %s630, 4
          %s634 = int_to_ptr.hbm [resolvable:$true] %s633
          %639 = dma.vmem_to_hbm [thread:$0]  %s632, 1024, %s634, %s619, 128, 128, 8
        $region68: #{residual_block_forward.5} parent=63 // pred_fallthru
          _
      $region64: #{residual_block_forward.5} parent=5 // pred_fallthru
        _
      %p640 = scmp.le.s32.totalorder 2, %s20
      // Predicated region
      $region69: #{residual_block_forward.5} parent=5 // pred_check
        %p641 = pneg %p640
      $region70: #{residual_block_forward.5} parent=5 // pred_check_branch
        %643 = sbr.rel (%p641) target = $region72
      $region71: #{residual_block_forward.5} parent=5 // pred_region
        %s644 = ssub.s32 %s20, 2
        // Predicated region
        $region73: #{residual_block_forward.5} parent=71 // pred_check
          %p645 = pneg %p295
        $region74: #{residual_block_forward.5} parent=71 // pred_check_branch
          %647 = sbr.rel (%p645) target = $region76
        $region75: #{residual_block_forward.5} parent=71 // pred_region
          %s648 = sand.u32 %s280, 1
          %s649 = scalar_lea.sflag [#allocation3], %s648
          %s650 = sand.u32 %s280, 1
          %s651 = smul.addr %s650, 64
          %s652 = scalar_lea.vmem [#allocation2], %s651
          %654 = dma.done %s649, 1024
        $region76: #{residual_block_forward.5} parent=71 // pred_fallthru
          _
      $region72: #{residual_block_forward.5} parent=5 // pred_fallthru
        _
    $region6: #{residual_block_forward.5} parent=1 // loop_footer
      %s24 = sadd.s32 1, %s20
    $region7: #{residual_block_forward.5} parent=1 // loop_footer_branch
      %19 = sbr.rel target = $region3
    $region8: #{residual_block_forward.5} parent=1 // loop_exit
      _
    %655 = vsyncpa [#allocation3], 1
    %s656 = scalar_lea.sflag [#allocation3], 1
    %657 = vsyncpa %s656, 1

// kernel: residual_block_forward.4
$region0: #{residual_block_forward.4}
  #allocation0 [shape = 'u32[]', space=smem, size = 0x4, offset = 0x4, fixed_abs, tag = 'smem constant byte address 0x4 - core index']
  #allocation1 [shape = 'u32[72,128]{1,0:T(1,128)}', space=vmem, size = 0x9000, scoped, tag = 'internal scratch']
  #allocation2 [shape = 'bf16[10,10,32]{2,1,0:T(8,128)(2,1)}', space=vmem, size = 0xa000, scoped, tag = 'scratch operand']
  %s0 = inlined_call_operand.vmem [shape: bf16[2,8,8,32], index: 0, kind: input, shape index: {}]
  %s1 = inlined_call_operand.vmem [shape: f32[1,32], index: 1, kind: input, shape index: {}]
  %s2 = inlined_call_operand.vmem [shape: f32[1,32], index: 2, kind: input, shape index: {}]
  %s3 = inlined_call_operand.vmem [shape: bf16[288,32], index: 3, kind: input, shape index: {}]
  %s4 = inlined_call_operand.vmem [shape: f32[1,32], index: 4, kind: input, shape index: {}]
  %s5 = inlined_call_operand.vmem [shape: bf16[2,64,32], index: 5, kind: output, shape index: {0}]
  %s6 = inlined_call_operand.vmem [shape: f32[2,2,32], index: 6, kind: output, shape index: {1}]
  %7 = xla_tuple %s5, %s6
  %s8 = sld [smem:[#allocation0]]
  $region61: #{residual_block_forward.4} parent=0
    _
  %s10 = ssub.s32 1, %s8
  %s11 = scalar_select 0, %s10, %s8
  loop: start=0, step=1, limit=4
  $region2: #{residual_block_forward.4} parent=0 // loop_pre_header
    _
  $region3: #{residual_block_forward.4} parent=0 // loop_header
    %s13 = sphi 0, %s17
    %p14 = scmp.ge.s32.totalorder %s13, 4
    %s23 = sphi 0, %s25
    %s26 = sphi 0, %s23
    %s27 = sphi 0, %s26
    %s43 = sphi 0, %s27
    %s47 = sphi 0, %s47
    %s49 = sphi 0, %s47
    %s50 = sphi 0, %s49
    %s64 = sphi 0, %s50
    %s68 = sphi 0, %s68
    %s70 = sphi 0, %s68
    %s71 = sphi 0, %s70
    %s85 = sphi 0, %s71
    %s89 = sphi 0, %s89
    %s91 = sphi 0, %s89
    %s92 = sphi 0, %s91
    %s106 = sphi 0, %s92
    %s110 = sphi 0, %s110
    %s112 = sphi 0, %s110
    %s113 = sphi 0, %s112
    %s127 = sphi 0, %s113
    %s133 = sphi 0, %s135
    %s136 = sphi 0, %s133
    %s137 = sphi 0, %s136
    %s153 = sphi 0, %s137
    %s159 = sphi 0, %s161
    %s162 = sphi 0, %s159
    %s163 = sphi 0, %s162
    %s179 = sphi 0, %s163
  $region4: #{residual_block_forward.4} parent=0 // loop_header_branch
    %16 = sbr.rel (%p14) target = $region8
  $region5: #{residual_block_forward.4} parent=0 // loop_body
    %s18 = ssub.s32 %s13, 1
    %s19 = ssub.s32 %s13, 2
    %s20 = sadd.s32 %s13, 1
    %s21 = ssub.s32 %s13, %s20
    %p22 = scmp.eq.s32.totalorder %s21, 0
    %s24 = sadd.s32 %s23, 1
    %s25 = scalar_select %p22, %s23, %s24
    %p28 = pneg %p22
    %p29 = scmp.eq.s32.totalorder %s13, 1
    %p30 = por %p28, %p29
    %p31 = scmp.ne.s32.totalorder %s23, %s26
    %p32 = scmp.eq.s32.totalorder %s13, 0
    %p33 = por %p31, %p32
    %p34 = scmp.ne.s32.totalorder %s23, %s26
    %p35 = scmp.eq.s32.totalorder %s18, 1
    %p36 = por %p34, %p35
    %p37 = scmp.ne.s32.totalorder %s26, %s27
    %p38 = scmp.eq.s32.totalorder %s18, 0
    %p39 = por %p37, %p38
    %p40 = scmp.ne.s32.totalorder %s26, %s27
    %p41 = scmp.eq.s32.totalorder %s19, 1
    %p42 = por %p40, %p41
    %p44 = scmp.ne.s32.totalorder %s27, %s43
    %p45 = scmp.eq.s32.totalorder %s19, 0
    %p46 = por %p44, %p45
    %s48 = sadd.s32 %s47, 1
    %p51 = scmp.eq.s32.totalorder %s13, 1
    %p52 = scmp.ne.s32.totalorder %s47, %s49
    %p53 = scmp.eq.s32.totalorder %s13, 0
    %p54 = por %p52, %p53
    %p55 = scmp.ne.s32.totalorder %s47, %s49
    %p56 = scmp.eq.s32.totalorder %s18, 1
    %p57 = por %p55, %p56
    %p58 = scmp.ne.s32.totalorder %s49, %s50
    %p59 = scmp.eq.s32.totalorder %s18, 0
    %p60 = por %p58, %p59
    %p61 = scmp.ne.s32.totalorder %s49, %s50
    %p62 = scmp.eq.s32.totalorder %s19, 1
    %p63 = por %p61, %p62
    %p65 = scmp.ne.s32.totalorder %s50, %s64
    %p66 = scmp.eq.s32.totalorder %s19, 0
    %p67 = por %p65, %p66
    %s69 = sadd.s32 %s68, 1
    %p72 = scmp.eq.s32.totalorder %s13, 1
    %p73 = scmp.ne.s32.totalorder %s68, %s70
    %p74 = scmp.eq.s32.totalorder %s13, 0
    %p75 = por %p73, %p74
    %p76 = scmp.ne.s32.totalorder %s68, %s70
    %p77 = scmp.eq.s32.totalorder %s18, 1
    %p78 = por %p76, %p77
    %p79 = scmp.ne.s32.totalorder %s70, %s71
    %p80 = scmp.eq.s32.totalorder %s18, 0
    %p81 = por %p79, %p80
    %p82 = scmp.ne.s32.totalorder %s70, %s71
    %p83 = scmp.eq.s32.totalorder %s19, 1
    %p84 = por %p82, %p83
    %p86 = scmp.ne.s32.totalorder %s71, %s85
    %p87 = scmp.eq.s32.totalorder %s19, 0
    %p88 = por %p86, %p87
    %s90 = sadd.s32 %s89, 1
    %p93 = scmp.eq.s32.totalorder %s13, 1
    %p94 = scmp.ne.s32.totalorder %s89, %s91
    %p95 = scmp.eq.s32.totalorder %s13, 0
    %p96 = por %p94, %p95
    %p97 = scmp.ne.s32.totalorder %s89, %s91
    %p98 = scmp.eq.s32.totalorder %s18, 1
    %p99 = por %p97, %p98
    %p100 = scmp.ne.s32.totalorder %s91, %s92
    %p101 = scmp.eq.s32.totalorder %s18, 0
    %p102 = por %p100, %p101
    %p103 = scmp.ne.s32.totalorder %s91, %s92
    %p104 = scmp.eq.s32.totalorder %s19, 1
    %p105 = por %p103, %p104
    %p107 = scmp.ne.s32.totalorder %s92, %s106
    %p108 = scmp.eq.s32.totalorder %s19, 0
    %p109 = por %p107, %p108
    %s111 = sadd.s32 %s110, 1
    %p114 = scmp.eq.s32.totalorder %s13, 1
    %p115 = scmp.ne.s32.totalorder %s110, %s112
    %p116 = scmp.eq.s32.totalorder %s13, 0
    %p117 = por %p115, %p116
    %p118 = scmp.ne.s32.totalorder %s110, %s112
    %p119 = scmp.eq.s32.totalorder %s18, 1
    %p120 = por %p118, %p119
    %p121 = scmp.ne.s32.totalorder %s112, %s113
    %p122 = scmp.eq.s32.totalorder %s18, 0
    %p123 = por %p121, %p122
    %p124 = scmp.ne.s32.totalorder %s112, %s113
    %p125 = scmp.eq.s32.totalorder %s19, 1
    %p126 = por %p124, %p125
    %p128 = scmp.ne.s32.totalorder %s113, %s127
    %p129 = scmp.eq.s32.totalorder %s19, 0
    %p130 = por %p128, %p129
    %s131 = ssub.s32 %s13, %s20
    %p132 = scmp.eq.s32.totalorder %s131, 0
    %s134 = sadd.s32 %s133, 1
    %s135 = scalar_select %p132, %s133, %s134
    %p138 = pneg %p132
    %p139 = scmp.eq.s32.totalorder %s13, 1
    %p140 = por %p138, %p139
    %p141 = scmp.ne.s32.totalorder %s133, %s136
    %p142 = scmp.eq.s32.totalorder %s13, 0
    %p143 = por %p141, %p142
    %p144 = scmp.ne.s32.totalorder %s133, %s136
    %p145 = scmp.eq.s32.totalorder %s18, 1
    %p146 = por %p144, %p145
    %p147 = scmp.ne.s32.totalorder %s136, %s137
    %p148 = scmp.eq.s32.totalorder %s18, 0
    %p149 = por %p147, %p148
    %p150 = scmp.ne.s32.totalorder %s136, %s137
    %p151 = scmp.eq.s32.totalorder %s19, 1
    %p152 = por %p150, %p151
    %p154 = scmp.ne.s32.totalorder %s137, %s153
    %p155 = scmp.eq.s32.totalorder %s19, 0
    %p156 = por %p154, %p155
    %s157 = ssub.s32 %s13, %s20
    %p158 = scmp.eq.s32.totalorder %s157, 0
    %s160 = sadd.s32 %s159, 1
    %s161 = scalar_select %p158, %s159, %s160
    %p164 = pneg %p158
    %p165 = scmp.eq.s32.totalorder %s13, 1
    %p166 = por %p164, %p165
    %p167 = scmp.ne.s32.totalorder %s159, %s162
    %p168 = scmp.eq.s32.totalorder %s13, 0
    %p169 = por %p167, %p168
    %p170 = scmp.ne.s32.totalorder %s159, %s162
    %p171 = scmp.eq.s32.totalorder %s18, 1
    %p172 = por %p170, %p171
    %p173 = scmp.ne.s32.totalorder %s162, %s163
    %p174 = scmp.eq.s32.totalorder %s18, 0
    %p175 = por %p173, %p174
    %p176 = scmp.ne.s32.totalorder %s162, %s163
    %p177 = scmp.eq.s32.totalorder %s19, 1
    %p178 = por %p176, %p177
    %p180 = scmp.ne.s32.totalorder %s163, %s179
    %p181 = scmp.eq.s32.totalorder %s19, 0
    %p182 = por %p180, %p181
    %p183 = scmp.le.s32.totalorder 1, %s13
    %p184 = scmp.lt.s32.totalorder %s13, 3
    %p185 = pnand %p183, %p184
    %p186 = pneg %p185
    // Predicated region
    $region9: #{residual_block_forward.4} parent=5 // pred_check
      _
    $region10: #{residual_block_forward.4} parent=5 // pred_check_branch
      %188 = sbr.rel (%p185) target = $region12
    $region11: #{residual_block_forward.4} parent=5 // pred_region
      %s189 = ssub.s32 %s13, 1
      // Predicated region
      $region13: #{residual_block_forward.4} parent=11 // pred_check
        %p190 = pneg %p60
      $region14: #{residual_block_forward.4} parent=11 // pred_check_branch
        %192 = sbr.rel (%p190) target = $region16
      $region15: #{residual_block_forward.4} parent=11 // pred_region
        _
      $region16: #{residual_block_forward.4} parent=11 // pred_fallthru
        _
      // Predicated region
      $region17: #{residual_block_forward.4} parent=11 // pred_check
        %p193 = pneg %p81
      $region18: #{residual_block_forward.4} parent=11 // pred_check_branch
        %195 = sbr.rel (%p193) target = $region20
      $region19: #{residual_block_forward.4} parent=11 // pred_region
        _
      $region20: #{residual_block_forward.4} parent=11 // pred_fallthru
        _
      // Predicated region
      $region21: #{residual_block_forward.4} parent=11 // pred_check
        %p196 = pneg %p102
      $region22: #{residual_block_forward.4} parent=11 // pred_check_branch
        %198 = sbr.rel (%p196) target = $region24
      $region23: #{residual_block_forward.4} parent=11 // pred_region
        _
      $region24: #{residual_block_forward.4} parent=11 // pred_fallthru
        _
      // Predicated region
      $region25: #{residual_block_forward.4} parent=11 // pred_check
        %p199 = pneg %p123
      $region26: #{residual_block_forward.4} parent=11 // pred_check_branch
        %201 = sbr.rel (%p199) target = $region28
      $region27: #{residual_block_forward.4} parent=11 // pred_region
        _
      $region28: #{residual_block_forward.4} parent=11 // pred_fallthru
        _
    $region12: #{residual_block_forward.4} parent=5 // pred_fallthru
      _
    %p202 = scmp.lt.s32.totalorder %s13, 2
    // Predicated region
    $region29: #{residual_block_forward.4} parent=5 // pred_check
      %p203 = pneg %p202
    $region30: #{residual_block_forward.4} parent=5 // pred_check_branch
      %205 = sbr.rel (%p203) target = $region32
    $region31: #{residual_block_forward.4} parent=5 // pred_region
      // Predicated region
      $region33: #{residual_block_forward.4} parent=31 // pred_check
        %p206 = pneg %p33
      $region34: #{residual_block_forward.4} parent=31 // pred_check_branch
        %208 = sbr.rel (%p206) target = $region36
      $region35: #{residual_block_forward.4} parent=31 // pred_region
        %p209 = scmp.lt.s32.totalorder %s13, 1
        %s210 = scalar_select %p209, %s13, 1
        %s211 = smul.addr %s210, 8
        %s212 = smul.addr %s211, 4
        %s213 = scalar_lea.vmem %s0, %s212
      $region36: #{residual_block_forward.4} parent=31 // pred_fallthru
        _
    $region32: #{residual_block_forward.4} parent=5 // pred_fallthru
      _
    %p214 = scmp.le.s32.totalorder 1, %s13
    %p215 = scmp.lt.s32.totalorder %s13, 3
    %p216 = pnand %p214, %p215
    %p217 = pneg %p216
    // Predicated region
    $region37: #{residual_block_forward.4} parent=5 // pred_check
      _
    $region38: #{residual_block_forward.4} parent=5 // pred_check_branch
      %219 = sbr.rel (%p216) target = $region40
    $region39: #{residual_block_forward.4} parent=5 // pred_region
      %s220 = ssub.s32 %s13, 1
      %p221 = scmp.lt.s32.totalorder %s18, 1
      %s222 = scalar_select %p221, %s18, 1
      %s223 = smul.addr %s222, 8
      %s224 = smul.addr %s223, 4
      %s225 = scalar_lea.vmem %s0, %s224
      %p226 = pneg %p39
      %p227 = pneg %p36
      %p228 = pneg %p60
      %p229 = pneg %p57
      %p230 = pneg %p81
      %p231 = pneg %p78
      %p232 = pneg %p102
      %p233 = pneg %p99
      %p234 = pneg %p123
      %p235 = pneg %p120
      %p236 = pneg %p149
      %p237 = pneg %p146
      %p238 = scmp.lt.s32.totalorder %s18, 1
      %s239 = scalar_select %p238, %s18, 1
      %s240 = smul.addr %s239, 8
      %s241 = smul.addr %s240, 4
      %s242 = scalar_lea.vmem %s5, %s241
      %p243 = pneg %p175
      %p244 = pneg %p172
      %p245 = scmp.lt.s32.totalorder %s18, 1
      %s246 = scalar_select %p245, %s18, 1
      %s247 = smul.addr %s246, 2
      %s248 = scalar_lea.vmem %s6, %s247
      %p249 = scmp.lt.s32.totalorder %s18, 1
      %s250 = scalar_select %p249, %s18, 1
      %s251 = smul.addr %s250, 8
      %s252 = smul.addr %s251, 4
      %s253 = scalar_lea.vmem %s0, %s252
      %p254 = scmp.lt.s32.totalorder %s18, 1
      %s255 = scalar_select %p254, %s18, 1
      %s256 = smul.addr %s255, 8
      %s257 = smul.addr %s256, 4
      %s258 = scalar_lea.vmem %s5, %s257
      %p259 = scmp.lt.s32.totalorder %s18, 1
      %s260 = scalar_select %p259, %s18, 1
      %s261 = smul.addr %s260, 2
      %s262 = scalar_lea.vmem %s6, %s261
      %v264 = vld [vmem:[%s253] sm:$0xf]
      %v265 = vld [vmem:[%s253 + $0x4] sm:$0xf]
      %v266 = vld [vmem:[%s253 + $0x8] sm:$0xf]
      %v267 = vld [vmem:[%s253 + $0xc] sm:$0xf]
      %v268 = vld [vmem:[%s253 + $0x10] sm:$0xf]
      %v269 = vld [vmem:[%s253 + $0x14] sm:$0xf]
      %v270 = vld [vmem:[%s253 + $0x18] sm:$0xf]
      %v271 = vld [vmem:[%s253 + $0x1c] sm:$0xf]
      %v272 = vunpack.c.l.bf16 %v264
      %v273 = vunpack.c.l.bf16 %v265
      %v274 = vunpack.c.l.bf16 %v266
      %v275 = vunpack.c.l.bf16 %v267
      %v276 = vunpack.c.l.bf16 %v268
      %v277 = vunpack.c.l.bf16 %v269
      %v278 = vunpack.c.l.bf16 %v270
      %v279 = vunpack.c.l.bf16 %v271
      %v280 = vld [vmem:[%s1] sm:$0x1]
      %v282 = vperm.slane %v280, 0
      %v284 = vmul.f32 %v272, %v282
      %v285 = vmul.f32 %v273, %v282
      %v286 = vmul.f32 %v274, %v282
      %v287 = vmul.f32 %v275, %v282
      %v288 = vmul.f32 %v276, %v282
      %v289 = vmul.f32 %v277, %v282
      %v290 = vmul.f32 %v278, %v282
      %v291 = vmul.f32 %v279, %v282
      %v292 = vld [vmem:[%s2] sm:$0x1]
      %v294 = vperm.slane %v292, 0
      %v296 = vadd.f32 %v284, %v294
      %v297 = vadd.f32 %v285, %v294
      %v298 = vadd.f32 %v286, %v294
      %v299 = vadd.f32 %v287, %v294
      %v300 = vadd.f32 %v288, %v294
      %v301 = vadd.f32 %v289, %v294
      %v302 = vadd.f32 %v290, %v294
      %v303 = vadd.f32 %v291, %v294
      %v304 = vmax.f32 %v296, 0.0
      %v305 = vmax.f32 %v297, 0.0
      %v306 = vmax.f32 %v298, 0.0
      %v307 = vmax.f32 %v299, 0.0
      %v308 = vmax.f32 %v300, 0.0
      %v309 = vmax.f32 %v301, 0.0
      %v310 = vmax.f32 %v302, 0.0
      %v311 = vmax.f32 %v303, 0.0
      %v312 = vpack.c.bf16 %v304, %v304
      %v313 = vpack.c.bf16 %v305, %v305
      %v314 = vpack.c.bf16 %v306, %v306
      %v315 = vpack.c.bf16 %v307, %v307
      %v316 = vpack.c.bf16 %v308, %v308
      %v317 = vpack.c.bf16 %v309, %v309
      %v318 = vpack.c.bf16 %v310, %v310
      %v319 = vpack.c.bf16 %v311, %v311
      %v321 = vshrl.u32 %v312, 16
      %v323 = vrot.slane %v321, 7
      %v324 = vshll.u32 %v312, 16
      %v326 = vor.u32 %v323, %v324
      %v327 = vrot.slane %v323, 4
      %v329 = vshrl.u32 %v313, 16
      %v331 = vrot.slane %v329, 7
      %v332 = vshll.u32 %v313, 16
      %v334 = vor.u32 %v331, %v332
      %v335 = vrot.slane %v331, 4
      %v337 = vshrl.u32 %v314, 16
      %v339 = vrot.slane %v337, 7
      %v340 = vshll.u32 %v314, 16
      %v342 = vor.u32 %v339, %v340
      %v343 = vrot.slane %v339, 4
      %v345 = vshrl.u32 %v315, 16
      %v347 = vrot.slane %v345, 7
      %v348 = vshll.u32 %v315, 16
      %v350 = vor.u32 %v347, %v348
      %v351 = vrot.slane %v347, 4
      %v353 = vshrl.u32 %v316, 16
      %v355 = vrot.slane %v353, 7
      %v356 = vshll.u32 %v316, 16
      %v358 = vor.u32 %v355, %v356
      %v359 = vrot.slane %v355, 4
      %v361 = vshrl.u32 %v317, 16
      %v363 = vrot.slane %v361, 7
      %v364 = vshll.u32 %v317, 16
      %v366 = vor.u32 %v363, %v364
      %v367 = vrot.slane %v363, 4
      %v369 = vshrl.u32 %v318, 16
      %v371 = vrot.slane %v369, 7
      %v372 = vshll.u32 %v318, 16
      %v374 = vor.u32 %v371, %v372
      %v375 = vrot.slane %v371, 4
      %v377 = vshrl.u32 %v319, 16
      %v379 = vrot.slane %v377, 7
      %v380 = vshll.u32 %v319, 16
      %v382 = vor.u32 %v379, %v380
      %v383 = vrot.slane %v379, 4
      %s400 = scalar_lea.vmem [#allocation2], 8
      %vm401 = vcmask 257024
      %vm402 = vsmask.f32 7938
      %vm403 = vmand %vm401, %vm402
      %v404 = vld [vmem:[%s400] sm:$0xf]
      %v405 = vsel %vm403, %v326, %v404
      %406 = vst [vmem:[%s400] sm:$0xf] %v405
      %vm407 = vcmask 253952
      %vm408 = vsmask.f32 256
      %vm409 = vmand %vm407, %vm408
      %v410 = vld [vmem:[%s400 + $0x4] sm:$0x1]
      %v411 = vsel %vm409, %v327, %v410
      %412 = vst [vmem:[%s400 + $0x4] sm:$0x1] %v411
      %v413 = vld [vmem:[%s400 + $0x8] sm:$0xf]
      %v414 = vsel %vm403, %v334, %v413
      %415 = vst [vmem:[%s400 + $0x8] sm:$0xf] %v414
      %v416 = vld [vmem:[%s400 + $0xc] sm:$0x1]
      %v417 = vsel %vm409, %v335, %v416
      %418 = vst [vmem:[%s400 + $0xc] sm:$0x1] %v417
      %v419 = vld [vmem:[%s400 + $0x10] sm:$0xf]
      %v420 = vsel %vm403, %v342, %v419
      %421 = vst [vmem:[%s400 + $0x10] sm:$0xf] %v420
      %v422 = vld [vmem:[%s400 + $0x14] sm:$0x1]
      %v423 = vsel %vm409, %v343, %v422
      %424 = vst [vmem:[%s400 + $0x14] sm:$0x1] %v423
      %v425 = vld [vmem:[%s400 + $0x18] sm:$0xf]
      %v426 = vsel %vm403, %v350, %v425
      %427 = vst [vmem:[%s400 + $0x18] sm:$0xf] %v426
      %v428 = vld [vmem:[%s400 + $0x1c] sm:$0x1]
      %v429 = vsel %vm409, %v351, %v428
      %430 = vst [vmem:[%s400 + $0x1c] sm:$0x1] %v429
      %v431 = vld [vmem:[%s400 + $0x20] sm:$0xf]
      %v432 = vsel %vm403, %v358, %v431
      %433 = vst [vmem:[%s400 + $0x20] sm:$0xf] %v432
      %v434 = vld [vmem:[%s400 + $0x24] sm:$0x1]
      %v435 = vsel %vm409, %v359, %v434
      %436 = vst [vmem:[%s400 + $0x24] sm:$0x1] %v435
      %v437 = vld [vmem:[%s400 + $0x28] sm:$0xf]
      %v438 = vsel %vm403, %v366, %v437
      %439 = vst [vmem:[%s400 + $0x28] sm:$0xf] %v438
      %v440 = vld [vmem:[%s400 + $0x2c] sm:$0x1]
      %v441 = vsel %vm409, %v367, %v440
      %442 = vst [vmem:[%s400 + $0x2c] sm:$0x1] %v441
      %v443 = vld [vmem:[%s400 + $0x30] sm:$0xf]
      %v444 = vsel %vm403, %v374, %v443
      %445 = vst [vmem:[%s400 + $0x30] sm:$0xf] %v444
      %v446 = vld [vmem:[%s400 + $0x34] sm:$0x1]
      %v447 = vsel %vm409, %v375, %v446
      %448 = vst [vmem:[%s400 + $0x34] sm:$0x1] %v447
      %v449 = vld [vmem:[%s400 + $0x38] sm:$0xf]
      %v450 = vsel %vm403, %v382, %v449
      %451 = vst [vmem:[%s400 + $0x38] sm:$0xf] %v450
      %v452 = vld [vmem:[%s400 + $0x3c] sm:$0x1]
      %v453 = vsel %vm409, %v383, %v452
      %454 = vst [vmem:[%s400 + $0x3c] sm:$0x1] %v453
      %vm455 = vcmask 257024
      %456 = vst.msk [vmem:[#allocation2] sm:$0xf] %vm455, 0
      %vm457 = vcmask 253952
      %458 = vst.msk [vmem:[#allocation2 + $0x4] sm:$0x1] %vm457, 0
      %s459 = scalar_lea.vmem [#allocation2], 72
      %460 = vst.msk [vmem:[%s459] sm:$0xf] %vm455, 0
      %461 = vst.msk [vmem:[%s459 + $0x4] sm:$0x1] %vm457, 0
      %v462 = vld [vmem:[%s400] sm:$0x1]
      %v463 = vsel %vm409, 0, %v462
      %464 = vst [vmem:[%s400] sm:$0x1] %v463
      %v465 = vld [vmem:[%s400 + $0x8] sm:$0x1]
      %v466 = vsel %vm409, 0, %v465
      %467 = vst [vmem:[%s400 + $0x8] sm:$0x1] %v466
      %v468 = vld [vmem:[%s400 + $0x10] sm:$0x1]
      %v469 = vsel %vm409, 0, %v468
      %470 = vst [vmem:[%s400 + $0x10] sm:$0x1] %v469
      %v471 = vld [vmem:[%s400 + $0x18] sm:$0x1]
      %v472 = vsel %vm409, 0, %v471
      %473 = vst [vmem:[%s400 + $0x18] sm:$0x1] %v472
      %v474 = vld [vmem:[%s400 + $0x20] sm:$0x1]
      %v475 = vsel %vm409, 0, %v474
      %476 = vst [vmem:[%s400 + $0x20] sm:$0x1] %v475
      %v477 = vld [vmem:[%s400 + $0x28] sm:$0x1]
      %v478 = vsel %vm409, 0, %v477
      %479 = vst [vmem:[%s400 + $0x28] sm:$0x1] %v478
      %v480 = vld [vmem:[%s400 + $0x30] sm:$0x1]
      %v481 = vsel %vm409, 0, %v480
      %482 = vst [vmem:[%s400 + $0x30] sm:$0x1] %v481
      %v483 = vld [vmem:[%s400 + $0x38] sm:$0x1]
      %v484 = vsel %vm409, 0, %v483
      %485 = vst [vmem:[%s400 + $0x38] sm:$0x1] %v484
      %vm486 = vmand %vm407, %vm402
      %v487 = vld [vmem:[%s400 + $0x4] sm:$0x1]
      %v488 = vsel %vm486, 0, %v487
      %489 = vst [vmem:[%s400 + $0x4] sm:$0x1] %v488
      %v490 = vld [vmem:[%s400 + $0xc] sm:$0x1]
      %v491 = vsel %vm486, 0, %v490
      %492 = vst [vmem:[%s400 + $0xc] sm:$0x1] %v491
      %v493 = vld [vmem:[%s400 + $0x14] sm:$0x1]
      %v494 = vsel %vm486, 0, %v493
      %495 = vst [vmem:[%s400 + $0x14] sm:$0x1] %v494
      %v496 = vld [vmem:[%s400 + $0x1c] sm:$0x1]
      %v497 = vsel %vm486, 0, %v496
      %498 = vst [vmem:[%s400 + $0x1c] sm:$0x1] %v497
      %v499 = vld [vmem:[%s400 + $0x24] sm:$0x1]
      %v500 = vsel %vm486, 0, %v499
      %501 = vst [vmem:[%s400 + $0x24] sm:$0x1] %v500
      %v502 = vld [vmem:[%s400 + $0x2c] sm:$0x1]
      %v503 = vsel %vm486, 0, %v502
      %504 = vst [vmem:[%s400 + $0x2c] sm:$0x1] %v503
      %v505 = vld [vmem:[%s400 + $0x34] sm:$0x1]
      %v506 = vsel %vm486, 0, %v505
      %507 = vst [vmem:[%s400 + $0x34] sm:$0x1] %v506
      %v508 = vld [vmem:[%s400 + $0x3c] sm:$0x1]
      %v509 = vsel %vm486, 0, %v508
      %510 = vst [vmem:[%s400 + $0x3c] sm:$0x1] %v509
      %v511 = vld [vmem:[#allocation2] sm:$0xf]
      %v512 = vld [vmem:[#allocation2 + $0x8] sm:$0xf]
      %v513 = vld [vmem:[#allocation2 + $0x10] sm:$0xf]
      %v514 = vld [vmem:[#allocation2 + $0x18] sm:$0xf]
      %v515 = vld [vmem:[#allocation2 + $0x20] sm:$0xf]
      %v516 = vld [vmem:[#allocation2 + $0x28] sm:$0xf]
      %v517 = vld [vmem:[#allocation2 + $0x30] sm:$0xf]
      %v518 = vld [vmem:[#allocation2 + $0x38] sm:$0xf]
      %v519 = vld [vmem:[#allocation2 + $0x4] sm:$0x1]
      %v520 = vld [vmem:[#allocation2 + $0xc] sm:$0x1]
      %v521 = vld [vmem:[#allocation2 + $0x14] sm:$0x1]
      %v522 = vld [vmem:[#allocation2 + $0x1c] sm:$0x1]
      %v523 = vld [vmem:[#allocation2 + $0x24] sm:$0x1]
      %v524 = vld [vmem:[#allocation2 + $0x2c] sm:$0x1]
      %v525 = vld [vmem:[#allocation2 + $0x34] sm:$0x1]
      %v526 = vld [vmem:[#allocation2 + $0x3c] sm:$0x1]
      %v527 = vld [vmem:[#allocation2] sm:$0xe]
      %v528 = vld [vmem:[#allocation2 + $0x8] sm:$0xe]
      %v529 = vld [vmem:[#allocation2 + $0x10] sm:$0xe]
      %v530 = vld [vmem:[#allocation2 + $0x18] sm:$0xe]
      %v531 = vld [vmem:[#allocation2 + $0x20] sm:$0xe]
      %v532 = vld [vmem:[#allocation2 + $0x28] sm:$0xe]
      %v533 = vld [vmem:[#allocation2 + $0x30] sm:$0xe]
      %v534 = vld [vmem:[#allocation2 + $0x38] sm:$0xe]
      %v551 = vunpack.c.l.b16 %v511
      %v552 = vunpack.c.l.b16 %v519
      %v553 = vunpack.c.l.b16 %v512
      %v554 = vunpack.c.l.b16 %v520
      %v555 = vunpack.c.l.b16 %v513
      %v556 = vunpack.c.l.b16 %v521
      %v557 = vunpack.c.l.b16 %v514
      %v558 = vunpack.c.l.b16 %v522
      %v559 = vunpack.c.l.b16 %v515
      %v560 = vunpack.c.l.b16 %v523
      %v561 = vunpack.c.l.b16 %v516
      %v562 = vunpack.c.l.b16 %v524
      %v563 = vunpack.c.l.b16 %v517
      %v564 = vunpack.c.l.b16 %v525
      %v565 = vunpack.c.l.b16 %v518
      %v566 = vunpack.c.l.b16 %v526
      %v567 = vpack.c.b16 %v552, %v551
      %v568 = vpack.c.b16 %v554, %v553
      %v569 = vpack.c.b16 %v556, %v555
      %v570 = vpack.c.b16 %v558, %v557
      %v571 = vpack.c.b16 %v560, %v559
      %v572 = vpack.c.b16 %v562, %v561
      %v573 = vpack.c.b16 %v564, %v563
      %v574 = vpack.c.b16 %v566, %v565
      %v576 = vshrl.u32 %v567, 16
      %v578 = vshll.u32 %v567, 16
      %v580 = vrot.slane %v578, 1
      %v581 = vor.u32 %v576, %v580
      %v583 = vshrl.u32 %v568, 16
      %v585 = vshll.u32 %v568, 16
      %v587 = vrot.slane %v585, 1
      %v588 = vor.u32 %v583, %v587
      %v590 = vshrl.u32 %v569, 16
      %v592 = vshll.u32 %v569, 16
      %v594 = vrot.slane %v592, 1
      %v595 = vor.u32 %v590, %v594
      %v597 = vshrl.u32 %v570, 16
      %v599 = vshll.u32 %v570, 16
      %v601 = vrot.slane %v599, 1
      %v602 = vor.u32 %v597, %v601
      %v604 = vshrl.u32 %v571, 16
      %v606 = vshll.u32 %v571, 16
      %v608 = vrot.slane %v606, 1
      %v609 = vor.u32 %v604, %v608
      %v611 = vshrl.u32 %v572, 16
      %v613 = vshll.u32 %v572, 16
      %v615 = vrot.slane %v613, 1
      %v616 = vor.u32 %v611, %v615
      %v618 = vshrl.u32 %v573, 16
      %v620 = vshll.u32 %v573, 16
      %v622 = vrot.slane %v620, 1
      %v623 = vor.u32 %v618, %v622
      %v625 = vshrl.u32 %v574, 16
      %v627 = vshll.u32 %v574, 16
      %v629 = vrot.slane %v627, 1
      %v630 = vor.u32 %v625, %v629
      %631 = vrot.lane.b32.xlu0 %v581, 32
      %v632 = vpop.permute.xlu0 %631
      %633 = vrot.lane.b32.xlu0 %v588, 32
      %v634 = vpop.permute.xlu0 %633
      %635 = vrot.lane.b32.xlu0 %v595, 32
      %v636 = vpop.permute.xlu0 %635
      %637 = vrot.lane.b32.xlu0 %v602, 32
      %v638 = vpop.permute.xlu0 %637
      %639 = vrot.lane.b32.xlu0 %v609, 32
      %v640 = vpop.permute.xlu0 %639
      %641 = vrot.lane.b32.xlu0 %v616, 32
      %v642 = vpop.permute.xlu0 %641
      %643 = vrot.lane.b32.xlu0 %v623, 32
      %v644 = vpop.permute.xlu0 %643
      %645 = vrot.lane.b32.xlu0 %v630, 32
      %v646 = vpop.permute.xlu0 %645
      %v655 = vunpack.c.l.b16 %v527
      %v656 = vunpack.c.l.b16 %v528
      %v657 = vunpack.c.l.b16 %v529
      %v658 = vunpack.c.l.b16 %v530
      %v659 = vunpack.c.l.b16 %v531
      %v660 = vunpack.c.l.b16 %v532
      %v661 = vunpack.c.l.b16 %v533
      %v662 = vunpack.c.l.b16 %v534
      %v663 = vpack.c.b16 %v552, %v655
      %v664 = vpack.c.b16 %v554, %v656
      %v665 = vpack.c.b16 %v556, %v657
      %v666 = vpack.c.b16 %v558, %v658
      %v667 = vpack.c.b16 %v560, %v659
      %v668 = vpack.c.b16 %v562, %v660
      %v669 = vpack.c.b16 %v564, %v661
      %v670 = vpack.c.b16 %v566, %v662
      %v671 = vrot.slane %v663, 1
      %v672 = vrot.slane %v664, 1
      %v673 = vrot.slane %v665, 1
      %v674 = vrot.slane %v666, 1
      %v675 = vrot.slane %v667, 1
      %v676 = vrot.slane %v668, 1
      %v677 = vrot.slane %v669, 1
      %v678 = vrot.slane %v670, 1
      %679 = vrot.lane.b32.xlu0 %v671, 64
      %v680 = vpop.permute.xlu0 %679
      %681 = vrot.lane.b32.xlu0 %v672, 64
      %v682 = vpop.permute.xlu0 %681
      %683 = vrot.lane.b32.xlu0 %v673, 64
      %v684 = vpop.permute.xlu0 %683
      %685 = vrot.lane.b32.xlu0 %v674, 64
      %v686 = vpop.permute.xlu0 %685
      %687 = vrot.lane.b32.xlu0 %v675, 64
      %v688 = vpop.permute.xlu0 %687
      %689 = vrot.lane.b32.xlu0 %v676, 64
      %v690 = vpop.permute.xlu0 %689
      %691 = vrot.lane.b32.xlu0 %v677, 64
      %v692 = vpop.permute.xlu0 %691
      %693 = vrot.lane.b32.xlu0 %v678, 64
      %v694 = vpop.permute.xlu0 %693
      %vm695 = vcmask 261120
      %v698 = vsel %vm695, %v511, %v632
      %v701 = vsel %vm695, %v512, %v634
      %v704 = vsel %vm695, %v513, %v636
      %v707 = vsel %vm695, %v514, %v638
      %v710 = vsel %vm695, %v515, %v640
      %v713 = vsel %vm695, %v516, %v642
      %v716 = vsel %vm695, %v517, %v644
      %v719 = vsel %vm695, %v518, %v646
      %vm720 = vcmask 523264
      %v722 = vsel %vm720, %v698, %v680
      %v724 = vsel %vm720, %v701, %v682
      %v726 = vsel %vm720, %v704, %v684
      %v728 = vsel %vm720, %v707, %v686
      %v730 = vsel %vm720, %v710, %v688
      %v732 = vsel %vm720, %v713, %v690
      %v734 = vsel %vm720, %v716, %v692
      %v736 = vsel %vm720, %v719, %v694
      %v737 = vld [vmem:[%s3] sm:$0xf]
      %v738 = vld [vmem:[%s3 + $0x4] sm:$0xf]
      %v739 = vld [vmem:[%s3 + $0x8] sm:$0xf]
      %v740 = vld [vmem:[%s3 + $0xc] sm:$0xf]
      %v741 = vld [vmem:[%s3 + $0x10] sm:$0xf]
      %v742 = vld [vmem:[%s3 + $0x14] sm:$0xf]
      %v743 = vld [vmem:[%s3 + $0x18] sm:$0xf]
      %v744 = vld [vmem:[%s3 + $0x1c] sm:$0xf]
      %v745 = vld [vmem:[%s3 + $0x20] sm:$0xf]
      %v746 = vld [vmem:[%s3 + $0x24] sm:$0xf]
      %v747 = vld [vmem:[%s3 + $0x28] sm:$0xf]
      %v748 = vld [vmem:[%s3 + $0x2c] sm:$0xf]
      %v749 = vld [vmem:[%s400] sm:$0xf]
      %v750 = vld [vmem:[%s400 + $0x8] sm:$0xf]
      %v751 = vld [vmem:[%s400 + $0x10] sm:$0xf]
      %v752 = vld [vmem:[%s400 + $0x18] sm:$0xf]
      %v753 = vld [vmem:[%s400 + $0x20] sm:$0xf]
      %v754 = vld [vmem:[%s400 + $0x28] sm:$0xf]
      %v755 = vld [vmem:[%s400 + $0x30] sm:$0xf]
      %v756 = vld [vmem:[%s400 + $0x38] sm:$0xf]
      %v757 = vld [vmem:[%s400 + $0x4] sm:$0x1]
      %v758 = vld [vmem:[%s400 + $0xc] sm:$0x1]
      %v759 = vld [vmem:[%s400 + $0x14] sm:$0x1]
      %v760 = vld [vmem:[%s400 + $0x1c] sm:$0x1]
      %v761 = vld [vmem:[%s400 + $0x24] sm:$0x1]
      %v762 = vld [vmem:[%s400 + $0x2c] sm:$0x1]
      %v763 = vld [vmem:[%s400 + $0x34] sm:$0x1]
      %v764 = vld [vmem:[%s400 + $0x3c] sm:$0x1]
      %v765 = vld [vmem:[%s400] sm:$0xe]
      %v766 = vld [vmem:[%s400 + $0x8] sm:$0xe]
      %v767 = vld [vmem:[%s400 + $0x10] sm:$0xe]
      %v768 = vld [vmem:[%s400 + $0x18] sm:$0xe]
      %v769 = vld [vmem:[%s400 + $0x20] sm:$0xe]
      %v770 = vld [vmem:[%s400 + $0x28] sm:$0xe]
      %v771 = vld [vmem:[%s400 + $0x30] sm:$0xe]
      %v772 = vld [vmem:[%s400 + $0x38] sm:$0xe]
      %v789 = vunpack.c.l.b16 %v749
      %v790 = vunpack.c.l.b16 %v757
      %v791 = vunpack.c.l.b16 %v750
      %v792 = vunpack.c.l.b16 %v758
      %v793 = vunpack.c.l.b16 %v751
      %v794 = vunpack.c.l.b16 %v759
      %v795 = vunpack.c.l.b16 %v752
      %v796 = vunpack.c.l.b16 %v760
      %v797 = vunpack.c.l.b16 %v753
      %v798 = vunpack.c.l.b16 %v761
      %v799 = vunpack.c.l.b16 %v754
      %v800 = vunpack.c.l.b16 %v762
      %v801 = vunpack.c.l.b16 %v755
      %v802 = vunpack.c.l.b16 %v763
      %v803 = vunpack.c.l.b16 %v756
      %v804 = vunpack.c.l.b16 %v764
      %v805 = vpack.c.b16 %v790, %v789
      %v806 = vpack.c.b16 %v792, %v791
      %v807 = vpack.c.b16 %v794, %v793
      %v808 = vpack.c.b16 %v796, %v795
      %v809 = vpack.c.b16 %v798, %v797
      %v810 = vpack.c.b16 %v800, %v799
      %v811 = vpack.c.b16 %v802, %v801
      %v812 = vpack.c.b16 %v804, %v803
      %v814 = vshrl.u32 %v805, 16
      %v816 = vshll.u32 %v805, 16
      %v818 = vrot.slane %v816, 1
      %v819 = vor.u32 %v814, %v818
      %v821 = vshrl.u32 %v806, 16
      %v823 = vshll.u32 %v806, 16
      %v825 = vrot.slane %v823, 1
      %v826 = vor.u32 %v821, %v825
      %v828 = vshrl.u32 %v807, 16
      %v830 = vshll.u32 %v807, 16
      %v832 = vrot.slane %v830, 1
      %v833 = vor.u32 %v828, %v832
      %v835 = vshrl.u32 %v808, 16
      %v837 = vshll.u32 %v808, 16
      %v839 = vrot.slane %v837, 1
      %v840 = vor.u32 %v835, %v839
      %v842 = vshrl.u32 %v809, 16
      %v844 = vshll.u32 %v809, 16
      %v846 = vrot.slane %v844, 1
      %v847 = vor.u32 %v842, %v846
      %v849 = vshrl.u32 %v810, 16
      %v851 = vshll.u32 %v810, 16
      %v853 = vrot.slane %v851, 1
      %v854 = vor.u32 %v849, %v853
      %v856 = vshrl.u32 %v811, 16
      %v858 = vshll.u32 %v811, 16
      %v860 = vrot.slane %v858, 1
      %v861 = vor.u32 %v856, %v860
      %v863 = vshrl.u32 %v812, 16
      %v865 = vshll.u32 %v812, 16
      %v867 = vrot.slane %v865, 1
      %v868 = vor.u32 %v863, %v867
      %869 = vrot.lane.b32.xlu0 %v819, 32
      %v870 = vpop.permute.xlu0 %869
      %871 = vrot.lane.b32.xlu0 %v826, 32
      %v872 = vpop.permute.xlu0 %871
      %873 = vrot.lane.b32.xlu0 %v833, 32
      %v874 = vpop.permute.xlu0 %873
      %875 = vrot.lane.b32.xlu0 %v840, 32
      %v876 = vpop.permute.xlu0 %875
      %877 = vrot.lane.b32.xlu0 %v847, 32
      %v878 = vpop.permute.xlu0 %877
      %879 = vrot.lane.b32.xlu0 %v854, 32
      %v880 = vpop.permute.xlu0 %879
      %881 = vrot.lane.b32.xlu0 %v861, 32
      %v882 = vpop.permute.xlu0 %881
      %883 = vrot.lane.b32.xlu0 %v868, 32
      %v884 = vpop.permute.xlu0 %883
      %v893 = vunpack.c.l.b16 %v765
      %v894 = vunpack.c.l.b16 %v766
      %v895 = vunpack.c.l.b16 %v767
      %v896 = vunpack.c.l.b16 %v768
      %v897 = vunpack.c.l.b16 %v769
      %v898 = vunpack.c.l.b16 %v770
      %v899 = vunpack.c.l.b16 %v771
      %v900 = vunpack.c.l.b16 %v772
      %v901 = vpack.c.b16 %v790, %v893
      %v902 = vpack.c.b16 %v792, %v894
      %v903 = vpack.c.b16 %v794, %v895
      %v904 = vpack.c.b16 %v796, %v896
      %v905 = vpack.c.b16 %v798, %v897
      %v906 = vpack.c.b16 %v800, %v898
      %v907 = vpack.c.b16 %v802, %v899
      %v908 = vpack.c.b16 %v804, %v900
      %v909 = vrot.slane %v901, 1
      %v910 = vrot.slane %v902, 1
      %v911 = vrot.slane %v903, 1
      %v912 = vrot.slane %v904, 1
      %v913 = vrot.slane %v905, 1
      %v914 = vrot.slane %v906, 1
      %v915 = vrot.slane %v907, 1
      %v916 = vrot.slane %v908, 1
      %917 = vrot.lane.b32.xlu0 %v909, 64
      %v918 = vpop.permute.xlu0 %917
      %919 = vrot.lane.b32.xlu0 %v910, 64
      %v920 = vpop.permute.xlu0 %919
      %921 = vrot.lane.b32.xlu0 %v911, 64
      %v922 = vpop.permute.xlu0 %921
      %923 = vrot.lane.b32.xlu0 %v912, 64
      %v924 = vpop.permute.xlu0 %923
      %925 = vrot.lane.b32.xlu0 %v913, 64
      %v926 = vpop.permute.xlu0 %925
      %927 = vrot.lane.b32.xlu0 %v914, 64
      %v928 = vpop.permute.xlu0 %927
      %929 = vrot.lane.b32.xlu0 %v915, 64
      %v930 = vpop.permute.xlu0 %929
      %931 = vrot.lane.b32.xlu0 %v916, 64
      %v932 = vpop.permute.xlu0 %931
      %v935 = vsel %vm695, %v749, %v870
      %v938 = vsel %vm695, %v750, %v872
      %v941 = vsel %vm695, %v751, %v874
      %v944 = vsel %vm695, %v752, %v876
      %v947 = vsel %vm695, %v753, %v878
      %v950 = vsel %vm695, %v754, %v880
      %v953 = vsel %vm695, %v755, %v882
      %v956 = vsel %vm695, %v756, %v884
      %v958 = vsel %vm720, %v935, %v918
      %v960 = vsel %vm720, %v938, %v920
      %v962 = vsel %vm720, %v941, %v922
      %v964 = vsel %vm720, %v944, %v924
      %v966 = vsel %vm720, %v947, %v926
      %v968 = vsel %vm720, %v950, %v928
      %v970 = vsel %vm720, %v953, %v930
      %v972 = vsel %vm720, %v956, %v932
      %v973 = vld [vmem:[%s3 + $0x30] sm:$0xf]
      %v974 = vld [vmem:[%s3 + $0x34] sm:$0xf]
      %v975 = vld [vmem:[%s3 + $0x38] sm:$0xf]
      %v976 = vld [vmem:[%s3 + $0x3c] sm:$0xf]
      %v977 = vld [vmem:[%s3 + $0x40] sm:$0xf]
      %v978 = vld [vmem:[%s3 + $0x44] sm:$0xf]
      %v979 = vld [vmem:[%s3 + $0x48] sm:$0xf]
      %v980 = vld [vmem:[%s3 + $0x4c] sm:$0xf]
      %v981 = vld [vmem:[%s3 + $0x50] sm:$0xf]
      %v982 = vld [vmem:[%s3 + $0x54] sm:$0xf]
      %v983 = vld [vmem:[%s3 + $0x58] sm:$0xf]
      %v984 = vld [vmem:[%s3 + $0x5c] sm:$0xf]
      %v993 = vunpack.c.l.b16 %v958
      %v994 = vunpack.c.l.b16 %v960
      %v995 = vunpack.c.l.b16 %v962
      %v996 = vunpack.c.l.b16 %v964
      %v997 = vunpack.c.l.b16 %v966
      %v998 = vunpack.c.l.b16 %v968
      %v999 = vunpack.c.l.b16 %v970
      %v1000 = vunpack.c.l.b16 %v972
      %v1001 = vpack.c.b16 %v994, %v993
      %v1002 = vpack.c.b16 %v996, %v995
      %v1003 = vpack.c.b16 %v998, %v997
      %v1004 = vpack.c.b16 %v1000, %v999
      %v1017 = vunpack.c.l.b16 %v973
      %v1018 = vunpack.c.l.b16 %v974
      %v1019 = vunpack.c.l.b16 %v975
      %v1020 = vunpack.c.l.b16 %v976
      %v1021 = vunpack.c.l.b16 %v977
      %v1022 = vunpack.c.l.b16 %v978
      %v1023 = vunpack.c.l.b16 %v979
      %v1024 = vunpack.c.l.b16 %v980
      %v1025 = vunpack.c.l.b16 %v981
      %v1026 = vunpack.c.l.b16 %v982
      %v1027 = vunpack.c.l.b16 %v983
      %v1028 = vunpack.c.l.b16 %v984
      %v1029 = vpack.c.b16 %v1018, %v1017
      %v1030 = vpack.c.b16 %v1020, %v1019
      %v1031 = vpack.c.b16 %v1022, %v1021
      %v1032 = vpack.c.b16 %v1024, %v1023
      %v1033 = vpack.c.b16 %v1026, %v1025
      %v1034 = vpack.c.b16 %v1028, %v1027
      %vm1041 = vcmask 785408
      %v1043 = vsel %vm1041, %v1001, 0
      %v1046 = vsel %vm1041, %v1002, 0
      %v1049 = vsel %vm1041, %v1003, 0
      %v1052 = vsel %vm1041, %v1004, 0
      %1054 = vmatpush.bf16.msra.mxu0 0
      %1055 = vmatpush.bf16.msra.mxu0 0
      %1056 = vmatpush.bf16.msra.mxu0 %v1034
      %1057 = vmatpush.bf16.msra.mxu0 %v1033
      %1058 = vmatpush.bf16.msra.mxu0 %v1032
      %1059 = vmatpush.bf16.msra.mxu0 %v1031
      %1060 = vmatpush.bf16.msra.mxu0 %v1030
      %1061 = vmatpush.bf16.msra.mxu0 %v1029
      %1062 = vmatmul.bf16.gmra.mxu0 %v1043
      %v1063 = vpop.f32.mrf.mxu0
      %v1064 = vadd.f32 0.0, %v1063
      %v1065 = vpop.f32.mrf.mxu0
      %v1066 = vadd.f32 0.0, %v1065
      %1067 = vmatmul.bf16.gmra.mxu0 %v1046
      %v1068 = vpop.f32.mrf.mxu0
      %v1069 = vadd.f32 0.0, %v1068
      %v1070 = vpop.f32.mrf.mxu0
      %v1071 = vadd.f32 0.0, %v1070
      %1072 = vmatmul.bf16.gmra.mxu0 %v1049
      %v1073 = vpop.f32.mrf.mxu0
      %v1074 = vadd.f32 0.0, %v1073
      %v1075 = vpop.f32.mrf.mxu0
      %v1076 = vadd.f32 0.0, %v1075
      %1077 = vmatmul.bf16.gmra.mxu0 %v1052
      %v1078 = vpop.f32.mrf.mxu0
      %v1079 = vadd.f32 0.0, %v1078
      %v1080 = vpop.f32.mrf.mxu0
      %v1081 = vadd.f32 0.0, %v1080
      %1082 = vdwg.mxu0
      %s1083 = scalar_lea.vmem [#allocation2], 16
      %v1084 = vld [vmem:[%s1083] sm:$0xf]
      %v1085 = vld [vmem:[%s1083 + $0x8] sm:$0xf]
      %v1086 = vld [vmem:[%s1083 + $0x10] sm:$0xf]
      %v1087 = vld [vmem:[%s1083 + $0x18] sm:$0xf]
      %v1088 = vld [vmem:[%s1083 + $0x20] sm:$0xf]
      %v1089 = vld [vmem:[%s1083 + $0x28] sm:$0xf]
      %v1090 = vld [vmem:[%s1083 + $0x30] sm:$0xf]
      %v1091 = vld [vmem:[%s1083 + $0x38] sm:$0xf]
      %v1092 = vld [vmem:[%s1083 + $0x4] sm:$0x1]
      %v1093 = vld [vmem:[%s1083 + $0xc] sm:$0x1]
      %v1094 = vld [vmem:[%s1083 + $0x14] sm:$0x1]
      %v1095 = vld [vmem:[%s1083 + $0x1c] sm:$0x1]
      %v1096 = vld [vmem:[%s1083 + $0x24] sm:$0x1]
      %v1097 = vld [vmem:[%s1083 + $0x2c] sm:$0x1]
      %v1098 = vld [vmem:[%s1083 + $0x34] sm:$0x1]
      %v1099 = vld [vmem:[%s1083 + $0x3c] sm:$0x1]
      %v1100 = vld [vmem:[%s1083] sm:$0xe]
      %v1101 = vld [vmem:[%s1083 + $0x8] sm:$0xe]
      %v1102 = vld [vmem:[%s1083 + $0x10] sm:$0xe]
      %v1103 = vld [vmem:[%s1083 + $0x18] sm:$0xe]
      %v1104 = vld [vmem:[%s1083 + $0x20] sm:$0xe]
      %v1105 = vld [vmem:[%s1083 + $0x28] sm:$0xe]
      %v1106 = vld [vmem:[%s1083 + $0x30] sm:$0xe]
      %v1107 = vld [vmem:[%s1083 + $0x38] sm:$0xe]
      %v1124 = vunpack.c.l.b16 %v1084
      %v1125 = vunpack.c.l.b16 %v1092
      %v1126 = vunpack.c.l.b16 %v1085
      %v1127 = vunpack.c.l.b16 %v1093
      %v1128 = vunpack.c.l.b16 %v1086
      %v1129 = vunpack.c.l.b16 %v1094
      %v1130 = vunpack.c.l.b16 %v1087
      %v1131 = vunpack.c.l.b16 %v1095
      %v1132 = vunpack.c.l.b16 %v1088
      %v1133 = vunpack.c.l.b16 %v1096
      %v1134 = vunpack.c.l.b16 %v1089
      %v1135 = vunpack.c.l.b16 %v1097
      %v1136 = vunpack.c.l.b16 %v1090
      %v1137 = vunpack.c.l.b16 %v1098
      %v1138 = vunpack.c.l.b16 %v1091
      %v1139 = vunpack.c.l.b16 %v1099
      %v1140 = vpack.c.b16 %v1125, %v1124
      %v1141 = vpack.c.b16 %v1127, %v1126
      %v1142 = vpack.c.b16 %v1129, %v1128
      %v1143 = vpack.c.b16 %v1131, %v1130
      %v1144 = vpack.c.b16 %v1133, %v1132
      %v1145 = vpack.c.b16 %v1135, %v1134
      %v1146 = vpack.c.b16 %v1137, %v1136
      %v1147 = vpack.c.b16 %v1139, %v1138
      %v1149 = vshrl.u32 %v1140, 16
      %v1151 = vshll.u32 %v1140, 16
      %v1153 = vrot.slane %v1151, 1
      %v1154 = vor.u32 %v1149, %v1153
      %v1156 = vshrl.u32 %v1141, 16
      %v1158 = vshll.u32 %v1141, 16
      %v1160 = vrot.slane %v1158, 1
      %v1161 = vor.u32 %v1156, %v1160
      %v1163 = vshrl.u32 %v1142, 16
      %v1165 = vshll.u32 %v1142, 16
      %v1167 = vrot.slane %v1165, 1
      %v1168 = vor.u32 %v1163, %v1167
      %v1170 = vshrl.u32 %v1143, 16
      %v1172 = vshll.u32 %v1143, 16
      %v1174 = vrot.slane %v1172, 1
      %v1175 = vor.u32 %v1170, %v1174
      %v1177 = vshrl.u32 %v1144, 16
      %v1179 = vshll.u32 %v1144, 16
      %v1181 = vrot.slane %v1179, 1
      %v1182 = vor.u32 %v1177, %v1181
      %v1184 = vshrl.u32 %v1145, 16
      %v1186 = vshll.u32 %v1145, 16
      %v1188 = vrot.slane %v1186, 1
      %v1189 = vor.u32 %v1184, %v1188
      %v1191 = vshrl.u32 %v1146, 16
      %v1193 = vshll.u32 %v1146, 16
      %v1195 = vrot.slane %v1193, 1
      %v1196 = vor.u32 %v1191, %v1195
      %v1198 = vshrl.u32 %v1147, 16
      %v1200 = vshll.u32 %v1147, 16
      %v1202 = vrot.slane %v1200, 1
      %v1203 = vor.u32 %v1198, %v1202
      %1204 = vrot.lane.b32.xlu0 %v1154, 32
      %v1205 = vpop.permute.xlu0 %1204
      %1206 = vrot.lane.b32.xlu0 %v1161, 32
      %v1207 = vpop.permute.xlu0 %1206
      %1208 = vrot.lane.b32.xlu0 %v1168, 32
      %v1209 = vpop.permute.xlu0 %1208
      %1210 = vrot.lane.b32.xlu0 %v1175, 32
      %v1211 = vpop.permute.xlu0 %1210
      %1212 = vrot.lane.b32.xlu0 %v1182, 32
      %v1213 = vpop.permute.xlu0 %1212
      %1214 = vrot.lane.b32.xlu0 %v1189, 32
      %v1215 = vpop.permute.xlu0 %1214
      %1216 = vrot.lane.b32.xlu0 %v1196, 32
      %v1217 = vpop.permute.xlu0 %1216
      %1218 = vrot.lane.b32.xlu0 %v1203, 32
      %v1219 = vpop.permute.xlu0 %1218
      %v1228 = vunpack.c.l.b16 %v1100
      %v1229 = vunpack.c.l.b16 %v1101
      %v1230 = vunpack.c.l.b16 %v1102
      %v1231 = vunpack.c.l.b16 %v1103
      %v1232 = vunpack.c.l.b16 %v1104
      %v1233 = vunpack.c.l.b16 %v1105
      %v1234 = vunpack.c.l.b16 %v1106
      %v1235 = vunpack.c.l.b16 %v1107
      %v1236 = vpack.c.b16 %v1125, %v1228
      %v1237 = vpack.c.b16 %v1127, %v1229
      %v1238 = vpack.c.b16 %v1129, %v1230
      %v1239 = vpack.c.b16 %v1131, %v1231
      %v1240 = vpack.c.b16 %v1133, %v1232
      %v1241 = vpack.c.b16 %v1135, %v1233
      %v1242 = vpack.c.b16 %v1137, %v1234
      %v1243 = vpack.c.b16 %v1139, %v1235
      %v1244 = vrot.slane %v1236, 1
      %v1245 = vrot.slane %v1237, 1
      %v1246 = vrot.slane %v1238, 1
      %v1247 = vrot.slane %v1239, 1
      %v1248 = vrot.slane %v1240, 1
      %v1249 = vrot.slane %v1241, 1
      %v1250 = vrot.slane %v1242, 1
      %v1251 = vrot.slane %v1243, 1
      %1252 = vrot.lane.b32.xlu0 %v1244, 64
      %v1253 = vpop.permute.xlu0 %1252
      %1254 = vrot.lane.b32.xlu0 %v1245, 64
      %v1255 = vpop.permute.xlu0 %1254
      %1256 = vrot.lane.b32.xlu0 %v1246, 64
      %v1257 = vpop.permute.xlu0 %1256
      %1258 = vrot.lane.b32.xlu0 %v1247, 64
      %v1259 = vpop.permute.xlu0 %1258
      %1260 = vrot.lane.b32.xlu0 %v1248, 64
      %v1261 = vpop.permute.xlu0 %1260
      %1262 = vrot.lane.b32.xlu0 %v1249, 64
      %v1263 = vpop.permute.xlu0 %1262
      %1264 = vrot.lane.b32.xlu0 %v1250, 64
      %v1265 = vpop.permute.xlu0 %1264
      %1266 = vrot.lane.b32.xlu0 %v1251, 64
      %v1267 = vpop.permute.xlu0 %1266
      %v1270 = vsel %vm695, %v1084, %v1205
      %v1273 = vsel %vm695, %v1085, %v1207
      %v1276 = vsel %vm695, %v1086, %v1209
      %v1279 = vsel %vm695, %v1087, %v1211
      %v1282 = vsel %vm695, %v1088, %v1213
      %v1285 = vsel %vm695, %v1089, %v1215
      %v1288 = vsel %vm695, %v1090, %v1217
      %v1291 = vsel %vm695, %v1091, %v1219
      %v1293 = vsel %vm720, %v1270, %v1253
      %v1295 = vsel %vm720, %v1273, %v1255
      %v1297 = vsel %vm720, %v1276, %v1257
      %v1299 = vsel %vm720, %v1279, %v1259
      %v1301 = vsel %vm720, %v1282, %v1261
      %v1303 = vsel %vm720, %v1285, %v1263
      %v1305 = vsel %vm720, %v1288, %v1265
      %v1307 = vsel %vm720, %v1291, %v1267
      %v1308 = vld [vmem:[%s3 + $0x60] sm:$0xf]
      %v1309 = vld [vmem:[%s3 + $0x64] sm:$0xf]
      %v1310 = vld [vmem:[%s3 + $0x68] sm:$0xf]
      %v1311 = vld [vmem:[%s3 + $0x6c] sm:$0xf]
      %v1312 = vld [vmem:[%s3 + $0x70] sm:$0xf]
      %v1313 = vld [vmem:[%s3 + $0x74] sm:$0xf]
      %v1314 = vld [vmem:[%s3 + $0x78] sm:$0xf]
      %v1315 = vld [vmem:[%s3 + $0x7c] sm:$0xf]
      %v1316 = vld [vmem:[%s3 + $0x80] sm:$0xf]
      %v1317 = vld [vmem:[%s3 + $0x84] sm:$0xf]
      %v1318 = vld [vmem:[%s3 + $0x88] sm:$0xf]
      %v1319 = vld [vmem:[%s3 + $0x8c] sm:$0xf]
      %v1328 = vunpack.c.l.b16 %v1293
      %v1329 = vunpack.c.l.b16 %v1295
      %v1330 = vunpack.c.l.b16 %v1297
      %v1331 = vunpack.c.l.b16 %v1299
      %v1332 = vunpack.c.l.b16 %v1301
      %v1333 = vunpack.c.l.b16 %v1303
      %v1334 = vunpack.c.l.b16 %v1305
      %v1335 = vunpack.c.l.b16 %v1307
      %v1336 = vpack.c.b16 %v1329, %v1328
      %v1337 = vpack.c.b16 %v1331, %v1330
      %v1338 = vpack.c.b16 %v1333, %v1332
      %v1339 = vpack.c.b16 %v1335, %v1334
      %v1352 = vunpack.c.l.b16 %v1308
      %v1353 = vunpack.c.l.b16 %v1309
      %v1354 = vunpack.c.l.b16 %v1310
      %v1355 = vunpack.c.l.b16 %v1311
      %v1356 = vunpack.c.l.b16 %v1312
      %v1357 = vunpack.c.l.b16 %v1313
      %v1358 = vunpack.c.l.b16 %v1314
      %v1359 = vunpack.c.l.b16 %v1315
      %v1360 = vunpack.c.l.b16 %v1316
      %v1361 = vunpack.c.l.b16 %v1317
      %v1362 = vunpack.c.l.b16 %v1318
      %v1363 = vunpack.c.l.b16 %v1319
      %v1364 = vpack.c.b16 %v1353, %v1352
      %v1365 = vpack.c.b16 %v1355, %v1354
      %v1366 = vpack.c.b16 %v1357, %v1356
      %v1367 = vpack.c.b16 %v1359, %v1358
      %v1368 = vpack.c.b16 %v1361, %v1360
      %v1369 = vpack.c.b16 %v1363, %v1362
      %v1377 = vsel %vm1041, %v1336, 0
      %v1380 = vsel %vm1041, %v1337, 0
      %v1383 = vsel %vm1041, %v1338, 0
      %v1386 = vsel %vm1041, %v1339, 0
      %1388 = vmatpush.bf16.msra.mxu0 0
      %1389 = vmatpush.bf16.msra.mxu0 0
      %1390 = vmatpush.bf16.msra.mxu0 %v1369
      %1391 = vmatpush.bf16.msra.mxu0 %v1368
      %1392 = vmatpush.bf16.msra.mxu0 %v1367
      %1393 = vmatpush.bf16.msra.mxu0 %v1366
      %1394 = vmatpush.bf16.msra.mxu0 %v1365
      %1395 = vmatpush.bf16.msra.mxu0 %v1364
      %1396 = vmatmul.bf16.gmra.mxu0 %v1377
      %v1397 = vpop.f32.mrf.mxu0
      %v1398 = vadd.f32 0.0, %v1397
      %v1399 = vpop.f32.mrf.mxu0
      %v1400 = vadd.f32 0.0, %v1399
      %1401 = vmatmul.bf16.gmra.mxu0 %v1380
      %v1402 = vpop.f32.mrf.mxu0
      %v1403 = vadd.f32 0.0, %v1402
      %v1404 = vpop.f32.mrf.mxu0
      %v1405 = vadd.f32 0.0, %v1404
      %1406 = vmatmul.bf16.gmra.mxu0 %v1383
      %v1407 = vpop.f32.mrf.mxu0
      %v1408 = vadd.f32 0.0, %v1407
      %v1409 = vpop.f32.mrf.mxu0
      %v1410 = vadd.f32 0.0, %v1409
      %1411 = vmatmul.bf16.gmra.mxu0 %v1386
      %v1412 = vpop.f32.mrf.mxu0
      %v1413 = vadd.f32 0.0, %v1412
      %v1414 = vpop.f32.mrf.mxu0
      %v1415 = vadd.f32 0.0, %v1414
      %1416 = vdwg.mxu0
      %v1425 = vunpack.c.l.b16 %v722
      %v1426 = vunpack.c.l.b16 %v724
      %v1427 = vunpack.c.l.b16 %v726
      %v1428 = vunpack.c.l.b16 %v728
      %v1429 = vunpack.c.l.b16 %v730
      %v1430 = vunpack.c.l.b16 %v732
      %v1431 = vunpack.c.l.b16 %v734
      %v1432 = vunpack.c.l.b16 %v736
      %v1433 = vpack.c.b16 %v1426, %v1425
      %v1434 = vpack.c.b16 %v1428, %v1427
      %v1435 = vpack.c.b16 %v1430, %v1429
      %v1436 = vpack.c.b16 %v1432, %v1431
      %v1449 = vunpack.c.l.b16 %v737
      %v1450 = vunpack.c.l.b16 %v738
      %v1451 = vunpack.c.l.b16 %v739
      %v1452 = vunpack.c.l.b16 %v740
      %v1453 = vunpack.c.l.b16 %v741
      %v1454 = vunpack.c.l.b16 %v742
      %v1455 = vunpack.c.l.b16 %v743
      %v1456 = vunpack.c.l.b16 %v744
      %v1457 = vunpack.c.l.b16 %v745
      %v1458 = vunpack.c.l.b16 %v746
      %v1459 = vunpack.c.l.b16 %v747
      %v1460 = vunpack.c.l.b16 %v748
      %v1461 = vpack.c.b16 %v1450, %v1449
      %v1462 = vpack.c.b16 %v1452, %v1451
      %v1463 = vpack.c.b16 %v1454, %v1453
      %v1464 = vpack.c.b16 %v1456, %v1455
      %v1465 = vpack.c.b16 %v1458, %v1457
      %v1466 = vpack.c.b16 %v1460, %v1459
      %v1474 = vsel %vm1041, %v1433, 0
      %v1477 = vsel %vm1041, %v1434, 0
      %v1480 = vsel %vm1041, %v1435, 0
      %v1483 = vsel %vm1041, %v1436, 0
      %1485 = vmatpush.bf16.msra.mxu0 0
      %1486 = vmatpush.bf16.msra.mxu0 0
      %1487 = vmatpush.bf16.msra.mxu0 %v1466
      %1488 = vmatpush.bf16.msra.mxu0 %v1465
      %1489 = vmatpush.bf16.msra.mxu0 %v1464
      %1490 = vmatpush.bf16.msra.mxu0 %v1463
      %1491 = vmatpush.bf16.msra.mxu0 %v1462
      %1492 = vmatpush.bf16.msra.mxu0 %v1461
      %1493 = vmatmul.bf16.gmra.mxu0 %v1474
      %v1494 = vpop.f32.mrf.mxu0
      %v1495 = vadd.f32 %v1064, %v1494
      %v1496 = vpop.f32.mrf.mxu0
      %v1497 = vadd.f32 %v1066, %v1496
      %1498 = vmatmul.bf16.gmra.mxu0 %v1477
      %v1499 = vpop.f32.mrf.mxu0
      %v1500 = vadd.f32 %v1069, %v1499
      %v1501 = vpop.f32.mrf.mxu0
      %v1502 = vadd.f32 %v1071, %v1501
      %1503 = vmatmul.bf16.gmra.mxu0 %v1480
      %v1504 = vpop.f32.mrf.mxu0
      %v1505 = vadd.f32 %v1074, %v1504
      %v1506 = vpop.f32.mrf.mxu0
      %v1507 = vadd.f32 %v1076, %v1506
      %1508 = vmatmul.bf16.gmra.mxu0 %v1483
      %v1509 = vpop.f32.mrf.mxu0
      %v1510 = vadd.f32 %v1079, %v1509
      %v1511 = vpop.f32.mrf.mxu0
      %v1512 = vadd.f32 %v1081, %v1511
      %1513 = vdwg.mxu0
      %v1514 = vadd.f32 %v1495, %v1398
      %v1515 = vadd.f32 %v1497, %v1400
      %v1516 = vadd.f32 %v1500, %v1403
      %v1517 = vadd.f32 %v1502, %v1405
      %v1518 = vadd.f32 %v1505, %v1408
      %v1519 = vadd.f32 %v1507, %v1410
      %v1520 = vadd.f32 %v1510, %v1413
      %v1521 = vadd.f32 %v1512, %v1415
      %v1522 = vld [vmem:[%s4] sm:$0x1]
      %v1524 = vperm.slane %v1522, 0
      %v1526 = vadd.f32 %v1514, %v1524
      %v1527 = vadd.f32 %v1515, %v1524
      %v1528 = vadd.f32 %v1516, %v1524
      %v1529 = vadd.f32 %v1517, %v1524
      %v1530 = vadd.f32 %v1518, %v1524
      %v1531 = vadd.f32 %v1519, %v1524
      %v1532 = vadd.f32 %v1520, %v1524
      %v1533 = vadd.f32 %v1521, %v1524
      %v1534 = vpack.c.bf16 %v1526, %v1526
      %v1535 = vpack.c.bf16 %v1527, %v1527
      %v1536 = vpack.c.bf16 %v1528, %v1528
      %v1537 = vpack.c.bf16 %v1529, %v1529
      %v1538 = vpack.c.bf16 %v1530, %v1530
      %v1539 = vpack.c.bf16 %v1531, %v1531
      %v1540 = vpack.c.bf16 %v1532, %v1532
      %v1541 = vpack.c.bf16 %v1533, %v1533
      %1542 = vst.msk [vmem:[%s258] sm:$0xf] %vm455, %v1534
      %1543 = vst.msk [vmem:[%s258 + $0x4] sm:$0xf] %vm455, %v1535
      %1544 = vst.msk [vmem:[%s258 + $0x8] sm:$0xf] %vm455, %v1536
      %1545 = vst.msk [vmem:[%s258 + $0xc] sm:$0xf] %vm455, %v1537
      %1546 = vst.msk [vmem:[%s258 + $0x10] sm:$0xf] %vm455, %v1538
      %1547 = vst.msk [vmem:[%s258 + $0x14] sm:$0xf] %vm455, %v1539
      %1548 = vst.msk [vmem:[%s258 + $0x18] sm:$0xf] %vm455, %v1540
      %1549 = vst.msk [vmem:[%s258 + $0x1c] sm:$0xf] %vm455, %v1541
      %v1550 = vsel %vm695, %v1526, 0.0
      %v1551 = vsel %vm695, %v1527, 0.0
      %v1552 = vadd.f32 %v1550, %v1551
      %v1553 = vsel %vm695, %v1528, 0.0
      %v1554 = vadd.f32 %v1552, %v1553
      %v1555 = vsel %vm695, %v1529, 0.0
      %v1556 = vadd.f32 %v1554, %v1555
      %v1557 = vsel %vm695, %v1530, 0.0
      %v1558 = vadd.f32 %v1556, %v1557
      %v1559 = vsel %vm695, %v1531, 0.0
      %v1560 = vadd.f32 %v1558, %v1559
      %v1561 = vsel %vm695, %v1532, 0.0
      %v1562 = vadd.f32 %v1560, %v1561
      %v1563 = vsel %vm695, %v1533, 0.0
      %v1564 = vadd.f32 %v1562, %v1563
      %v1565 = vrot.slane %v1564, 4
      %v1566 = vadd.f32 %v1564, %v1565
      %v1567 = vrot.slane %v1566, 2
      %v1568 = vadd.f32 %v1566, %v1567
      %v1569 = vrot.slane %v1568, 1
      %v1570 = vadd.f32 %v1568, %v1569
      %1571 = vst.msk [vmem:[%s262] sm:$0x1] %vm457, %v1570
      %v1572 = vmul.f32 %v1526, %v1526
      %v1573 = vmul.f32 %v1527, %v1527
      %v1574 = vmul.f32 %v1528, %v1528
      %v1575 = vmul.f32 %v1529, %v1529
      %v1576 = vmul.f32 %v1530, %v1530
      %v1577 = vmul.f32 %v1531, %v1531
      %v1578 = vmul.f32 %v1532, %v1532
      %v1579 = vmul.f32 %v1533, %v1533
      %v1580 = vsel %vm695, %v1572, 0.0
      %v1581 = vsel %vm695, %v1573, 0.0
      %v1582 = vadd.f32 %v1580, %v1581
      %v1583 = vsel %vm695, %v1574, 0.0
      %v1584 = vadd.f32 %v1582, %v1583
      %v1585 = vsel %vm695, %v1575, 0.0
      %v1586 = vadd.f32 %v1584, %v1585
      %v1587 = vsel %vm695, %v1576, 0.0
      %v1588 = vadd.f32 %v1586, %v1587
      %v1589 = vsel %vm695, %v1577, 0.0
      %v1590 = vadd.f32 %v1588, %v1589
      %v1591 = vsel %vm695, %v1578, 0.0
      %v1592 = vadd.f32 %v1590, %v1591
      %v1593 = vsel %vm695, %v1579, 0.0
      %v1594 = vadd.f32 %v1592, %v1593
      %v1595 = vrot.slane %v1594, 4
      %v1596 = vadd.f32 %v1594, %v1595
      %v1597 = vrot.slane %v1596, 2
      %v1598 = vadd.f32 %v1596, %v1597
      %v1599 = vrot.slane %v1598, 1
      %v1600 = vadd.f32 %v1598, %v1599
      %1601 = vst.msk [vmem:[%s262 + $0x1] sm:$0x1] %vm457, %v1600
      %p1602 = scmp.lt.s32.totalorder %s18, 1
      %s1603 = scalar_select %p1602, %s18, 1
      %s1604 = smul.addr %s1603, 8
      %s1605 = smul.addr %s1604, 4
      %s1606 = scalar_lea.vmem %s5, %s1605
      %p1607 = scmp.lt.s32.totalorder %s18, 1
      %s1608 = scalar_select %p1607, %s18, 1
      %s1609 = smul.addr %s1608, 2
      %s1610 = scalar_lea.vmem %s6, %s1609
      // Predicated region
      $region41: #{residual_block_forward.4} parent=39 // pred_check
        %p1611 = pneg %p146
      $region42: #{residual_block_forward.4} parent=39 // pred_check_branch
        %1613 = sbr.rel (%p1611) target = $region44
      $region43: #{residual_block_forward.4} parent=39 // pred_region
        _
      $region44: #{residual_block_forward.4} parent=39 // pred_fallthru
        _
      // Predicated region
      $region45: #{residual_block_forward.4} parent=39 // pred_check
        %p1614 = pneg %p172
      $region46: #{residual_block_forward.4} parent=39 // pred_check_branch
        %1616 = sbr.rel (%p1614) target = $region48
      $region47: #{residual_block_forward.4} parent=39 // pred_region
        _
      $region48: #{residual_block_forward.4} parent=39 // pred_fallthru
        _
    $region40: #{residual_block_forward.4} parent=5 // pred_fallthru
      _
    %p1617 = scmp.le.s32.totalorder 2, %s13
    // Predicated region
    $region49: #{residual_block_forward.4} parent=5 // pred_check
      %p1618 = pneg %p1617
    $region50: #{residual_block_forward.4} parent=5 // pred_check_branch
      %1620 = sbr.rel (%p1618) target = $region52
    $region51: #{residual_block_forward.4} parent=5 // pred_region
      %s1621 = ssub.s32 %s13, 2
      // Predicated region
      $region53: #{residual_block_forward.4} parent=51 // pred_check
        %p1622 = pneg %p152
      $region54: #{residual_block_forward.4} parent=51 // pred_check_branch
        %1624 = sbr.rel (%p1622) target = $region56
      $region55: #{residual_block_forward.4} parent=51 // pred_region
        %p1625 = scmp.lt.s32.totalorder %s19, 1
        %s1626 = scalar_select %p1625, %s19, 1
        %s1627 = smul.addr %s1626, 8
        %s1628 = smul.addr %s1627, 4
        %s1629 = scalar_lea.vmem %s5, %s1628
      $region56: #{residual_block_forward.4} parent=51 // pred_fallthru
        _
      // Predicated region
      $region57: #{residual_block_forward.4} parent=51 // pred_check
        %p1630 = pneg %p178
      $region58: #{residual_block_forward.4} parent=51 // pred_check_branch
        %1632 = sbr.rel (%p1630) target = $region60
      $region59: #{residual_block_forward.4} parent=51 // pred_region
        %p1633 = scmp.lt.s32.totalorder %s19, 1
        %s1634 = scalar_select %p1633, %s19, 1
        %s1635 = smul.addr %s1634, 2
        %s1636 = scalar_lea.vmem %s6, %s1635
      $region60: #{residual_block_forward.4} parent=51 // pred_fallthru
        _
    $region52: #{residual_block_forward.4} parent=5 // pred_fallthru
      _
  $region6: #{residual_block_forward.4} parent=0 // loop_footer
    %s17 = sadd.s32 1, %s13
  $region7: #{residual_block_forward.4} parent=0 // loop_footer_branch
    %12 = sbr.rel target = $region3
  $region8: #{residual_block_forward.4} parent=0 // loop_exit
    _

</llo_original>
